<compile_context>
chip_gen: v7x
topology: tpu7x:2x2x1
jax: 0.10.0
libtpu: 0.0.40
codegen_flags: <defaults>
</compile_context>

<pallas_src>
import functools

import jax
import jax.numpy as jnp
from jax.experimental import pallas as pl
from jax.experimental.pallas import tpu as pltpu

DIM = 32          # hidden size
HOP = 2           # number of hops
BATCH = 2
SAMPLE_NUM = 4    # neighbors sampled per node
SEQ = 8           # session length


# --------------------------------------------------------------------------
# Fused forward kernel (built per static (hop, sample_num) configuration).
# --------------------------------------------------------------------------
def _make_fused_kernel(hop, sample_num, rows_per_stage, groups_per_stage, n0):
    """Ref order:
      nh_ref   (R0, D)  stage-0 neighbor hiddens (flattened, hop-concatenated)
      sess_ref (R0, D)  session hiddens repeated over the sample axis
      nw_ref   (R0, 1)  neighbor weights (flattened, hop-concatenated)
      g_ref    (G0, R0) 0/1 grouping matrix: row i selects rows i*S .. i*S+S-1
      item_ref (n0, D)
      per stage k: w1a_k (D, D) = w_1[:D], w1b_k (1, D) = w_1[D:], w2r_k (1, D) = w_2.T
      wgate_ref (2D, D) = [w_1; w_2] stacked (gate weights)
      out_ref  (n0, D)
    """
    S = sample_num

    def kernel(nh_ref, sess_ref, nw_ref, g_ref, item_ref, *rest):
        w_refs = rest[:3 * hop]
        wgate_ref = rest[3 * hop]
        out_ref = rest[3 * hop + 1]

        nh_all = nh_ref[...].astype(jnp.float32)        # (R0, D)
        sess_all = sess_ref[...].astype(jnp.float32)    # (R0, D)
        nw_all = nw_ref[...].astype(jnp.float32)        # (R0, 1)
        g_all = g_ref[...]                              # (G0, R0) 0/1 f32
        item = item_ref[...].astype(jnp.float32)        # (n0, D)

        cur = nh_all                                    # neighbors for stage k
        for k in range(hop):
            R = rows_per_stage[k]                       # neighbor rows this stage
            ng = groups_per_stage[k]                    # parent nodes this stage
            w1a = w_refs[3 * k][...]                    # (D, D)
            w1b = w_refs[3 * k + 1][...]                # (1, D)
            w2r = w_refs[3 * k + 2][...]                # (1, D)

            # Stage k>=1 consumes the previous stage's output minus its first
            # (h=0) block, which is exactly the flattened neighbor layout.
            nh = cur if k == 0 else cur[n0:, :]         # (R, D), groups of S rows
            sess = sess_all[:R, :]                      # (R, D)
            nwc = nw_all[:R, :]                         # (R, 1)

            # alpha = leaky_relu(cat([sess*nh, w], -1) @ w_1)  (exact split)
            x = sess * nh                                               # VPU, dense 2-D
            a = jnp.dot(x, w1a, preferred_element_type=jnp.float32)     # MXU, M = R
            a = a + nwc * w1b
            a = jnp.where(a >= 0.0, a, 0.2 * a)                         # leaky_relu(0.2)

            # score = alpha @ w_2, softmax over each group of S rows.
            score = jnp.sum(a * w2r, axis=-1, keepdims=True)            # (R, 1)
            score = score.reshape(ng, S, 1)                             # tiny, lane dim kept
            score = score - jnp.max(score, axis=1, keepdims=True)
            e = jnp.exp(score)
            p = e / jnp.sum(e, axis=1, keepdims=True)                   # (ng, S, 1)

            # agg = sum_s p * nh   via grouping matmul (no relayout of nh).
            weighted = p.reshape(R, 1) * nh                             # (R, D)
            cur = jnp.dot(g_all[:ng, :R], weighted,
                          preferred_element_type=jnp.float32)           # (ng, D)

        agg = cur                                                       # (n0, D)
        # gate: sigmoid([item | agg] @ [w_1; w_2]) ; out = (1-g)*item + g*agg
        xa = jnp.concatenate([item, agg], axis=-1)                      # (n0, 2D)
        z = jnp.dot(xa, wgate_ref[...], preferred_element_type=jnp.float32)
        gate = 1.0 / (1.0 + jnp.exp(-z))
        out_ref[...] = ((1.0 - gate) * item + gate * agg).astype(out_ref.dtype)

    return kernel


# --------------------------------------------------------------------------
# Wrapper: flatten / repeat / concat inputs (plain XLA ops) and issue ONE
# grid-less pallas_call that runs the full forward in VMEM.
# --------------------------------------------------------------------------
def global_context_extractor(params, neighbor_hiddens, neighbor_weights,
                             item_hidden, sess_hiddens, *, dim, hop, sample_num):
    B, seq, _ = item_hidden.shape
    S = sample_num
    n_list = [B * seq * S ** h for h in range(hop)]          # parent nodes per h-iter
    rows_per_stage = [sum(n_list[h] * S for h in range(hop - k)) for k in range(hop)]
    groups_per_stage = [r // S for r in rows_per_stage]
    n0 = n_list[0]
    R0, G0 = rows_per_stage[0], groups_per_stage[0]

    # ---- wrapper-side prep (free-ish XLA reshapes / repeats / concats) ----
    nh_cat = jnp.concatenate(
        [neighbor_hiddens[h + 1].reshape(-1, dim) for h in range(hop)], axis=0)
    sess_cat = jnp.concatenate(
        [jnp.repeat(sess_hiddens[h].reshape(-1, dim), S, axis=0) for h in range(hop)],
        axis=0)
    nw_cat = jnp.concatenate(
        [neighbor_weights[h].reshape(-1, 1) for h in range(hop)], axis=0)
    item_flat = item_hidden.reshape(-1, dim)
    # 0/1 grouping matrix: row i selects the S consecutive neighbor rows of node i.
    g_mat = (jnp.arange(R0)[None, :] // S
             == jnp.arange(G0)[:, None]).astype(jnp.float32)            # (G0, R0)

    assert nh_cat.shape == (R0, dim) and sess_cat.shape == (R0, dim)
    assert nw_cat.shape == (R0, 1) and item_flat.shape == (n0, dim)

    w_args = []
    for k in range(hop):
        w1_k, w2_k = params["agg"][k]
        w_args += [w1_k[:dim, :], w1_k[dim:, :].reshape(1, dim), w2_k.reshape(1, dim)]
    wgate = jnp.concatenate([params["w_1"], params["w_2"]], axis=0)      # (2D, D)

    kernel = _make_fused_kernel(hop, S, rows_per_stage, groups_per_stage, n0)
    vmem = pl.BlockSpec(memory_space=pltpu.MemorySpace.VMEM)             # whole array in VMEM
    out = pl.pallas_call(
        kernel,
        out_shape=jax.ShapeDtypeStruct((n0, dim), item_hidden.dtype),
        in_specs=[vmem] * (5 + 3 * hop + 1),
        out_specs=vmem,
    )(nh_cat, sess_cat, nw_cat, g_mat, item_flat, *w_args, wgate)
    return out.reshape(B, seq, dim)


# --------------------------------------------------------------------------
# Pure-JAX reference mirroring the PyTorch forward exactly (verification).
# --------------------------------------------------------------------------
def _ref_forward(params, neighbor_hiddens, neighbor_weights, item_hidden,
                 sess_hiddens, *, dim, hop, sample_num):
    def agg(nh, nw, sess, w1, w2):
        x = jnp.concatenate([sess[:, :, None, :] * nh, nw[..., None]], axis=-1)
        a = jnp.matmul(x, w1)
        a = jnp.where(a >= 0, a, 0.2 * a)
        a = jnp.matmul(a, w2)[..., 0]
        a = jax.nn.softmax(a, axis=-1)[..., None]
        return jnp.sum(a * nh, axis=-2)

    neighbor_hiddens = list(neighbor_hiddens)
    for n_hop in range(hop):
        w1a, w2a = params["agg"][n_hop]
        nxt = []
        for h in range(hop - n_hop):
            nh = neighbor_hiddens[h + 1]
            B = nh.shape[0]
            nh = nh.reshape(B, -1, sample_num, dim)
            nw = neighbor_weights[h].reshape(B, -1, sample_num)
            nxt.append(agg(nh, nw, sess_hiddens[h], w1a, w2a))
        neighbor_hiddens = nxt
    agg_hidden = neighbor_hiddens[0].reshape(neighbor_hiddens[0].shape[0], -1, dim)
    g = jax.nn.sigmoid(item_hidden @ params["w_1"] + agg_hidden @ params["w_2"])
    return (1.0 - g) * item_hidden + g * agg_hidden


def init_params(key, dim, hop):
    keys = jax.random.split(key, 2 * hop + 2)
    bound = 1.0 / float(jnp.sqrt(dim))
    agg = []
    for i in range(hop):
        w1 = jax.random.uniform(keys[2 * i], (dim + 1, dim), jnp.float32, -bound, bound)
        w2 = jax.random.uniform(keys[2 * i + 1], (dim, 1), jnp.float32, -bound, bound)
        agg.append((w1, w2))
    w_1 = jax.random.uniform(keys[-2], (dim, dim), jnp.float32, -bound, bound)
    w_2 = jax.random.uniform(keys[-1], (dim, dim), jnp.float32, -bound, bound)
    return {"agg": agg, "w_1": w_1, "w_2": w_2}


if __name__ == "__main__":
    key = jax.random.PRNGKey(0)
    ks = jax.random.split(key, 10)

    # neighbor_hiddens[k]: (B, SEQ * S^k, D)  for k = 0..HOP  (index 0 unused)
    neighbor_hiddens = [
        jax.random.normal(ks[i], (BATCH, SEQ * SAMPLE_NUM ** i, DIM), jnp.float32)
        for i in range(HOP + 1)
    ]
    # neighbor_weights[k]: (B, SEQ * S^k, S)  for k = 0..HOP-1
    neighbor_weights = [
        jax.random.normal(ks[3 + i], (BATCH, SEQ * SAMPLE_NUM ** i, SAMPLE_NUM),
                          jnp.float32)
        for i in range(HOP)
    ]
    # sess_hiddens[k]: (B, SEQ * S^k, D)  for k = 0..HOP-1
    sess_hiddens = [
        jax.random.normal(ks[5 + i], (BATCH, SEQ * SAMPLE_NUM ** i, DIM), jnp.float32)
        for i in range(HOP)
    ]
    item_hidden = jax.random.normal(ks[8], (BATCH, SEQ, DIM), jnp.float32)
    params = init_params(ks[9], DIM, HOP)

    fwd = jax.jit(functools.partial(
        global_context_extractor, dim=DIM, hop=HOP, sample_num=SAMPLE_NUM))
    out = fwd(params, neighbor_hiddens, neighbor_weights, item_hidden, sess_hiddens)
    out = jax.block_until_ready(out)

    ref = _ref_forward(params, neighbor_hiddens, neighbor_weights, item_hidden,
                       sess_hiddens, dim=DIM, hop=HOP, sample_num=SAMPLE_NUM)
    ref = jax.block_until_ready(ref)

    assert out.shape == (BATCH, SEQ, DIM)
    assert jnp.allclose(out, ref, atol=1e-4, rtol=1e-4), "mismatch vs reference"
    print("KERNEL_OK")
</pallas_src>

<mosaic_0001>
module attributes {stable_mosaic.version = 11 : i64} {
  func.func @kernel(%arg0: memref<320x32xf32, #tpu.memory_space<vmem>>, %arg1: memref<320x32xf32, #tpu.memory_space<vmem>>, %arg2: memref<320x1xf32, #tpu.memory_space<vmem>>, %arg3: memref<80x320xf32, #tpu.memory_space<vmem>>, %arg4: memref<16x32xf32, #tpu.memory_space<vmem>>, %arg5: memref<32x32xf32, #tpu.memory_space<vmem>>, %arg6: memref<1x32xf32, #tpu.memory_space<vmem>>, %arg7: memref<1x32xf32, #tpu.memory_space<vmem>>, %arg8: memref<32x32xf32, #tpu.memory_space<vmem>>, %arg9: memref<1x32xf32, #tpu.memory_space<vmem>>, %arg10: memref<1x32xf32, #tpu.memory_space<vmem>>, %arg11: memref<64x32xf32, #tpu.memory_space<vmem>>, %arg12: memref<16x32xf32, #tpu.memory_space<vmem>>) attributes {dimension_semantics = [], scalar_prefetch = 0 : i64, scratch_operands = 0 : i64, tpu.core_type = #tpu.core_type<tc>} {
    %c0 = arith.constant 0 : index
    %c0_0 = arith.constant 0 : index
    %0 = vector.load %arg0[%c0, %c0_0] : memref<320x32xf32, #tpu.memory_space<vmem>>, vector<320x32xf32>
    %c0_1 = arith.constant 0 : index
    %c0_2 = arith.constant 0 : index
    %1 = vector.load %arg1[%c0_1, %c0_2] : memref<320x32xf32, #tpu.memory_space<vmem>>, vector<320x32xf32>
    %c0_3 = arith.constant 0 : index
    %c0_4 = arith.constant 0 : index
    %2 = vector.load %arg2[%c0_3, %c0_4] : memref<320x1xf32, #tpu.memory_space<vmem>>, vector<320x1xf32>
    %c0_5 = arith.constant 0 : index
    %c0_6 = arith.constant 0 : index
    %3 = vector.load %arg3[%c0_5, %c0_6] : memref<80x320xf32, #tpu.memory_space<vmem>>, vector<80x320xf32>
    %c0_7 = arith.constant 0 : index
    %c0_8 = arith.constant 0 : index
    %4 = vector.load %arg4[%c0_7, %c0_8] : memref<16x32xf32, #tpu.memory_space<vmem>>, vector<16x32xf32>
    %c0_9 = arith.constant 0 : index
    %c0_10 = arith.constant 0 : index
    %5 = vector.load %arg5[%c0_9, %c0_10] : memref<32x32xf32, #tpu.memory_space<vmem>>, vector<32x32xf32>
    %c0_11 = arith.constant 0 : index
    %c0_12 = arith.constant 0 : index
    %6 = vector.load %arg6[%c0_11, %c0_12] : memref<1x32xf32, #tpu.memory_space<vmem>>, vector<1x32xf32>
    %c0_13 = arith.constant 0 : index
    %c0_14 = arith.constant 0 : index
    %7 = vector.load %arg7[%c0_13, %c0_14] : memref<1x32xf32, #tpu.memory_space<vmem>>, vector<1x32xf32>
    %8 = arith.mulf %1, %0 : vector<320x32xf32>
    %cst = arith.constant dense<0.000000e+00> : vector<320x32xf32>
    %9 = tpu.matmul %8, %5, %cst {dimension_numbers = #tpu.dot_dimension_numbers<[1], [0], [0], [1], [0, 0, 1, 1], [], []>} : vector<320x32xf32>, vector<32x32xf32>, vector<320x32xf32> -> vector<320x32xf32>
    %10 = vector.broadcast %2 : vector<320x1xf32> to vector<320x32xf32>
    %11 = vector.broadcast %6 : vector<1x32xf32> to vector<320x32xf32>
    %12 = arith.mulf %10, %11 : vector<320x32xf32>
    %13 = arith.addf %9, %12 : vector<320x32xf32>
    %cst_15 = arith.constant 0.000000e+00 : f32
    %14 = vector.broadcast %cst_15 : f32 to vector<320x32xf32>
    %15 = arith.cmpf oge, %13, %14 : vector<320x32xf32>
    %cst_16 = arith.constant 2.000000e-01 : f32
    %16 = vector.broadcast %cst_16 : f32 to vector<320x32xf32>
    %17 = arith.mulf %16, %13 : vector<320x32xf32>
    %18 = arith.select %15, %13, %17 : vector<320x32xi1>, vector<320x32xf32>
    %19 = vector.broadcast %7 : vector<1x32xf32> to vector<320x32xf32>
    %20 = arith.mulf %18, %19 : vector<320x32xf32>
    %cst_17 = arith.constant dense<0.000000e+00> : vector<320xf32>
    %21 = vector.multi_reduction <add>, %20, %cst_17 [1] : vector<320x32xf32> to vector<320xf32>
    %22 = vector.shape_cast %21 : vector<320xf32> to vector<320x1xf32>
    %23 = vector.shape_cast %22 : vector<320x1xf32> to vector<80x4x1xf32>
    %cst_18 = arith.constant dense<0xFF800000> : vector<80x1xf32>
    %24 = vector.multi_reduction <maximumf>, %23, %cst_18 [1] : vector<80x4x1xf32> to vector<80x1xf32>
    %25 = vector.shape_cast %24 : vector<80x1xf32> to vector<80x1x1xf32>
    %26 = vector.broadcast %25 : vector<80x1x1xf32> to vector<80x4x1xf32>
    %27 = arith.subf %23, %26 : vector<80x4x1xf32>
    %28 = math.exp %27 : vector<80x4x1xf32>
    %cst_19 = arith.constant dense<0.000000e+00> : vector<80x1xf32>
    %29 = vector.multi_reduction <add>, %28, %cst_19 [1] : vector<80x4x1xf32> to vector<80x1xf32>
    %30 = vector.shape_cast %29 : vector<80x1xf32> to vector<80x1x1xf32>
    %31 = vector.broadcast %30 : vector<80x1x1xf32> to vector<80x4x1xf32>
    %32 = arith.divf %28, %31 : vector<80x4x1xf32>
    %33 = vector.shape_cast %32 : vector<80x4x1xf32> to vector<320x1xf32>
    %34 = vector.broadcast %33 : vector<320x1xf32> to vector<320x32xf32>
    %35 = arith.mulf %34, %0 : vector<320x32xf32>
    %cst_20 = arith.constant dense<0.000000e+00> : vector<80x32xf32>
    %36 = tpu.matmul %3, %35, %cst_20 {dimension_numbers = #tpu.dot_dimension_numbers<[1], [0], [0], [1], [0, 0, 1, 1], [], []>} : vector<80x320xf32>, vector<320x32xf32>, vector<80x32xf32> -> vector<80x32xf32>
    %c0_21 = arith.constant 0 : index
    %c0_22 = arith.constant 0 : index
    %37 = vector.load %arg8[%c0_21, %c0_22] : memref<32x32xf32, #tpu.memory_space<vmem>>, vector<32x32xf32>
    %c0_23 = arith.constant 0 : index
    %c0_24 = arith.constant 0 : index
    %38 = vector.load %arg9[%c0_23, %c0_24] : memref<1x32xf32, #tpu.memory_space<vmem>>, vector<1x32xf32>
    %c0_25 = arith.constant 0 : index
    %c0_26 = arith.constant 0 : index
    %39 = vector.load %arg10[%c0_25, %c0_26] : memref<1x32xf32, #tpu.memory_space<vmem>>, vector<1x32xf32>
    %40 = vector.extract_strided_slice %36 {offsets = [16, 0], sizes = [64, 32], strides = [1, 1]} : vector<80x32xf32> to vector<64x32xf32>
    %41 = vector.extract_strided_slice %1 {offsets = [0, 0], sizes = [64, 32], strides = [1, 1]} : vector<320x32xf32> to vector<64x32xf32>
    %42 = vector.extract_strided_slice %2 {offsets = [0, 0], sizes = [64, 1], strides = [1, 1]} : vector<320x1xf32> to vector<64x1xf32>
    %43 = arith.mulf %41, %40 : vector<64x32xf32>
    %cst_27 = arith.constant dense<0.000000e+00> : vector<64x32xf32>
    %44 = tpu.matmul %43, %37, %cst_27 {dimension_numbers = #tpu.dot_dimension_numbers<[1], [0], [0], [1], [0, 0, 1, 1], [], []>} : vector<64x32xf32>, vector<32x32xf32>, vector<64x32xf32> -> vector<64x32xf32>
    %45 = vector.broadcast %42 : vector<64x1xf32> to vector<64x32xf32>
    %46 = vector.broadcast %38 : vector<1x32xf32> to vector<64x32xf32>
    %47 = arith.mulf %45, %46 : vector<64x32xf32>
    %48 = arith.addf %44, %47 : vector<64x32xf32>
    %cst_28 = arith.constant 0.000000e+00 : f32
    %49 = vector.broadcast %cst_28 : f32 to vector<64x32xf32>
    %50 = arith.cmpf oge, %48, %49 : vector<64x32xf32>
    %cst_29 = arith.constant 2.000000e-01 : f32
    %51 = vector.broadcast %cst_29 : f32 to vector<64x32xf32>
    %52 = arith.mulf %51, %48 : vector<64x32xf32>
    %53 = arith.select %50, %48, %52 : vector<64x32xi1>, vector<64x32xf32>
    %54 = vector.broadcast %39 : vector<1x32xf32> to vector<64x32xf32>
    %55 = arith.mulf %53, %54 : vector<64x32xf32>
    %cst_30 = arith.constant dense<0.000000e+00> : vector<64xf32>
    %56 = vector.multi_reduction <add>, %55, %cst_30 [1] : vector<64x32xf32> to vector<64xf32>
    %57 = vector.shape_cast %56 : vector<64xf32> to vector<64x1xf32>
    %58 = vector.shape_cast %57 : vector<64x1xf32> to vector<16x4x1xf32>
    %cst_31 = arith.constant dense<0xFF800000> : vector<16x1xf32>
    %59 = vector.multi_reduction <maximumf>, %58, %cst_31 [1] : vector<16x4x1xf32> to vector<16x1xf32>
    %60 = vector.shape_cast %59 : vector<16x1xf32> to vector<16x1x1xf32>
    %61 = vector.broadcast %60 : vector<16x1x1xf32> to vector<16x4x1xf32>
    %62 = arith.subf %58, %61 : vector<16x4x1xf32>
    %63 = math.exp %62 : vector<16x4x1xf32>
    %cst_32 = arith.constant dense<0.000000e+00> : vector<16x1xf32>
    %64 = vector.multi_reduction <add>, %63, %cst_32 [1] : vector<16x4x1xf32> to vector<16x1xf32>
    %65 = vector.shape_cast %64 : vector<16x1xf32> to vector<16x1x1xf32>
    %66 = vector.broadcast %65 : vector<16x1x1xf32> to vector<16x4x1xf32>
    %67 = arith.divf %63, %66 : vector<16x4x1xf32>
    %68 = vector.shape_cast %67 : vector<16x4x1xf32> to vector<64x1xf32>
    %69 = vector.broadcast %68 : vector<64x1xf32> to vector<64x32xf32>
    %70 = arith.mulf %69, %40 : vector<64x32xf32>
    %71 = vector.extract_strided_slice %3 {offsets = [0, 0], sizes = [16, 64], strides = [1, 1]} : vector<80x320xf32> to vector<16x64xf32>
    %cst_33 = arith.constant dense<0.000000e+00> : vector<16x32xf32>
    %72 = tpu.matmul %71, %70, %cst_33 {dimension_numbers = #tpu.dot_dimension_numbers<[1], [0], [0], [1], [0, 0, 1, 1], [], []>} : vector<16x64xf32>, vector<64x32xf32>, vector<16x32xf32> -> vector<16x32xf32>
    %73 = tpu.concatenate %4, %72 in 1 : vector<16x32xf32>, vector<16x32xf32> -> vector<16x64xf32>
    %c0_34 = arith.constant 0 : index
    %c0_35 = arith.constant 0 : index
    %74 = vector.load %arg11[%c0_34, %c0_35] : memref<64x32xf32, #tpu.memory_space<vmem>>, vector<64x32xf32>
    %cst_36 = arith.constant dense<0.000000e+00> : vector<16x32xf32>
    %75 = tpu.matmul %73, %74, %cst_36 {dimension_numbers = #tpu.dot_dimension_numbers<[1], [0], [0], [1], [0, 0, 1, 1], [], []>} : vector<16x64xf32>, vector<64x32xf32>, vector<16x32xf32> -> vector<16x32xf32>
    %cst_37 = arith.constant 0.000000e+00 : f32
    %76 = vector.broadcast %cst_37 : f32 to vector<16x32xf32>
    %77 = arith.subf %76, %75 : vector<16x32xf32>
    %78 = math.exp %77 : vector<16x32xf32>
    %cst_38 = arith.constant 1.000000e+00 : f32
    %79 = vector.broadcast %cst_38 : f32 to vector<16x32xf32>
    %80 = arith.addf %79, %78 : vector<16x32xf32>
    %cst_39 = arith.constant 1.000000e+00 : f32
    %81 = vector.broadcast %cst_39 : f32 to vector<16x32xf32>
    %82 = arith.divf %81, %80 : vector<16x32xf32>
    %cst_40 = arith.constant 1.000000e+00 : f32
    %83 = vector.broadcast %cst_40 : f32 to vector<16x32xf32>
    %84 = arith.subf %83, %82 : vector<16x32xf32>
    %85 = arith.mulf %84, %4 : vector<16x32xf32>
    %86 = arith.mulf %82, %72 : vector<16x32xf32>
    %87 = arith.addf %85, %86 : vector<16x32xf32>
    %c0_41 = arith.constant 0 : index
    %c0_42 = arith.constant 0 : index
    %88 = vector.load %arg12[%c0_41, %c0_42] : memref<16x32xf32, #tpu.memory_space<vmem>>, vector<16x32xf32>
    tpu.vector_store %arg12[%c0_41, %c0_42], %87 {strides = array<i32>} : memref<16x32xf32, #tpu.memory_space<vmem>>, vector<16x32xf32>,
    return
  }
}

</mosaic_0001>

<llo_original>
// kernel: global_context_extractor.1
$region0: #{global_context_extractor.1}
  #allocation0 [shape = 'u32[]', space=smem, size = 0x4, offset = 0x4, fixed_abs, tag = 'smem constant byte address 0x4 - core index']
  #allocation1 [shape = 'u32[144,128]{1,0:T(1,128)}', space=vmem, size = 0x12000, scoped, tag = 'internal scratch']
  %s0 = inlined_call_operand.vmem [shape: f32[320,32], index: 0, kind: input, shape index: {}]
  %s1 = inlined_call_operand.vmem [shape: f32[320,32], index: 1, kind: input, shape index: {}]
  %s2 = inlined_call_operand.vmem [shape: f32[320,1], index: 2, kind: input, shape index: {}]
  %s3 = inlined_call_operand.vmem [shape: f32[80,320], index: 3, kind: input, shape index: {}]
  %s4 = inlined_call_operand.vmem [shape: f32[16,32], index: 4, kind: input, shape index: {}]
  %s5 = inlined_call_operand.vmem [shape: f32[32,32], index: 5, kind: input, shape index: {}]
  %s6 = inlined_call_operand.vmem [shape: f32[1,32], index: 6, kind: input, shape index: {}]
  %s7 = inlined_call_operand.vmem [shape: f32[1,32], index: 7, kind: input, shape index: {}]
  %s8 = inlined_call_operand.vmem [shape: f32[32,32], index: 8, kind: input, shape index: {}]
  %s9 = inlined_call_operand.vmem [shape: f32[1,32], index: 9, kind: input, shape index: {}]
  %s10 = inlined_call_operand.vmem [shape: f32[1,32], index: 10, kind: input, shape index: {}]
  %s11 = inlined_call_operand.vmem [shape: f32[64,32], index: 11, kind: input, shape index: {}]
  %s12 = inlined_call_operand.hbm [shape: f32[16,32], index: 12, kind: output, shape index: {}]
  %s13 = sld [smem:[#allocation0]]
  $region58: #{global_context_extractor.1} parent=0
    _
  %s15 = ssub.s32 1, %s13
  %s16 = scalar_select 0, %s15, %s13
  $region1: #{global_context_extractor.1} parent=0
    #allocation2 [shape = 'u8[8192]{0}', space=vmem, size = 0x2000, scoped, tag = 'output window, operand 0, single buffered']
    #allocation3 [shape = 's32[1]{0}', space=sflag, size = 0x4, scoped, tag = 'scoped memory for global_context_extractor.1']
    %17 = vsyncpa [#allocation3], 0
    // Predicated region
    $region2: #{global_context_extractor.1} parent=1 // pred_check
      _
    $region3: #{global_context_extractor.1} parent=1 // pred_check_branch
      %19 = sbr.rel (0) target = $region5
    $region4: #{global_context_extractor.1} parent=1 // pred_region
      _
    $region5: #{global_context_extractor.1} parent=1 // pred_fallthru
      _
    // Predicated region
    $region6: #{global_context_extractor.1} parent=1 // pred_check
      _
    $region7: #{global_context_extractor.1} parent=1 // pred_check_branch
      %21 = sbr.rel (0) target = $region9
    $region8: #{global_context_extractor.1} parent=1 // pred_region
      _
    $region9: #{global_context_extractor.1} parent=1 // pred_fallthru
      _
    // Predicated region
    $region10: #{global_context_extractor.1} parent=1 // pred_check
      _
    $region11: #{global_context_extractor.1} parent=1 // pred_check_branch
      %23 = sbr.rel (0) target = $region13
    $region12: #{global_context_extractor.1} parent=1 // pred_region
      _
    $region13: #{global_context_extractor.1} parent=1 // pred_fallthru
      _
    // Predicated region
    $region14: #{global_context_extractor.1} parent=1 // pred_check
      _
    $region15: #{global_context_extractor.1} parent=1 // pred_check_branch
      %25 = sbr.rel (0) target = $region17
    $region16: #{global_context_extractor.1} parent=1 // pred_region
      _
    $region17: #{global_context_extractor.1} parent=1 // pred_fallthru
      _
    // Predicated region
    $region18: #{global_context_extractor.1} parent=1 // pred_check
      _
    $region19: #{global_context_extractor.1} parent=1 // pred_check_branch
      %27 = sbr.rel (0) target = $region21
    $region20: #{global_context_extractor.1} parent=1 // pred_region
      _
    $region21: #{global_context_extractor.1} parent=1 // pred_fallthru
      _
    // Predicated region
    $region22: #{global_context_extractor.1} parent=1 // pred_check
      _
    $region23: #{global_context_extractor.1} parent=1 // pred_check_branch
      %29 = sbr.rel (0) target = $region25
    $region24: #{global_context_extractor.1} parent=1 // pred_region
      _
    $region25: #{global_context_extractor.1} parent=1 // pred_fallthru
      _
    // Predicated region
    $region26: #{global_context_extractor.1} parent=1 // pred_check
      _
    $region27: #{global_context_extractor.1} parent=1 // pred_check_branch
      %31 = sbr.rel (0) target = $region29
    $region28: #{global_context_extractor.1} parent=1 // pred_region
      _
    $region29: #{global_context_extractor.1} parent=1 // pred_fallthru
      _
    // Predicated region
    $region30: #{global_context_extractor.1} parent=1 // pred_check
      _
    $region31: #{global_context_extractor.1} parent=1 // pred_check_branch
      %33 = sbr.rel (0) target = $region33
    $region32: #{global_context_extractor.1} parent=1 // pred_region
      _
    $region33: #{global_context_extractor.1} parent=1 // pred_fallthru
      _
    // Predicated region
    $region34: #{global_context_extractor.1} parent=1 // pred_check
      _
    $region35: #{global_context_extractor.1} parent=1 // pred_check_branch
      %35 = sbr.rel (0) target = $region37
    $region36: #{global_context_extractor.1} parent=1 // pred_region
      _
    $region37: #{global_context_extractor.1} parent=1 // pred_fallthru
      _
    // Predicated region
    $region38: #{global_context_extractor.1} parent=1 // pred_check
      _
    $region39: #{global_context_extractor.1} parent=1 // pred_check_branch
      %37 = sbr.rel (0) target = $region41
    $region40: #{global_context_extractor.1} parent=1 // pred_region
      _
    $region41: #{global_context_extractor.1} parent=1 // pred_fallthru
      _
    // Predicated region
    $region42: #{global_context_extractor.1} parent=1 // pred_check
      _
    $region43: #{global_context_extractor.1} parent=1 // pred_check_branch
      %39 = sbr.rel (0) target = $region45
    $region44: #{global_context_extractor.1} parent=1 // pred_region
      _
    $region45: #{global_context_extractor.1} parent=1 // pred_fallthru
      _
    // Predicated region
    $region46: #{global_context_extractor.1} parent=1 // pred_check
      _
    $region47: #{global_context_extractor.1} parent=1 // pred_check_branch
      %41 = sbr.rel (0) target = $region49
    $region48: #{global_context_extractor.1} parent=1 // pred_region
      _
    $region49: #{global_context_extractor.1} parent=1 // pred_fallthru
      _
    %v42 = vld [vmem:[%s0] sm:$0xff]
    %v43 = vld [vmem:[%s0 + $0x8] sm:$0xff]
    %v44 = vld [vmem:[%s0 + $0x10] sm:$0xff]
    %v45 = vld [vmem:[%s0 + $0x18] sm:$0xff]
    %v46 = vld [vmem:[%s0 + $0x20] sm:$0xff]
    %v47 = vld [vmem:[%s0 + $0x28] sm:$0xff]
    %v48 = vld [vmem:[%s0 + $0x30] sm:$0xff]
    %v49 = vld [vmem:[%s0 + $0x38] sm:$0xff]
    %v50 = vld [vmem:[%s0 + $0x40] sm:$0xff]
    %v51 = vld [vmem:[%s0 + $0x48] sm:$0xff]
    %v52 = vld [vmem:[%s0 + $0x50] sm:$0xff]
    %v53 = vld [vmem:[%s0 + $0x58] sm:$0xff]
    %v54 = vld [vmem:[%s0 + $0x60] sm:$0xff]
    %v55 = vld [vmem:[%s0 + $0x68] sm:$0xff]
    %v56 = vld [vmem:[%s0 + $0x70] sm:$0xff]
    %v57 = vld [vmem:[%s0 + $0x78] sm:$0xff]
    %v58 = vld [vmem:[%s0 + $0x80] sm:$0xff]
    %v59 = vld [vmem:[%s0 + $0x88] sm:$0xff]
    %v60 = vld [vmem:[%s0 + $0x90] sm:$0xff]
    %v61 = vld [vmem:[%s0 + $0x98] sm:$0xff]
    %v62 = vld [vmem:[%s0 + $0xa0] sm:$0xff]
    %v63 = vld [vmem:[%s0 + $0xa8] sm:$0xff]
    %v64 = vld [vmem:[%s0 + $0xb0] sm:$0xff]
    %v65 = vld [vmem:[%s0 + $0xb8] sm:$0xff]
    %v66 = vld [vmem:[%s0 + $0xc0] sm:$0xff]
    %v67 = vld [vmem:[%s0 + $0xc8] sm:$0xff]
    %v68 = vld [vmem:[%s0 + $0xd0] sm:$0xff]
    %v69 = vld [vmem:[%s0 + $0xd8] sm:$0xff]
    %v70 = vld [vmem:[%s0 + $0xe0] sm:$0xff]
    %v71 = vld [vmem:[%s0 + $0xe8] sm:$0xff]
    %v72 = vld [vmem:[%s0 + $0xf0] sm:$0xff]
    %v73 = vld [vmem:[%s0 + $0xf8] sm:$0xff]
    %v74 = vld [vmem:[%s0 + $0x100] sm:$0xff]
    %v75 = vld [vmem:[%s0 + $0x108] sm:$0xff]
    %v76 = vld [vmem:[%s0 + $0x110] sm:$0xff]
    %v77 = vld [vmem:[%s0 + $0x118] sm:$0xff]
    %v78 = vld [vmem:[%s0 + $0x120] sm:$0xff]
    %v79 = vld [vmem:[%s0 + $0x128] sm:$0xff]
    %v80 = vld [vmem:[%s0 + $0x130] sm:$0xff]
    %v81 = vld [vmem:[%s0 + $0x138] sm:$0xff]
    %v82 = vld [vmem:[%s1] sm:$0xff]
    %v83 = vld [vmem:[%s1 + $0x8] sm:$0xff]
    %v84 = vld [vmem:[%s1 + $0x10] sm:$0xff]
    %v85 = vld [vmem:[%s1 + $0x18] sm:$0xff]
    %v86 = vld [vmem:[%s1 + $0x20] sm:$0xff]
    %v87 = vld [vmem:[%s1 + $0x28] sm:$0xff]
    %v88 = vld [vmem:[%s1 + $0x30] sm:$0xff]
    %v89 = vld [vmem:[%s1 + $0x38] sm:$0xff]
    %v90 = vld [vmem:[%s1 + $0x40] sm:$0xff]
    %v91 = vld [vmem:[%s1 + $0x48] sm:$0xff]
    %v92 = vld [vmem:[%s1 + $0x50] sm:$0xff]
    %v93 = vld [vmem:[%s1 + $0x58] sm:$0xff]
    %v94 = vld [vmem:[%s1 + $0x60] sm:$0xff]
    %v95 = vld [vmem:[%s1 + $0x68] sm:$0xff]
    %v96 = vld [vmem:[%s1 + $0x70] sm:$0xff]
    %v97 = vld [vmem:[%s1 + $0x78] sm:$0xff]
    %v98 = vld [vmem:[%s1 + $0x80] sm:$0xff]
    %v99 = vld [vmem:[%s1 + $0x88] sm:$0xff]
    %v100 = vld [vmem:[%s1 + $0x90] sm:$0xff]
    %v101 = vld [vmem:[%s1 + $0x98] sm:$0xff]
    %v102 = vld [vmem:[%s1 + $0xa0] sm:$0xff]
    %v103 = vld [vmem:[%s1 + $0xa8] sm:$0xff]
    %v104 = vld [vmem:[%s1 + $0xb0] sm:$0xff]
    %v105 = vld [vmem:[%s1 + $0xb8] sm:$0xff]
    %v106 = vld [vmem:[%s1 + $0xc0] sm:$0xff]
    %v107 = vld [vmem:[%s1 + $0xc8] sm:$0xff]
    %v108 = vld [vmem:[%s1 + $0xd0] sm:$0xff]
    %v109 = vld [vmem:[%s1 + $0xd8] sm:$0xff]
    %v110 = vld [vmem:[%s1 + $0xe0] sm:$0xff]
    %v111 = vld [vmem:[%s1 + $0xe8] sm:$0xff]
    %v112 = vld [vmem:[%s1 + $0xf0] sm:$0xff]
    %v113 = vld [vmem:[%s1 + $0xf8] sm:$0xff]
    %v114 = vld [vmem:[%s1 + $0x100] sm:$0xff]
    %v115 = vld [vmem:[%s1 + $0x108] sm:$0xff]
    %v116 = vld [vmem:[%s1 + $0x110] sm:$0xff]
    %v117 = vld [vmem:[%s1 + $0x118] sm:$0xff]
    %v118 = vld [vmem:[%s1 + $0x120] sm:$0xff]
    %v119 = vld [vmem:[%s1 + $0x128] sm:$0xff]
    %v120 = vld [vmem:[%s1 + $0x130] sm:$0xff]
    %v121 = vld [vmem:[%s1 + $0x138] sm:$0xff]
    %v122 = vld [vmem:[%s2] sm:$0xff]
    %v123 = vld [vmem:[%s2 + $0x8] sm:$0xff]
    %v124 = vld [vmem:[%s2 + $0x10] sm:$0xff]
    %v125 = vld [vmem:[%s2 + $0x18] sm:$0xff]
    %v126 = vld [vmem:[%s2 + $0x20] sm:$0xff]
    %v127 = vld [vmem:[%s2 + $0x28] sm:$0xff]
    %v128 = vld [vmem:[%s2 + $0x30] sm:$0xff]
    %v129 = vld [vmem:[%s2 + $0x38] sm:$0xff]
    %v130 = vld [vmem:[%s2 + $0x40] sm:$0xff]
    %v131 = vld [vmem:[%s2 + $0x48] sm:$0xff]
    %v132 = vld [vmem:[%s2 + $0x50] sm:$0xff]
    %v133 = vld [vmem:[%s2 + $0x58] sm:$0xff]
    %v134 = vld [vmem:[%s2 + $0x60] sm:$0xff]
    %v135 = vld [vmem:[%s2 + $0x68] sm:$0xff]
    %v136 = vld [vmem:[%s2 + $0x70] sm:$0xff]
    %v137 = vld [vmem:[%s2 + $0x78] sm:$0xff]
    %v138 = vld [vmem:[%s2 + $0x80] sm:$0xff]
    %v139 = vld [vmem:[%s2 + $0x88] sm:$0xff]
    %v140 = vld [vmem:[%s2 + $0x90] sm:$0xff]
    %v141 = vld [vmem:[%s2 + $0x98] sm:$0xff]
    %v142 = vld [vmem:[%s2 + $0xa0] sm:$0xff]
    %v143 = vld [vmem:[%s2 + $0xa8] sm:$0xff]
    %v144 = vld [vmem:[%s2 + $0xb0] sm:$0xff]
    %v145 = vld [vmem:[%s2 + $0xb8] sm:$0xff]
    %v146 = vld [vmem:[%s2 + $0xc0] sm:$0xff]
    %v147 = vld [vmem:[%s2 + $0xc8] sm:$0xff]
    %v148 = vld [vmem:[%s2 + $0xd0] sm:$0xff]
    %v149 = vld [vmem:[%s2 + $0xd8] sm:$0xff]
    %v150 = vld [vmem:[%s2 + $0xe0] sm:$0xff]
    %v151 = vld [vmem:[%s2 + $0xe8] sm:$0xff]
    %v152 = vld [vmem:[%s2 + $0xf0] sm:$0xff]
    %v153 = vld [vmem:[%s2 + $0xf8] sm:$0xff]
    %v154 = vld [vmem:[%s2 + $0x100] sm:$0xff]
    %v155 = vld [vmem:[%s2 + $0x108] sm:$0xff]
    %v156 = vld [vmem:[%s2 + $0x110] sm:$0xff]
    %v157 = vld [vmem:[%s2 + $0x118] sm:$0xff]
    %v158 = vld [vmem:[%s2 + $0x120] sm:$0xff]
    %v159 = vld [vmem:[%s2 + $0x128] sm:$0xff]
    %v160 = vld [vmem:[%s2 + $0x130] sm:$0xff]
    %v161 = vld [vmem:[%s2 + $0x138] sm:$0xff]
    %v162 = vld [vmem:[%s3] sm:$0xff]
    %v163 = vld [vmem:[%s3 + $0x8] sm:$0xff]
    %v164 = vld [vmem:[%s3 + $0x10] sm:$0xff]
    %v165 = vld [vmem:[%s3 + $0x18] sm:$0xff]
    %v166 = vld [vmem:[%s3 + $0x20] sm:$0xff]
    %v167 = vld [vmem:[%s3 + $0x28] sm:$0xff]
    %v168 = vld [vmem:[%s3 + $0x30] sm:$0xff]
    %v169 = vld [vmem:[%s3 + $0x38] sm:$0xff]
    %v170 = vld [vmem:[%s3 + $0x40] sm:$0xff]
    %v171 = vld [vmem:[%s3 + $0x48] sm:$0xff]
    %v172 = vld [vmem:[%s3 + $0x50] sm:$0xff]
    %v173 = vld [vmem:[%s3 + $0x58] sm:$0xff]
    %v174 = vld [vmem:[%s3 + $0x60] sm:$0xff]
    %v175 = vld [vmem:[%s3 + $0x68] sm:$0xff]
    %v176 = vld [vmem:[%s3 + $0x70] sm:$0xff]
    %v177 = vld [vmem:[%s3 + $0x78] sm:$0xff]
    %v178 = vld [vmem:[%s3 + $0x80] sm:$0xff]
    %v179 = vld [vmem:[%s3 + $0x88] sm:$0xff]
    %v180 = vld [vmem:[%s3 + $0x90] sm:$0xff]
    %v181 = vld [vmem:[%s3 + $0x98] sm:$0xff]
    %v182 = vld [vmem:[%s3 + $0xa0] sm:$0xff]
    %v183 = vld [vmem:[%s3 + $0xa8] sm:$0xff]
    %v184 = vld [vmem:[%s3 + $0xb0] sm:$0xff]
    %v185 = vld [vmem:[%s3 + $0xb8] sm:$0xff]
    %v186 = vld [vmem:[%s3 + $0xc0] sm:$0xff]
    %v187 = vld [vmem:[%s3 + $0xc8] sm:$0xff]
    %v188 = vld [vmem:[%s3 + $0xd0] sm:$0xff]
    %v189 = vld [vmem:[%s3 + $0xd8] sm:$0xff]
    %v190 = vld [vmem:[%s3 + $0xe0] sm:$0xff]
    %v191 = vld [vmem:[%s3 + $0xe8] sm:$0xff]
    %v192 = vld [vmem:[%s4] sm:$0xff]
    %v193 = vld [vmem:[%s4 + $0x8] sm:$0xff]
    %v194 = vld [vmem:[%s5] sm:$0xff]
    %v195 = vld [vmem:[%s5 + $0x8] sm:$0xff]
    %v196 = vld [vmem:[%s5 + $0x10] sm:$0xff]
    %v197 = vld [vmem:[%s5 + $0x18] sm:$0xff]
    %v198 = vld [vmem:[%s6] sm:$0x1]
    %v199 = vld [vmem:[%s7] sm:$0x1]
    %v200 = vmul.f32 %v82, %v42
    %v201 = vmul.f32 %v83, %v43
    %v202 = vmul.f32 %v84, %v44
    %v203 = vmul.f32 %v85, %v45
    %v204 = vmul.f32 %v86, %v46
    %v205 = vmul.f32 %v87, %v47
    %v206 = vmul.f32 %v88, %v48
    %v207 = vmul.f32 %v89, %v49
    %v208 = vmul.f32 %v90, %v50
    %v209 = vmul.f32 %v91, %v51
    %v210 = vmul.f32 %v92, %v52
    %v211 = vmul.f32 %v93, %v53
    %v212 = vmul.f32 %v94, %v54
    %v213 = vmul.f32 %v95, %v55
    %v214 = vmul.f32 %v96, %v56
    %v215 = vmul.f32 %v97, %v57
    %v216 = vmul.f32 %v98, %v58
    %v217 = vmul.f32 %v99, %v59
    %v218 = vmul.f32 %v100, %v60
    %v219 = vmul.f32 %v101, %v61
    %v220 = vmul.f32 %v102, %v62
    %v221 = vmul.f32 %v103, %v63
    %v222 = vmul.f32 %v104, %v64
    %v223 = vmul.f32 %v105, %v65
    %v224 = vmul.f32 %v106, %v66
    %v225 = vmul.f32 %v107, %v67
    %v226 = vmul.f32 %v108, %v68
    %v227 = vmul.f32 %v109, %v69
    %v228 = vmul.f32 %v110, %v70
    %v229 = vmul.f32 %v111, %v71
    %v230 = vmul.f32 %v112, %v72
    %v231 = vmul.f32 %v113, %v73
    %v232 = vmul.f32 %v114, %v74
    %v233 = vmul.f32 %v115, %v75
    %v234 = vmul.f32 %v116, %v76
    %v235 = vmul.f32 %v117, %v77
    %v236 = vmul.f32 %v118, %v78
    %v237 = vmul.f32 %v119, %v79
    %v238 = vmul.f32 %v120, %v80
    %v239 = vmul.f32 %v121, %v81
    %241 = vset.pattern.permute.xlu0 0
    %242 = vperm.xlu0 %241, %v122
    %v243 = vpop.permute.xlu0 %242
    %246 = vset.pattern.permute.xlu0 0
    %247 = vperm.xlu0 %246, %v123
    %v248 = vpop.permute.xlu0 %247
    %251 = vset.pattern.permute.xlu0 0
    %252 = vperm.xlu0 %251, %v124
    %v253 = vpop.permute.xlu0 %252
    %256 = vset.pattern.permute.xlu0 0
    %257 = vperm.xlu0 %256, %v125
    %v258 = vpop.permute.xlu0 %257
    %261 = vset.pattern.permute.xlu0 0
    %262 = vperm.xlu0 %261, %v126
    %v263 = vpop.permute.xlu0 %262
    %266 = vset.pattern.permute.xlu0 0
    %267 = vperm.xlu0 %266, %v127
    %v268 = vpop.permute.xlu0 %267
    %271 = vset.pattern.permute.xlu0 0
    %272 = vperm.xlu0 %271, %v128
    %v273 = vpop.permute.xlu0 %272
    %276 = vset.pattern.permute.xlu0 0
    %277 = vperm.xlu0 %276, %v129
    %v278 = vpop.permute.xlu0 %277
    %281 = vset.pattern.permute.xlu0 0
    %282 = vperm.xlu0 %281, %v130
    %v283 = vpop.permute.xlu0 %282
    %286 = vset.pattern.permute.xlu0 0
    %287 = vperm.xlu0 %286, %v131
    %v288 = vpop.permute.xlu0 %287
    %291 = vset.pattern.permute.xlu0 0
    %292 = vperm.xlu0 %291, %v132
    %v293 = vpop.permute.xlu0 %292
    %296 = vset.pattern.permute.xlu0 0
    %297 = vperm.xlu0 %296, %v133
    %v298 = vpop.permute.xlu0 %297
    %301 = vset.pattern.permute.xlu0 0
    %302 = vperm.xlu0 %301, %v134
    %v303 = vpop.permute.xlu0 %302
    %306 = vset.pattern.permute.xlu0 0
    %307 = vperm.xlu0 %306, %v135
    %v308 = vpop.permute.xlu0 %307
    %311 = vset.pattern.permute.xlu0 0
    %312 = vperm.xlu0 %311, %v136
    %v313 = vpop.permute.xlu0 %312
    %316 = vset.pattern.permute.xlu0 0
    %317 = vperm.xlu0 %316, %v137
    %v318 = vpop.permute.xlu0 %317
    %321 = vset.pattern.permute.xlu0 0
    %322 = vperm.xlu0 %321, %v138
    %v323 = vpop.permute.xlu0 %322
    %326 = vset.pattern.permute.xlu0 0
    %327 = vperm.xlu0 %326, %v139
    %v328 = vpop.permute.xlu0 %327
    %331 = vset.pattern.permute.xlu0 0
    %332 = vperm.xlu0 %331, %v140
    %v333 = vpop.permute.xlu0 %332
    %336 = vset.pattern.permute.xlu0 0
    %337 = vperm.xlu0 %336, %v141
    %v338 = vpop.permute.xlu0 %337
    %341 = vset.pattern.permute.xlu0 0
    %342 = vperm.xlu0 %341, %v142
    %v343 = vpop.permute.xlu0 %342
    %346 = vset.pattern.permute.xlu0 0
    %347 = vperm.xlu0 %346, %v143
    %v348 = vpop.permute.xlu0 %347
    %351 = vset.pattern.permute.xlu0 0
    %352 = vperm.xlu0 %351, %v144
    %v353 = vpop.permute.xlu0 %352
    %356 = vset.pattern.permute.xlu0 0
    %357 = vperm.xlu0 %356, %v145
    %v358 = vpop.permute.xlu0 %357
    %361 = vset.pattern.permute.xlu0 0
    %362 = vperm.xlu0 %361, %v146
    %v363 = vpop.permute.xlu0 %362
    %366 = vset.pattern.permute.xlu0 0
    %367 = vperm.xlu0 %366, %v147
    %v368 = vpop.permute.xlu0 %367
    %371 = vset.pattern.permute.xlu0 0
    %372 = vperm.xlu0 %371, %v148
    %v373 = vpop.permute.xlu0 %372
    %376 = vset.pattern.permute.xlu0 0
    %377 = vperm.xlu0 %376, %v149
    %v378 = vpop.permute.xlu0 %377
    %381 = vset.pattern.permute.xlu0 0
    %382 = vperm.xlu0 %381, %v150
    %v383 = vpop.permute.xlu0 %382
    %386 = vset.pattern.permute.xlu0 0
    %387 = vperm.xlu0 %386, %v151
    %v388 = vpop.permute.xlu0 %387
    %391 = vset.pattern.permute.xlu0 0
    %392 = vperm.xlu0 %391, %v152
    %v393 = vpop.permute.xlu0 %392
    %396 = vset.pattern.permute.xlu0 0
    %397 = vperm.xlu0 %396, %v153
    %v398 = vpop.permute.xlu0 %397
    %401 = vset.pattern.permute.xlu0 0
    %402 = vperm.xlu0 %401, %v154
    %v403 = vpop.permute.xlu0 %402
    %406 = vset.pattern.permute.xlu0 0
    %407 = vperm.xlu0 %406, %v155
    %v408 = vpop.permute.xlu0 %407
    %411 = vset.pattern.permute.xlu0 0
    %412 = vperm.xlu0 %411, %v156
    %v413 = vpop.permute.xlu0 %412
    %416 = vset.pattern.permute.xlu0 0
    %417 = vperm.xlu0 %416, %v157
    %v418 = vpop.permute.xlu0 %417
    %421 = vset.pattern.permute.xlu0 0
    %422 = vperm.xlu0 %421, %v158
    %v423 = vpop.permute.xlu0 %422
    %426 = vset.pattern.permute.xlu0 0
    %427 = vperm.xlu0 %426, %v159
    %v428 = vpop.permute.xlu0 %427
    %431 = vset.pattern.permute.xlu0 0
    %432 = vperm.xlu0 %431, %v160
    %v433 = vpop.permute.xlu0 %432
    %436 = vset.pattern.permute.xlu0 0
    %437 = vperm.xlu0 %436, %v161
    %v438 = vpop.permute.xlu0 %437
    %v441 = vlaneseq
    %v442 = vshrl.u32 %v441, 7
    %v443 = vsub.s32 0, %v442
    %v444 = vrot.slane %v198, %v443
    %v446 = vmul.f32 %v243, %v444
    %v447 = vmul.f32 %v248, %v444
    %v448 = vmul.f32 %v253, %v444
    %v449 = vmul.f32 %v258, %v444
    %v450 = vmul.f32 %v263, %v444
    %v451 = vmul.f32 %v268, %v444
    %v452 = vmul.f32 %v273, %v444
    %v453 = vmul.f32 %v278, %v444
    %v454 = vmul.f32 %v283, %v444
    %v455 = vmul.f32 %v288, %v444
    %v456 = vmul.f32 %v293, %v444
    %v457 = vmul.f32 %v298, %v444
    %v458 = vmul.f32 %v303, %v444
    %v459 = vmul.f32 %v308, %v444
    %v460 = vmul.f32 %v313, %v444
    %v461 = vmul.f32 %v318, %v444
    %v462 = vmul.f32 %v323, %v444
    %v463 = vmul.f32 %v328, %v444
    %v464 = vmul.f32 %v333, %v444
    %v465 = vmul.f32 %v338, %v444
    %v466 = vmul.f32 %v343, %v444
    %v467 = vmul.f32 %v348, %v444
    %v468 = vmul.f32 %v353, %v444
    %v469 = vmul.f32 %v358, %v444
    %v470 = vmul.f32 %v363, %v444
    %v471 = vmul.f32 %v368, %v444
    %v472 = vmul.f32 %v373, %v444
    %v473 = vmul.f32 %v378, %v444
    %v474 = vmul.f32 %v383, %v444
    %v475 = vmul.f32 %v388, %v444
    %v476 = vmul.f32 %v393, %v444
    %v477 = vmul.f32 %v398, %v444
    %v478 = vmul.f32 %v403, %v444
    %v479 = vmul.f32 %v408, %v444
    %v480 = vmul.f32 %v413, %v444
    %v481 = vmul.f32 %v418, %v444
    %v482 = vmul.f32 %v423, %v444
    %v483 = vmul.f32 %v428, %v444
    %v484 = vmul.f32 %v433, %v444
    %v485 = vmul.f32 %v438, %v444
    %vm486 = vcmask 261120
    %v488 = vsel %vm486, %v200, 0
    %v491 = vsel %vm486, %v201, 0
    %v494 = vsel %vm486, %v202, 0
    %v497 = vsel %vm486, %v203, 0
    %v500 = vsel %vm486, %v204, 0
    %v503 = vsel %vm486, %v205, 0
    %v506 = vsel %vm486, %v206, 0
    %v509 = vsel %vm486, %v207, 0
    %v512 = vsel %vm486, %v208, 0
    %v515 = vsel %vm486, %v209, 0
    %v518 = vsel %vm486, %v210, 0
    %v521 = vsel %vm486, %v211, 0
    %v524 = vsel %vm486, %v212, 0
    %v527 = vsel %vm486, %v213, 0
    %v530 = vsel %vm486, %v214, 0
    %v533 = vsel %vm486, %v215, 0
    %v536 = vsel %vm486, %v216, 0
    %v539 = vsel %vm486, %v217, 0
    %v542 = vsel %vm486, %v218, 0
    %v545 = vsel %vm486, %v219, 0
    %v548 = vsel %vm486, %v220, 0
    %v551 = vsel %vm486, %v221, 0
    %v554 = vsel %vm486, %v222, 0
    %v557 = vsel %vm486, %v223, 0
    %v560 = vsel %vm486, %v224, 0
    %v563 = vsel %vm486, %v225, 0
    %v566 = vsel %vm486, %v226, 0
    %v569 = vsel %vm486, %v227, 0
    %v572 = vsel %vm486, %v228, 0
    %v575 = vsel %vm486, %v229, 0
    %v578 = vsel %vm486, %v230, 0
    %v581 = vsel %vm486, %v231, 0
    %v584 = vsel %vm486, %v232, 0
    %v587 = vsel %vm486, %v233, 0
    %v590 = vsel %vm486, %v234, 0
    %v593 = vsel %vm486, %v235, 0
    %v596 = vsel %vm486, %v236, 0
    %v599 = vsel %vm486, %v237, 0
    %v602 = vsel %vm486, %v238, 0
    %v605 = vsel %vm486, %v239, 0
    %607 = vmatprep.subr.mxu0 0.0
    %608 = vmatpush1.msra.mxu0 %v194
    %609 = vmatprep.subr.mxu0 0.0
    %610 = vmatpush1.msra.mxu0 %v195
    %611 = vmatprep.subr.mxu0 0.0
    %612 = vmatpush1.msra.mxu0 %v196
    %613 = vmatprep.subr.mxu0 0.0
    %614 = vmatpush1.msra.mxu0 %v197
    %615 = vmatprep.subr.mxu0 0.0
    %616 = vmatpush1.msra.mxu0 0.0
    %617 = vmatprep.subr.mxu0 0.0
    %618 = vmatpush1.msra.mxu0 0.0
    %619 = vmatprep.subr.mxu0 0.0
    %620 = vmatpush1.msra.mxu0 0.0
    %621 = vmatprep.subr.mxu0 0.0
    %622 = vmatpush1.msra.mxu0 0.0
    %623 = vmatprep.subr.mxu0 0.0
    %624 = vmatpush1.msra.mxu0 0.0
    %625 = vmatprep.subr.mxu0 0.0
    %626 = vmatpush1.msra.mxu0 0.0
    %627 = vmatprep.subr.mxu0 0.0
    %628 = vmatpush1.msra.mxu0 0.0
    %629 = vmatprep.subr.mxu0 0.0
    %630 = vmatpush1.msra.mxu0 0.0
    %631 = vmatprep.subr.mxu0 0.0
    %632 = vmatpush1.msra.mxu0 0.0
    %633 = vmatprep.subr.mxu0 0.0
    %634 = vmatpush1.msra.mxu0 0.0
    %635 = vmatprep.subr.mxu0 0.0
    %636 = vmatpush1.msra.mxu0 0.0
    %637 = vmatprep.subr.mxu0 0.0
    %638 = vmatpush1.msra.mxu0 0.0
    %639 = vmatprep.subr.mxu0 0.0
    %640 = vmatpush1.msra.mxu0 0.0
    %641 = vmatprep.subr.mxu0 0.0
    %642 = vmatpush1.msra.mxu0 0.0
    %643 = vmatprep.subr.mxu0 0.0
    %644 = vmatpush1.msra.mxu0 0.0
    %645 = vmatprep.subr.mxu0 0.0
    %646 = vmatpush1.msra.mxu0 0.0
    %647 = vmatprep.subr.mxu0 0.0
    %648 = vmatpush1.msra.mxu0 0.0
    %649 = vmatprep.subr.mxu0 0.0
    %650 = vmatpush1.msra.mxu0 0.0
    %651 = vmatprep.subr.mxu0 0.0
    %652 = vmatpush1.msra.mxu0 0.0
    %653 = vmatprep.subr.mxu0 0.0
    %654 = vmatpush1.msra.mxu0 0.0
    %655 = vmatprep.subr.mxu0 0.0
    %656 = vmatpush1.msra.mxu0 0.0
    %657 = vmatprep.subr.mxu0 0.0
    %658 = vmatpush1.msra.mxu0 0.0
    %659 = vmatprep.subr.mxu0 0.0
    %660 = vmatpush1.msra.mxu0 0.0
    %661 = vmatprep.subr.mxu0 0.0
    %662 = vmatpush1.msra.mxu0 0.0
    %663 = vmatprep.subr.mxu0 0.0
    %664 = vmatpush1.msra.mxu0 0.0
    %665 = vmatprep.subr.mxu0 0.0
    %666 = vmatpush1.msra.mxu0 0.0
    %667 = vmatprep.subr.mxu0 0.0
    %668 = vmatpush1.msra.mxu0 0.0
    %669 = vmatprep.subr.mxu0 0.0
    %670 = vmatpush1.msra.mxu0 0.0
    %671 = vmatprep.mubr.f32.mxu0 0.0
    %672 = vmatmul.mubr.f32.gmra.mrb[0].mxu0 %v488
    %v673 = vpop.f32.mrb[0].mxu0
    %v674 = vadd.f32 %v446, %v673
    %v675 = vpop.f32.mrb[0].mxu0
    %676 = vmatprep.mubr.f32.mxu0 0.0
    %677 = vmatmul.mubr.f32.gmra.mrb[0].mxu0 %v491
    %v678 = vpop.f32.mrb[0].mxu0
    %v679 = vadd.f32 %v447, %v678
    %v680 = vpop.f32.mrb[0].mxu0
    %681 = vmatprep.mubr.f32.mxu0 0.0
    %682 = vmatmul.mubr.f32.gmra.mrb[0].mxu0 %v494
    %v683 = vpop.f32.mrb[0].mxu0
    %v684 = vadd.f32 %v448, %v683
    %v685 = vpop.f32.mrb[0].mxu0
    %686 = vmatprep.mubr.f32.mxu0 0.0
    %687 = vmatmul.mubr.f32.gmra.mrb[0].mxu0 %v497
    %v688 = vpop.f32.mrb[0].mxu0
    %v689 = vadd.f32 %v449, %v688
    %v690 = vpop.f32.mrb[0].mxu0
    %691 = vmatprep.mubr.f32.mxu0 0.0
    %692 = vmatmul.mubr.f32.gmra.mrb[0].mxu0 %v500
    %v693 = vpop.f32.mrb[0].mxu0
    %v694 = vadd.f32 %v450, %v693
    %v695 = vpop.f32.mrb[0].mxu0
    %696 = vmatprep.mubr.f32.mxu0 0.0
    %697 = vmatmul.mubr.f32.gmra.mrb[0].mxu0 %v503
    %v698 = vpop.f32.mrb[0].mxu0
    %v699 = vadd.f32 %v451, %v698
    %v700 = vpop.f32.mrb[0].mxu0
    %701 = vmatprep.mubr.f32.mxu0 0.0
    %702 = vmatmul.mubr.f32.gmra.mrb[0].mxu0 %v506
    %v703 = vpop.f32.mrb[0].mxu0
    %v704 = vadd.f32 %v452, %v703
    %v705 = vpop.f32.mrb[0].mxu0
    %706 = vmatprep.mubr.f32.mxu0 0.0
    %707 = vmatmul.mubr.f32.gmra.mrb[0].mxu0 %v509
    %v708 = vpop.f32.mrb[0].mxu0
    %v709 = vadd.f32 %v453, %v708
    %v710 = vpop.f32.mrb[0].mxu0
    %711 = vmatprep.mubr.f32.mxu0 0.0
    %712 = vmatmul.mubr.f32.gmra.mrb[0].mxu0 %v512
    %v713 = vpop.f32.mrb[0].mxu0
    %v714 = vadd.f32 %v454, %v713
    %v715 = vpop.f32.mrb[0].mxu0
    %716 = vmatprep.mubr.f32.mxu0 0.0
    %717 = vmatmul.mubr.f32.gmra.mrb[0].mxu0 %v515
    %v718 = vpop.f32.mrb[0].mxu0
    %v719 = vadd.f32 %v455, %v718
    %v720 = vpop.f32.mrb[0].mxu0
    %721 = vmatprep.mubr.f32.mxu0 0.0
    %722 = vmatmul.mubr.f32.gmra.mrb[0].mxu0 %v518
    %v723 = vpop.f32.mrb[0].mxu0
    %v724 = vadd.f32 %v456, %v723
    %v725 = vpop.f32.mrb[0].mxu0
    %726 = vmatprep.mubr.f32.mxu0 0.0
    %727 = vmatmul.mubr.f32.gmra.mrb[0].mxu0 %v521
    %v728 = vpop.f32.mrb[0].mxu0
    %v729 = vadd.f32 %v457, %v728
    %v730 = vpop.f32.mrb[0].mxu0
    %731 = vmatprep.mubr.f32.mxu0 0.0
    %732 = vmatmul.mubr.f32.gmra.mrb[0].mxu0 %v524
    %v733 = vpop.f32.mrb[0].mxu0
    %v734 = vadd.f32 %v458, %v733
    %v735 = vpop.f32.mrb[0].mxu0
    %736 = vmatprep.mubr.f32.mxu0 0.0
    %737 = vmatmul.mubr.f32.gmra.mrb[0].mxu0 %v527
    %v738 = vpop.f32.mrb[0].mxu0
    %v739 = vadd.f32 %v459, %v738
    %v740 = vpop.f32.mrb[0].mxu0
    %741 = vmatprep.mubr.f32.mxu0 0.0
    %742 = vmatmul.mubr.f32.gmra.mrb[0].mxu0 %v530
    %v743 = vpop.f32.mrb[0].mxu0
    %v744 = vadd.f32 %v460, %v743
    %v745 = vpop.f32.mrb[0].mxu0
    %746 = vmatprep.mubr.f32.mxu0 0.0
    %747 = vmatmul.mubr.f32.gmra.mrb[0].mxu0 %v533
    %v748 = vpop.f32.mrb[0].mxu0
    %v749 = vadd.f32 %v461, %v748
    %v750 = vpop.f32.mrb[0].mxu0
    %751 = vmatprep.mubr.f32.mxu0 0.0
    %752 = vmatmul.mubr.f32.gmra.mrb[0].mxu0 %v536
    %v753 = vpop.f32.mrb[0].mxu0
    %v754 = vadd.f32 %v462, %v753
    %v755 = vpop.f32.mrb[0].mxu0
    %756 = vmatprep.mubr.f32.mxu0 0.0
    %757 = vmatmul.mubr.f32.gmra.mrb[0].mxu0 %v539
    %v758 = vpop.f32.mrb[0].mxu0
    %v759 = vadd.f32 %v463, %v758
    %v760 = vpop.f32.mrb[0].mxu0
    %761 = vmatprep.mubr.f32.mxu0 0.0
    %762 = vmatmul.mubr.f32.gmra.mrb[0].mxu0 %v542
    %v763 = vpop.f32.mrb[0].mxu0
    %v764 = vadd.f32 %v464, %v763
    %v765 = vpop.f32.mrb[0].mxu0
    %766 = vmatprep.mubr.f32.mxu0 0.0
    %767 = vmatmul.mubr.f32.gmra.mrb[0].mxu0 %v545
    %v768 = vpop.f32.mrb[0].mxu0
    %v769 = vadd.f32 %v465, %v768
    %v770 = vpop.f32.mrb[0].mxu0
    %771 = vmatprep.mubr.f32.mxu0 0.0
    %772 = vmatmul.mubr.f32.gmra.mrb[0].mxu0 %v548
    %v773 = vpop.f32.mrb[0].mxu0
    %v774 = vadd.f32 %v466, %v773
    %v775 = vpop.f32.mrb[0].mxu0
    %776 = vmatprep.mubr.f32.mxu0 0.0
    %777 = vmatmul.mubr.f32.gmra.mrb[0].mxu0 %v551
    %v778 = vpop.f32.mrb[0].mxu0
    %v779 = vadd.f32 %v467, %v778
    %v780 = vpop.f32.mrb[0].mxu0
    %781 = vmatprep.mubr.f32.mxu0 0.0
    %782 = vmatmul.mubr.f32.gmra.mrb[0].mxu0 %v554
    %v783 = vpop.f32.mrb[0].mxu0
    %v784 = vadd.f32 %v468, %v783
    %v785 = vpop.f32.mrb[0].mxu0
    %786 = vmatprep.mubr.f32.mxu0 0.0
    %787 = vmatmul.mubr.f32.gmra.mrb[0].mxu0 %v557
    %v788 = vpop.f32.mrb[0].mxu0
    %v789 = vadd.f32 %v469, %v788
    %v790 = vpop.f32.mrb[0].mxu0
    %791 = vmatprep.mubr.f32.mxu0 0.0
    %792 = vmatmul.mubr.f32.gmra.mrb[0].mxu0 %v560
    %v793 = vpop.f32.mrb[0].mxu0
    %v794 = vadd.f32 %v470, %v793
    %v795 = vpop.f32.mrb[0].mxu0
    %796 = vmatprep.mubr.f32.mxu0 0.0
    %797 = vmatmul.mubr.f32.gmra.mrb[0].mxu0 %v563
    %v798 = vpop.f32.mrb[0].mxu0
    %v799 = vadd.f32 %v471, %v798
    %v800 = vpop.f32.mrb[0].mxu0
    %801 = vmatprep.mubr.f32.mxu0 0.0
    %802 = vmatmul.mubr.f32.gmra.mrb[0].mxu0 %v566
    %v803 = vpop.f32.mrb[0].mxu0
    %v804 = vadd.f32 %v472, %v803
    %v805 = vpop.f32.mrb[0].mxu0
    %806 = vmatprep.mubr.f32.mxu0 0.0
    %807 = vmatmul.mubr.f32.gmra.mrb[0].mxu0 %v569
    %v808 = vpop.f32.mrb[0].mxu0
    %v809 = vadd.f32 %v473, %v808
    %v810 = vpop.f32.mrb[0].mxu0
    %811 = vmatprep.mubr.f32.mxu0 0.0
    %812 = vmatmul.mubr.f32.gmra.mrb[0].mxu0 %v572
    %v813 = vpop.f32.mrb[0].mxu0
    %v814 = vadd.f32 %v474, %v813
    %v815 = vpop.f32.mrb[0].mxu0
    %816 = vmatprep.mubr.f32.mxu0 0.0
    %817 = vmatmul.mubr.f32.gmra.mrb[0].mxu0 %v575
    %v818 = vpop.f32.mrb[0].mxu0
    %v819 = vadd.f32 %v475, %v818
    %v820 = vpop.f32.mrb[0].mxu0
    %821 = vmatprep.mubr.f32.mxu0 0.0
    %822 = vmatmul.mubr.f32.gmra.mrb[0].mxu0 %v578
    %v823 = vpop.f32.mrb[0].mxu0
    %v824 = vadd.f32 %v476, %v823
    %v825 = vpop.f32.mrb[0].mxu0
    %826 = vmatprep.mubr.f32.mxu0 0.0
    %827 = vmatmul.mubr.f32.gmra.mrb[0].mxu0 %v581
    %v828 = vpop.f32.mrb[0].mxu0
    %v829 = vadd.f32 %v477, %v828
    %v830 = vpop.f32.mrb[0].mxu0
    %831 = vmatprep.mubr.f32.mxu0 0.0
    %832 = vmatmul.mubr.f32.gmra.mrb[0].mxu0 %v584
    %v833 = vpop.f32.mrb[0].mxu0
    %v834 = vadd.f32 %v478, %v833
    %v835 = vpop.f32.mrb[0].mxu0
    %836 = vmatprep.mubr.f32.mxu0 0.0
    %837 = vmatmul.mubr.f32.gmra.mrb[0].mxu0 %v587
    %v838 = vpop.f32.mrb[0].mxu0
    %v839 = vadd.f32 %v479, %v838
    %v840 = vpop.f32.mrb[0].mxu0
    %841 = vmatprep.mubr.f32.mxu0 0.0
    %842 = vmatmul.mubr.f32.gmra.mrb[0].mxu0 %v590
    %v843 = vpop.f32.mrb[0].mxu0
    %v844 = vadd.f32 %v480, %v843
    %v845 = vpop.f32.mrb[0].mxu0
    %846 = vmatprep.mubr.f32.mxu0 0.0
    %847 = vmatmul.mubr.f32.gmra.mrb[0].mxu0 %v593
    %v848 = vpop.f32.mrb[0].mxu0
    %v849 = vadd.f32 %v481, %v848
    %v850 = vpop.f32.mrb[0].mxu0
    %851 = vmatprep.mubr.f32.mxu0 0.0
    %852 = vmatmul.mubr.f32.gmra.mrb[0].mxu0 %v596
    %v853 = vpop.f32.mrb[0].mxu0
    %v854 = vadd.f32 %v482, %v853
    %v855 = vpop.f32.mrb[0].mxu0
    %856 = vmatprep.mubr.f32.mxu0 0.0
    %857 = vmatmul.mubr.f32.gmra.mrb[0].mxu0 %v599
    %v858 = vpop.f32.mrb[0].mxu0
    %v859 = vadd.f32 %v483, %v858
    %v860 = vpop.f32.mrb[0].mxu0
    %861 = vmatprep.mubr.f32.mxu0 0.0
    %862 = vmatmul.mubr.f32.gmra.mrb[0].mxu0 %v602
    %v863 = vpop.f32.mrb[0].mxu0
    %v864 = vadd.f32 %v484, %v863
    %v865 = vpop.f32.mrb[0].mxu0
    %866 = vmatprep.mubr.f32.mxu0 0.0
    %867 = vmatmul.mubr.f32.gmra.mrb[0].mxu0 %v605
    %v868 = vpop.f32.mrb[0].mxu0
    %v869 = vadd.f32 %v485, %v868
    %v870 = vpop.f32.mrb[0].mxu0
    %871 = vdwg.mxu0
    %vm872 = vcmp.ge.f32.partialorder %v674, 0.0
    %vm873 = vcmp.ge.f32.partialorder %v679, 0.0
    %vm874 = vcmp.ge.f32.partialorder %v684, 0.0
    %vm875 = vcmp.ge.f32.partialorder %v689, 0.0
    %vm876 = vcmp.ge.f32.partialorder %v694, 0.0
    %vm877 = vcmp.ge.f32.partialorder %v699, 0.0
    %vm878 = vcmp.ge.f32.partialorder %v704, 0.0
    %vm879 = vcmp.ge.f32.partialorder %v709, 0.0
    %vm880 = vcmp.ge.f32.partialorder %v714, 0.0
    %vm881 = vcmp.ge.f32.partialorder %v719, 0.0
    %vm882 = vcmp.ge.f32.partialorder %v724, 0.0
    %vm883 = vcmp.ge.f32.partialorder %v729, 0.0
    %vm884 = vcmp.ge.f32.partialorder %v734, 0.0
    %vm885 = vcmp.ge.f32.partialorder %v739, 0.0
    %vm886 = vcmp.ge.f32.partialorder %v744, 0.0
    %vm887 = vcmp.ge.f32.partialorder %v749, 0.0
    %vm888 = vcmp.ge.f32.partialorder %v754, 0.0
    %vm889 = vcmp.ge.f32.partialorder %v759, 0.0
    %vm890 = vcmp.ge.f32.partialorder %v764, 0.0
    %vm891 = vcmp.ge.f32.partialorder %v769, 0.0
    %vm892 = vcmp.ge.f32.partialorder %v774, 0.0
    %vm893 = vcmp.ge.f32.partialorder %v779, 0.0
    %vm894 = vcmp.ge.f32.partialorder %v784, 0.0
    %vm895 = vcmp.ge.f32.partialorder %v789, 0.0
    %vm896 = vcmp.ge.f32.partialorder %v794, 0.0
    %vm897 = vcmp.ge.f32.partialorder %v799, 0.0
    %vm898 = vcmp.ge.f32.partialorder %v804, 0.0
    %vm899 = vcmp.ge.f32.partialorder %v809, 0.0
    %vm900 = vcmp.ge.f32.partialorder %v814, 0.0
    %vm901 = vcmp.ge.f32.partialorder %v819, 0.0
    %vm902 = vcmp.ge.f32.partialorder %v824, 0.0
    %vm903 = vcmp.ge.f32.partialorder %v829, 0.0
    %vm904 = vcmp.ge.f32.partialorder %v834, 0.0
    %vm905 = vcmp.ge.f32.partialorder %v839, 0.0
    %vm906 = vcmp.ge.f32.partialorder %v844, 0.0
    %vm907 = vcmp.ge.f32.partialorder %v849, 0.0
    %vm908 = vcmp.ge.f32.partialorder %v854, 0.0
    %vm909 = vcmp.ge.f32.partialorder %v859, 0.0
    %vm910 = vcmp.ge.f32.partialorder %v864, 0.0
    %vm911 = vcmp.ge.f32.partialorder %v869, 0.0
    %v912 = vmul.f32 %v674, 0.2
    %v913 = vmul.f32 %v679, 0.2
    %v914 = vmul.f32 %v684, 0.2
    %v915 = vmul.f32 %v689, 0.2
    %v916 = vmul.f32 %v694, 0.2
    %v917 = vmul.f32 %v699, 0.2
    %v918 = vmul.f32 %v704, 0.2
    %v919 = vmul.f32 %v709, 0.2
    %v920 = vmul.f32 %v714, 0.2
    %v921 = vmul.f32 %v719, 0.2
    %v922 = vmul.f32 %v724, 0.2
    %v923 = vmul.f32 %v729, 0.2
    %v924 = vmul.f32 %v734, 0.2
    %v925 = vmul.f32 %v739, 0.2
    %v926 = vmul.f32 %v744, 0.2
    %v927 = vmul.f32 %v749, 0.2
    %v928 = vmul.f32 %v754, 0.2
    %v929 = vmul.f32 %v759, 0.2
    %v930 = vmul.f32 %v764, 0.2
    %v931 = vmul.f32 %v769, 0.2
    %v932 = vmul.f32 %v774, 0.2
    %v933 = vmul.f32 %v779, 0.2
    %v934 = vmul.f32 %v784, 0.2
    %v935 = vmul.f32 %v789, 0.2
    %v936 = vmul.f32 %v794, 0.2
    %v937 = vmul.f32 %v799, 0.2
    %v938 = vmul.f32 %v804, 0.2
    %v939 = vmul.f32 %v809, 0.2
    %v940 = vmul.f32 %v814, 0.2
    %v941 = vmul.f32 %v819, 0.2
    %v942 = vmul.f32 %v824, 0.2
    %v943 = vmul.f32 %v829, 0.2
    %v944 = vmul.f32 %v834, 0.2
    %v945 = vmul.f32 %v839, 0.2
    %v946 = vmul.f32 %v844, 0.2
    %v947 = vmul.f32 %v849, 0.2
    %v948 = vmul.f32 %v854, 0.2
    %v949 = vmul.f32 %v859, 0.2
    %v950 = vmul.f32 %v864, 0.2
    %v951 = vmul.f32 %v869, 0.2
    %v952 = vsel %vm872, %v674, %v912
    %v953 = vsel %vm873, %v679, %v913
    %v954 = vsel %vm874, %v684, %v914
    %v955 = vsel %vm875, %v689, %v915
    %v956 = vsel %vm876, %v694, %v916
    %v957 = vsel %vm877, %v699, %v917
    %v958 = vsel %vm878, %v704, %v918
    %v959 = vsel %vm879, %v709, %v919
    %v960 = vsel %vm880, %v714, %v920
    %v961 = vsel %vm881, %v719, %v921
    %v962 = vsel %vm882, %v724, %v922
    %v963 = vsel %vm883, %v729, %v923
    %v964 = vsel %vm884, %v734, %v924
    %v965 = vsel %vm885, %v739, %v925
    %v966 = vsel %vm886, %v744, %v926
    %v967 = vsel %vm887, %v749, %v927
    %v968 = vsel %vm888, %v754, %v928
    %v969 = vsel %vm889, %v759, %v929
    %v970 = vsel %vm890, %v764, %v930
    %v971 = vsel %vm891, %v769, %v931
    %v972 = vsel %vm892, %v774, %v932
    %v973 = vsel %vm893, %v779, %v933
    %v974 = vsel %vm894, %v784, %v934
    %v975 = vsel %vm895, %v789, %v935
    %v976 = vsel %vm896, %v794, %v936
    %v977 = vsel %vm897, %v799, %v937
    %v978 = vsel %vm898, %v804, %v938
    %v979 = vsel %vm899, %v809, %v939
    %v980 = vsel %vm900, %v814, %v940
    %v981 = vsel %vm901, %v819, %v941
    %v982 = vsel %vm902, %v824, %v942
    %v983 = vsel %vm903, %v829, %v943
    %v984 = vsel %vm904, %v834, %v944
    %v985 = vsel %vm905, %v839, %v945
    %v986 = vsel %vm906, %v844, %v946
    %v987 = vsel %vm907, %v849, %v947
    %v988 = vsel %vm908, %v854, %v948
    %v989 = vsel %vm909, %v859, %v949
    %v990 = vsel %vm910, %v864, %v950
    %v991 = vsel %vm911, %v869, %v951
    %v993 = vlaneseq
    %v994 = vshrl.u32 %v993, 7
    %v995 = vsub.s32 0, %v994
    %v996 = vrot.slane %v199, %v995
    %v998 = vmul.f32 %v952, %v996
    %v999 = vmul.f32 %v953, %v996
    %v1000 = vmul.f32 %v954, %v996
    %v1001 = vmul.f32 %v955, %v996
    %v1002 = vmul.f32 %v956, %v996
    %v1003 = vmul.f32 %v957, %v996
    %v1004 = vmul.f32 %v958, %v996
    %v1005 = vmul.f32 %v959, %v996
    %v1006 = vmul.f32 %v960, %v996
    %v1007 = vmul.f32 %v961, %v996
    %v1008 = vmul.f32 %v962, %v996
    %v1009 = vmul.f32 %v963, %v996
    %v1010 = vmul.f32 %v964, %v996
    %v1011 = vmul.f32 %v965, %v996
    %v1012 = vmul.f32 %v966, %v996
    %v1013 = vmul.f32 %v967, %v996
    %v1014 = vmul.f32 %v968, %v996
    %v1015 = vmul.f32 %v969, %v996
    %v1016 = vmul.f32 %v970, %v996
    %v1017 = vmul.f32 %v971, %v996
    %v1018 = vmul.f32 %v972, %v996
    %v1019 = vmul.f32 %v973, %v996
    %v1020 = vmul.f32 %v974, %v996
    %v1021 = vmul.f32 %v975, %v996
    %v1022 = vmul.f32 %v976, %v996
    %v1023 = vmul.f32 %v977, %v996
    %v1024 = vmul.f32 %v978, %v996
    %v1025 = vmul.f32 %v979, %v996
    %v1026 = vmul.f32 %v980, %v996
    %v1027 = vmul.f32 %v981, %v996
    %v1028 = vmul.f32 %v982, %v996
    %v1029 = vmul.f32 %v983, %v996
    %v1030 = vmul.f32 %v984, %v996
    %v1031 = vmul.f32 %v985, %v996
    %v1032 = vmul.f32 %v986, %v996
    %v1033 = vmul.f32 %v987, %v996
    %v1034 = vmul.f32 %v988, %v996
    %v1035 = vmul.f32 %v989, %v996
    %v1036 = vmul.f32 %v990, %v996
    %v1037 = vmul.f32 %v991, %v996
    %v1038 = vsel %vm486, %v998, 0.0
    %1039 = vadd.xlane.f32.xlu0 %v1038
    %v1040 = vpop.xlane.xlu0 %1039
    %v1041 = vsel %vm486, %v999, 0.0
    %1042 = vadd.xlane.f32.xlu0 %v1041
    %v1043 = vpop.xlane.xlu0 %1042
    %v1044 = vsel %vm486, %v1000, 0.0
    %1045 = vadd.xlane.f32.xlu0 %v1044
    %v1046 = vpop.xlane.xlu0 %1045
    %v1047 = vsel %vm486, %v1001, 0.0
    %1048 = vadd.xlane.f32.xlu0 %v1047
    %v1049 = vpop.xlane.xlu0 %1048
    %v1050 = vsel %vm486, %v1002, 0.0
    %1051 = vadd.xlane.f32.xlu0 %v1050
    %v1052 = vpop.xlane.xlu0 %1051
    %v1053 = vsel %vm486, %v1003, 0.0
    %1054 = vadd.xlane.f32.xlu0 %v1053
    %v1055 = vpop.xlane.xlu0 %1054
    %v1056 = vsel %vm486, %v1004, 0.0
    %1057 = vadd.xlane.f32.xlu0 %v1056
    %v1058 = vpop.xlane.xlu0 %1057
    %v1059 = vsel %vm486, %v1005, 0.0
    %1060 = vadd.xlane.f32.xlu0 %v1059
    %v1061 = vpop.xlane.xlu0 %1060
    %v1062 = vsel %vm486, %v1006, 0.0
    %1063 = vadd.xlane.f32.xlu0 %v1062
    %v1064 = vpop.xlane.xlu0 %1063
    %v1065 = vsel %vm486, %v1007, 0.0
    %1066 = vadd.xlane.f32.xlu0 %v1065
    %v1067 = vpop.xlane.xlu0 %1066
    %v1068 = vsel %vm486, %v1008, 0.0
    %1069 = vadd.xlane.f32.xlu0 %v1068
    %v1070 = vpop.xlane.xlu0 %1069
    %v1071 = vsel %vm486, %v1009, 0.0
    %1072 = vadd.xlane.f32.xlu0 %v1071
    %v1073 = vpop.xlane.xlu0 %1072
    %v1074 = vsel %vm486, %v1010, 0.0
    %1075 = vadd.xlane.f32.xlu0 %v1074
    %v1076 = vpop.xlane.xlu0 %1075
    %v1077 = vsel %vm486, %v1011, 0.0
    %1078 = vadd.xlane.f32.xlu0 %v1077
    %v1079 = vpop.xlane.xlu0 %1078
    %v1080 = vsel %vm486, %v1012, 0.0
    %1081 = vadd.xlane.f32.xlu0 %v1080
    %v1082 = vpop.xlane.xlu0 %1081
    %v1083 = vsel %vm486, %v1013, 0.0
    %1084 = vadd.xlane.f32.xlu0 %v1083
    %v1085 = vpop.xlane.xlu0 %1084
    %v1086 = vsel %vm486, %v1014, 0.0
    %1087 = vadd.xlane.f32.xlu0 %v1086
    %v1088 = vpop.xlane.xlu0 %1087
    %v1089 = vsel %vm486, %v1015, 0.0
    %1090 = vadd.xlane.f32.xlu0 %v1089
    %v1091 = vpop.xlane.xlu0 %1090
    %v1092 = vsel %vm486, %v1016, 0.0
    %1093 = vadd.xlane.f32.xlu0 %v1092
    %v1094 = vpop.xlane.xlu0 %1093
    %v1095 = vsel %vm486, %v1017, 0.0
    %1096 = vadd.xlane.f32.xlu0 %v1095
    %v1097 = vpop.xlane.xlu0 %1096
    %v1098 = vsel %vm486, %v1018, 0.0
    %1099 = vadd.xlane.f32.xlu0 %v1098
    %v1100 = vpop.xlane.xlu0 %1099
    %v1101 = vsel %vm486, %v1019, 0.0
    %1102 = vadd.xlane.f32.xlu0 %v1101
    %v1103 = vpop.xlane.xlu0 %1102
    %v1104 = vsel %vm486, %v1020, 0.0
    %1105 = vadd.xlane.f32.xlu0 %v1104
    %v1106 = vpop.xlane.xlu0 %1105
    %v1107 = vsel %vm486, %v1021, 0.0
    %1108 = vadd.xlane.f32.xlu0 %v1107
    %v1109 = vpop.xlane.xlu0 %1108
    %v1110 = vsel %vm486, %v1022, 0.0
    %1111 = vadd.xlane.f32.xlu0 %v1110
    %v1112 = vpop.xlane.xlu0 %1111
    %v1113 = vsel %vm486, %v1023, 0.0
    %1114 = vadd.xlane.f32.xlu0 %v1113
    %v1115 = vpop.xlane.xlu0 %1114
    %v1116 = vsel %vm486, %v1024, 0.0
    %1117 = vadd.xlane.f32.xlu0 %v1116
    %v1118 = vpop.xlane.xlu0 %1117
    %v1119 = vsel %vm486, %v1025, 0.0
    %1120 = vadd.xlane.f32.xlu0 %v1119
    %v1121 = vpop.xlane.xlu0 %1120
    %v1122 = vsel %vm486, %v1026, 0.0
    %1123 = vadd.xlane.f32.xlu0 %v1122
    %v1124 = vpop.xlane.xlu0 %1123
    %v1125 = vsel %vm486, %v1027, 0.0
    %1126 = vadd.xlane.f32.xlu0 %v1125
    %v1127 = vpop.xlane.xlu0 %1126
    %v1128 = vsel %vm486, %v1028, 0.0
    %1129 = vadd.xlane.f32.xlu0 %v1128
    %v1130 = vpop.xlane.xlu0 %1129
    %v1131 = vsel %vm486, %v1029, 0.0
    %1132 = vadd.xlane.f32.xlu0 %v1131
    %v1133 = vpop.xlane.xlu0 %1132
    %v1134 = vsel %vm486, %v1030, 0.0
    %1135 = vadd.xlane.f32.xlu0 %v1134
    %v1136 = vpop.xlane.xlu0 %1135
    %v1137 = vsel %vm486, %v1031, 0.0
    %1138 = vadd.xlane.f32.xlu0 %v1137
    %v1139 = vpop.xlane.xlu0 %1138
    %v1140 = vsel %vm486, %v1032, 0.0
    %1141 = vadd.xlane.f32.xlu0 %v1140
    %v1142 = vpop.xlane.xlu0 %1141
    %v1143 = vsel %vm486, %v1033, 0.0
    %1144 = vadd.xlane.f32.xlu0 %v1143
    %v1145 = vpop.xlane.xlu0 %1144
    %v1146 = vsel %vm486, %v1034, 0.0
    %1147 = vadd.xlane.f32.xlu0 %v1146
    %v1148 = vpop.xlane.xlu0 %1147
    %v1149 = vsel %vm486, %v1035, 0.0
    %1150 = vadd.xlane.f32.xlu0 %v1149
    %v1151 = vpop.xlane.xlu0 %1150
    %v1152 = vsel %vm486, %v1036, 0.0
    %1153 = vadd.xlane.f32.xlu0 %v1152
    %v1154 = vpop.xlane.xlu0 %1153
    %v1155 = vsel %vm486, %v1037, 0.0
    %1156 = vadd.xlane.f32.xlu0 %v1155
    %v1157 = vpop.xlane.xlu0 %1156
    %v1199 = vunpack.c.l.s4 839922192
    %v1200 = vunpack.c.0.s8 %v1199
    %v1201 = vlaneseq
    %v1202 = vshrl.u32 %v1201, 7
    %v1203 = vsub.s32 %v1200, %v1202
    %v1204 = vrot.slane %v1040, %v1203
    %v1206 = vunpack.c.l.s4 1985246804
    %v1207 = vunpack.c.0.s8 %v1206
    %v1208 = vlaneseq
    %v1209 = vshrl.u32 %v1208, 7
    %v1210 = vsub.s32 %v1207, %v1209
    %v1211 = vrot.slane %v1040, %v1210
    %v1213 = vunpack.c.l.s4 839922192
    %v1214 = vunpack.c.0.s8 %v1213
    %v1215 = vlaneseq
    %v1216 = vshrl.u32 %v1215, 7
    %v1217 = vsub.s32 %v1214, %v1216
    %v1218 = vrot.slane %v1043, %v1217
    %v1220 = vunpack.c.l.s4 1985246804
    %v1221 = vunpack.c.0.s8 %v1220
    %v1222 = vlaneseq
    %v1223 = vshrl.u32 %v1222, 7
    %v1224 = vsub.s32 %v1221, %v1223
    %v1225 = vrot.slane %v1043, %v1224
    %v1227 = vunpack.c.l.s4 839922192
    %v1228 = vunpack.c.0.s8 %v1227
    %v1229 = vlaneseq
    %v1230 = vshrl.u32 %v1229, 7
    %v1231 = vsub.s32 %v1228, %v1230
    %v1232 = vrot.slane %v1046, %v1231
    %v1234 = vunpack.c.l.s4 1985246804
    %v1235 = vunpack.c.0.s8 %v1234
    %v1236 = vlaneseq
    %v1237 = vshrl.u32 %v1236, 7
    %v1238 = vsub.s32 %v1235, %v1237
    %v1239 = vrot.slane %v1046, %v1238
    %v1241 = vunpack.c.l.s4 839922192
    %v1242 = vunpack.c.0.s8 %v1241
    %v1243 = vlaneseq
    %v1244 = vshrl.u32 %v1243, 7
    %v1245 = vsub.s32 %v1242, %v1244
    %v1246 = vrot.slane %v1049, %v1245
    %v1248 = vunpack.c.l.s4 1985246804
    %v1249 = vunpack.c.0.s8 %v1248
    %v1250 = vlaneseq
    %v1251 = vshrl.u32 %v1250, 7
    %v1252 = vsub.s32 %v1249, %v1251
    %v1253 = vrot.slane %v1049, %v1252
    %v1255 = vunpack.c.l.s4 839922192
    %v1256 = vunpack.c.0.s8 %v1255
    %v1257 = vlaneseq
    %v1258 = vshrl.u32 %v1257, 7
    %v1259 = vsub.s32 %v1256, %v1258
    %v1260 = vrot.slane %v1052, %v1259
    %v1262 = vunpack.c.l.s4 1985246804
    %v1263 = vunpack.c.0.s8 %v1262
    %v1264 = vlaneseq
    %v1265 = vshrl.u32 %v1264, 7
    %v1266 = vsub.s32 %v1263, %v1265
    %v1267 = vrot.slane %v1052, %v1266
    %v1269 = vunpack.c.l.s4 839922192
    %v1270 = vunpack.c.0.s8 %v1269
    %v1271 = vlaneseq
    %v1272 = vshrl.u32 %v1271, 7
    %v1273 = vsub.s32 %v1270, %v1272
    %v1274 = vrot.slane %v1055, %v1273
    %v1276 = vunpack.c.l.s4 1985246804
    %v1277 = vunpack.c.0.s8 %v1276
    %v1278 = vlaneseq
    %v1279 = vshrl.u32 %v1278, 7
    %v1280 = vsub.s32 %v1277, %v1279
    %v1281 = vrot.slane %v1055, %v1280
    %v1283 = vunpack.c.l.s4 839922192
    %v1284 = vunpack.c.0.s8 %v1283
    %v1285 = vlaneseq
    %v1286 = vshrl.u32 %v1285, 7
    %v1287 = vsub.s32 %v1284, %v1286
    %v1288 = vrot.slane %v1058, %v1287
    %v1290 = vunpack.c.l.s4 1985246804
    %v1291 = vunpack.c.0.s8 %v1290
    %v1292 = vlaneseq
    %v1293 = vshrl.u32 %v1292, 7
    %v1294 = vsub.s32 %v1291, %v1293
    %v1295 = vrot.slane %v1058, %v1294
    %v1297 = vunpack.c.l.s4 839922192
    %v1298 = vunpack.c.0.s8 %v1297
    %v1299 = vlaneseq
    %v1300 = vshrl.u32 %v1299, 7
    %v1301 = vsub.s32 %v1298, %v1300
    %v1302 = vrot.slane %v1061, %v1301
    %v1304 = vunpack.c.l.s4 1985246804
    %v1305 = vunpack.c.0.s8 %v1304
    %v1306 = vlaneseq
    %v1307 = vshrl.u32 %v1306, 7
    %v1308 = vsub.s32 %v1305, %v1307
    %v1309 = vrot.slane %v1061, %v1308
    %v1311 = vunpack.c.l.s4 839922192
    %v1312 = vunpack.c.0.s8 %v1311
    %v1313 = vlaneseq
    %v1314 = vshrl.u32 %v1313, 7
    %v1315 = vsub.s32 %v1312, %v1314
    %v1316 = vrot.slane %v1064, %v1315
    %v1318 = vunpack.c.l.s4 1985246804
    %v1319 = vunpack.c.0.s8 %v1318
    %v1320 = vlaneseq
    %v1321 = vshrl.u32 %v1320, 7
    %v1322 = vsub.s32 %v1319, %v1321
    %v1323 = vrot.slane %v1064, %v1322
    %v1325 = vunpack.c.l.s4 839922192
    %v1326 = vunpack.c.0.s8 %v1325
    %v1327 = vlaneseq
    %v1328 = vshrl.u32 %v1327, 7
    %v1329 = vsub.s32 %v1326, %v1328
    %v1330 = vrot.slane %v1067, %v1329
    %v1332 = vunpack.c.l.s4 1985246804
    %v1333 = vunpack.c.0.s8 %v1332
    %v1334 = vlaneseq
    %v1335 = vshrl.u32 %v1334, 7
    %v1336 = vsub.s32 %v1333, %v1335
    %v1337 = vrot.slane %v1067, %v1336
    %v1339 = vunpack.c.l.s4 839922192
    %v1340 = vunpack.c.0.s8 %v1339
    %v1341 = vlaneseq
    %v1342 = vshrl.u32 %v1341, 7
    %v1343 = vsub.s32 %v1340, %v1342
    %v1344 = vrot.slane %v1070, %v1343
    %v1346 = vunpack.c.l.s4 1985246804
    %v1347 = vunpack.c.0.s8 %v1346
    %v1348 = vlaneseq
    %v1349 = vshrl.u32 %v1348, 7
    %v1350 = vsub.s32 %v1347, %v1349
    %v1351 = vrot.slane %v1070, %v1350
    %v1353 = vunpack.c.l.s4 839922192
    %v1354 = vunpack.c.0.s8 %v1353
    %v1355 = vlaneseq
    %v1356 = vshrl.u32 %v1355, 7
    %v1357 = vsub.s32 %v1354, %v1356
    %v1358 = vrot.slane %v1073, %v1357
    %v1360 = vunpack.c.l.s4 1985246804
    %v1361 = vunpack.c.0.s8 %v1360
    %v1362 = vlaneseq
    %v1363 = vshrl.u32 %v1362, 7
    %v1364 = vsub.s32 %v1361, %v1363
    %v1365 = vrot.slane %v1073, %v1364
    %v1367 = vunpack.c.l.s4 839922192
    %v1368 = vunpack.c.0.s8 %v1367
    %v1369 = vlaneseq
    %v1370 = vshrl.u32 %v1369, 7
    %v1371 = vsub.s32 %v1368, %v1370
    %v1372 = vrot.slane %v1076, %v1371
    %v1374 = vunpack.c.l.s4 1985246804
    %v1375 = vunpack.c.0.s8 %v1374
    %v1376 = vlaneseq
    %v1377 = vshrl.u32 %v1376, 7
    %v1378 = vsub.s32 %v1375, %v1377
    %v1379 = vrot.slane %v1076, %v1378
    %v1381 = vunpack.c.l.s4 839922192
    %v1382 = vunpack.c.0.s8 %v1381
    %v1383 = vlaneseq
    %v1384 = vshrl.u32 %v1383, 7
    %v1385 = vsub.s32 %v1382, %v1384
    %v1386 = vrot.slane %v1079, %v1385
    %v1388 = vunpack.c.l.s4 1985246804
    %v1389 = vunpack.c.0.s8 %v1388
    %v1390 = vlaneseq
    %v1391 = vshrl.u32 %v1390, 7
    %v1392 = vsub.s32 %v1389, %v1391
    %v1393 = vrot.slane %v1079, %v1392
    %v1395 = vunpack.c.l.s4 839922192
    %v1396 = vunpack.c.0.s8 %v1395
    %v1397 = vlaneseq
    %v1398 = vshrl.u32 %v1397, 7
    %v1399 = vsub.s32 %v1396, %v1398
    %v1400 = vrot.slane %v1082, %v1399
    %v1402 = vunpack.c.l.s4 1985246804
    %v1403 = vunpack.c.0.s8 %v1402
    %v1404 = vlaneseq
    %v1405 = vshrl.u32 %v1404, 7
    %v1406 = vsub.s32 %v1403, %v1405
    %v1407 = vrot.slane %v1082, %v1406
    %v1409 = vunpack.c.l.s4 839922192
    %v1410 = vunpack.c.0.s8 %v1409
    %v1411 = vlaneseq
    %v1412 = vshrl.u32 %v1411, 7
    %v1413 = vsub.s32 %v1410, %v1412
    %v1414 = vrot.slane %v1085, %v1413
    %v1416 = vunpack.c.l.s4 1985246804
    %v1417 = vunpack.c.0.s8 %v1416
    %v1418 = vlaneseq
    %v1419 = vshrl.u32 %v1418, 7
    %v1420 = vsub.s32 %v1417, %v1419
    %v1421 = vrot.slane %v1085, %v1420
    %v1423 = vunpack.c.l.s4 839922192
    %v1424 = vunpack.c.0.s8 %v1423
    %v1425 = vlaneseq
    %v1426 = vshrl.u32 %v1425, 7
    %v1427 = vsub.s32 %v1424, %v1426
    %v1428 = vrot.slane %v1088, %v1427
    %v1430 = vunpack.c.l.s4 1985246804
    %v1431 = vunpack.c.0.s8 %v1430
    %v1432 = vlaneseq
    %v1433 = vshrl.u32 %v1432, 7
    %v1434 = vsub.s32 %v1431, %v1433
    %v1435 = vrot.slane %v1088, %v1434
    %v1437 = vunpack.c.l.s4 839922192
    %v1438 = vunpack.c.0.s8 %v1437
    %v1439 = vlaneseq
    %v1440 = vshrl.u32 %v1439, 7
    %v1441 = vsub.s32 %v1438, %v1440
    %v1442 = vrot.slane %v1091, %v1441
    %v1444 = vunpack.c.l.s4 1985246804
    %v1445 = vunpack.c.0.s8 %v1444
    %v1446 = vlaneseq
    %v1447 = vshrl.u32 %v1446, 7
    %v1448 = vsub.s32 %v1445, %v1447
    %v1449 = vrot.slane %v1091, %v1448
    %v1451 = vunpack.c.l.s4 839922192
    %v1452 = vunpack.c.0.s8 %v1451
    %v1453 = vlaneseq
    %v1454 = vshrl.u32 %v1453, 7
    %v1455 = vsub.s32 %v1452, %v1454
    %v1456 = vrot.slane %v1094, %v1455
    %v1458 = vunpack.c.l.s4 1985246804
    %v1459 = vunpack.c.0.s8 %v1458
    %v1460 = vlaneseq
    %v1461 = vshrl.u32 %v1460, 7
    %v1462 = vsub.s32 %v1459, %v1461
    %v1463 = vrot.slane %v1094, %v1462
    %v1465 = vunpack.c.l.s4 839922192
    %v1466 = vunpack.c.0.s8 %v1465
    %v1467 = vlaneseq
    %v1468 = vshrl.u32 %v1467, 7
    %v1469 = vsub.s32 %v1466, %v1468
    %v1470 = vrot.slane %v1097, %v1469
    %v1472 = vunpack.c.l.s4 1985246804
    %v1473 = vunpack.c.0.s8 %v1472
    %v1474 = vlaneseq
    %v1475 = vshrl.u32 %v1474, 7
    %v1476 = vsub.s32 %v1473, %v1475
    %v1477 = vrot.slane %v1097, %v1476
    %v1479 = vunpack.c.l.s4 839922192
    %v1480 = vunpack.c.0.s8 %v1479
    %v1481 = vlaneseq
    %v1482 = vshrl.u32 %v1481, 7
    %v1483 = vsub.s32 %v1480, %v1482
    %v1484 = vrot.slane %v1100, %v1483
    %v1486 = vunpack.c.l.s4 1985246804
    %v1487 = vunpack.c.0.s8 %v1486
    %v1488 = vlaneseq
    %v1489 = vshrl.u32 %v1488, 7
    %v1490 = vsub.s32 %v1487, %v1489
    %v1491 = vrot.slane %v1100, %v1490
    %v1493 = vunpack.c.l.s4 839922192
    %v1494 = vunpack.c.0.s8 %v1493
    %v1495 = vlaneseq
    %v1496 = vshrl.u32 %v1495, 7
    %v1497 = vsub.s32 %v1494, %v1496
    %v1498 = vrot.slane %v1103, %v1497
    %v1500 = vunpack.c.l.s4 1985246804
    %v1501 = vunpack.c.0.s8 %v1500
    %v1502 = vlaneseq
    %v1503 = vshrl.u32 %v1502, 7
    %v1504 = vsub.s32 %v1501, %v1503
    %v1505 = vrot.slane %v1103, %v1504
    %v1507 = vunpack.c.l.s4 839922192
    %v1508 = vunpack.c.0.s8 %v1507
    %v1509 = vlaneseq
    %v1510 = vshrl.u32 %v1509, 7
    %v1511 = vsub.s32 %v1508, %v1510
    %v1512 = vrot.slane %v1106, %v1511
    %v1514 = vunpack.c.l.s4 1985246804
    %v1515 = vunpack.c.0.s8 %v1514
    %v1516 = vlaneseq
    %v1517 = vshrl.u32 %v1516, 7
    %v1518 = vsub.s32 %v1515, %v1517
    %v1519 = vrot.slane %v1106, %v1518
    %v1521 = vunpack.c.l.s4 839922192
    %v1522 = vunpack.c.0.s8 %v1521
    %v1523 = vlaneseq
    %v1524 = vshrl.u32 %v1523, 7
    %v1525 = vsub.s32 %v1522, %v1524
    %v1526 = vrot.slane %v1109, %v1525
    %v1528 = vunpack.c.l.s4 1985246804
    %v1529 = vunpack.c.0.s8 %v1528
    %v1530 = vlaneseq
    %v1531 = vshrl.u32 %v1530, 7
    %v1532 = vsub.s32 %v1529, %v1531
    %v1533 = vrot.slane %v1109, %v1532
    %v1535 = vunpack.c.l.s4 839922192
    %v1536 = vunpack.c.0.s8 %v1535
    %v1537 = vlaneseq
    %v1538 = vshrl.u32 %v1537, 7
    %v1539 = vsub.s32 %v1536, %v1538
    %v1540 = vrot.slane %v1112, %v1539
    %v1542 = vunpack.c.l.s4 1985246804
    %v1543 = vunpack.c.0.s8 %v1542
    %v1544 = vlaneseq
    %v1545 = vshrl.u32 %v1544, 7
    %v1546 = vsub.s32 %v1543, %v1545
    %v1547 = vrot.slane %v1112, %v1546
    %v1549 = vunpack.c.l.s4 839922192
    %v1550 = vunpack.c.0.s8 %v1549
    %v1551 = vlaneseq
    %v1552 = vshrl.u32 %v1551, 7
    %v1553 = vsub.s32 %v1550, %v1552
    %v1554 = vrot.slane %v1115, %v1553
    %v1556 = vunpack.c.l.s4 1985246804
    %v1557 = vunpack.c.0.s8 %v1556
    %v1558 = vlaneseq
    %v1559 = vshrl.u32 %v1558, 7
    %v1560 = vsub.s32 %v1557, %v1559
    %v1561 = vrot.slane %v1115, %v1560
    %v1563 = vunpack.c.l.s4 839922192
    %v1564 = vunpack.c.0.s8 %v1563
    %v1565 = vlaneseq
    %v1566 = vshrl.u32 %v1565, 7
    %v1567 = vsub.s32 %v1564, %v1566
    %v1568 = vrot.slane %v1118, %v1567
    %v1570 = vunpack.c.l.s4 1985246804
    %v1571 = vunpack.c.0.s8 %v1570
    %v1572 = vlaneseq
    %v1573 = vshrl.u32 %v1572, 7
    %v1574 = vsub.s32 %v1571, %v1573
    %v1575 = vrot.slane %v1118, %v1574
    %v1577 = vunpack.c.l.s4 839922192
    %v1578 = vunpack.c.0.s8 %v1577
    %v1579 = vlaneseq
    %v1580 = vshrl.u32 %v1579, 7
    %v1581 = vsub.s32 %v1578, %v1580
    %v1582 = vrot.slane %v1121, %v1581
    %v1584 = vunpack.c.l.s4 1985246804
    %v1585 = vunpack.c.0.s8 %v1584
    %v1586 = vlaneseq
    %v1587 = vshrl.u32 %v1586, 7
    %v1588 = vsub.s32 %v1585, %v1587
    %v1589 = vrot.slane %v1121, %v1588
    %v1591 = vunpack.c.l.s4 839922192
    %v1592 = vunpack.c.0.s8 %v1591
    %v1593 = vlaneseq
    %v1594 = vshrl.u32 %v1593, 7
    %v1595 = vsub.s32 %v1592, %v1594
    %v1596 = vrot.slane %v1124, %v1595
    %v1598 = vunpack.c.l.s4 1985246804
    %v1599 = vunpack.c.0.s8 %v1598
    %v1600 = vlaneseq
    %v1601 = vshrl.u32 %v1600, 7
    %v1602 = vsub.s32 %v1599, %v1601
    %v1603 = vrot.slane %v1124, %v1602
    %v1605 = vunpack.c.l.s4 839922192
    %v1606 = vunpack.c.0.s8 %v1605
    %v1607 = vlaneseq
    %v1608 = vshrl.u32 %v1607, 7
    %v1609 = vsub.s32 %v1606, %v1608
    %v1610 = vrot.slane %v1127, %v1609
    %v1612 = vunpack.c.l.s4 1985246804
    %v1613 = vunpack.c.0.s8 %v1612
    %v1614 = vlaneseq
    %v1615 = vshrl.u32 %v1614, 7
    %v1616 = vsub.s32 %v1613, %v1615
    %v1617 = vrot.slane %v1127, %v1616
    %v1619 = vunpack.c.l.s4 839922192
    %v1620 = vunpack.c.0.s8 %v1619
    %v1621 = vlaneseq
    %v1622 = vshrl.u32 %v1621, 7
    %v1623 = vsub.s32 %v1620, %v1622
    %v1624 = vrot.slane %v1130, %v1623
    %v1626 = vunpack.c.l.s4 1985246804
    %v1627 = vunpack.c.0.s8 %v1626
    %v1628 = vlaneseq
    %v1629 = vshrl.u32 %v1628, 7
    %v1630 = vsub.s32 %v1627, %v1629
    %v1631 = vrot.slane %v1130, %v1630
    %v1633 = vunpack.c.l.s4 839922192
    %v1634 = vunpack.c.0.s8 %v1633
    %v1635 = vlaneseq
    %v1636 = vshrl.u32 %v1635, 7
    %v1637 = vsub.s32 %v1634, %v1636
    %v1638 = vrot.slane %v1133, %v1637
    %v1640 = vunpack.c.l.s4 1985246804
    %v1641 = vunpack.c.0.s8 %v1640
    %v1642 = vlaneseq
    %v1643 = vshrl.u32 %v1642, 7
    %v1644 = vsub.s32 %v1641, %v1643
    %v1645 = vrot.slane %v1133, %v1644
    %v1647 = vunpack.c.l.s4 839922192
    %v1648 = vunpack.c.0.s8 %v1647
    %v1649 = vlaneseq
    %v1650 = vshrl.u32 %v1649, 7
    %v1651 = vsub.s32 %v1648, %v1650
    %v1652 = vrot.slane %v1136, %v1651
    %v1654 = vunpack.c.l.s4 1985246804
    %v1655 = vunpack.c.0.s8 %v1654
    %v1656 = vlaneseq
    %v1657 = vshrl.u32 %v1656, 7
    %v1658 = vsub.s32 %v1655, %v1657
    %v1659 = vrot.slane %v1136, %v1658
    %v1661 = vunpack.c.l.s4 839922192
    %v1662 = vunpack.c.0.s8 %v1661
    %v1663 = vlaneseq
    %v1664 = vshrl.u32 %v1663, 7
    %v1665 = vsub.s32 %v1662, %v1664
    %v1666 = vrot.slane %v1139, %v1665
    %v1668 = vunpack.c.l.s4 1985246804
    %v1669 = vunpack.c.0.s8 %v1668
    %v1670 = vlaneseq
    %v1671 = vshrl.u32 %v1670, 7
    %v1672 = vsub.s32 %v1669, %v1671
    %v1673 = vrot.slane %v1139, %v1672
    %v1675 = vunpack.c.l.s4 839922192
    %v1676 = vunpack.c.0.s8 %v1675
    %v1677 = vlaneseq
    %v1678 = vshrl.u32 %v1677, 7
    %v1679 = vsub.s32 %v1676, %v1678
    %v1680 = vrot.slane %v1142, %v1679
    %v1682 = vunpack.c.l.s4 1985246804
    %v1683 = vunpack.c.0.s8 %v1682
    %v1684 = vlaneseq
    %v1685 = vshrl.u32 %v1684, 7
    %v1686 = vsub.s32 %v1683, %v1685
    %v1687 = vrot.slane %v1142, %v1686
    %v1689 = vunpack.c.l.s4 839922192
    %v1690 = vunpack.c.0.s8 %v1689
    %v1691 = vlaneseq
    %v1692 = vshrl.u32 %v1691, 7
    %v1693 = vsub.s32 %v1690, %v1692
    %v1694 = vrot.slane %v1145, %v1693
    %v1696 = vunpack.c.l.s4 1985246804
    %v1697 = vunpack.c.0.s8 %v1696
    %v1698 = vlaneseq
    %v1699 = vshrl.u32 %v1698, 7
    %v1700 = vsub.s32 %v1697, %v1699
    %v1701 = vrot.slane %v1145, %v1700
    %v1703 = vunpack.c.l.s4 839922192
    %v1704 = vunpack.c.0.s8 %v1703
    %v1705 = vlaneseq
    %v1706 = vshrl.u32 %v1705, 7
    %v1707 = vsub.s32 %v1704, %v1706
    %v1708 = vrot.slane %v1148, %v1707
    %v1710 = vunpack.c.l.s4 1985246804
    %v1711 = vunpack.c.0.s8 %v1710
    %v1712 = vlaneseq
    %v1713 = vshrl.u32 %v1712, 7
    %v1714 = vsub.s32 %v1711, %v1713
    %v1715 = vrot.slane %v1148, %v1714
    %v1717 = vunpack.c.l.s4 839922192
    %v1718 = vunpack.c.0.s8 %v1717
    %v1719 = vlaneseq
    %v1720 = vshrl.u32 %v1719, 7
    %v1721 = vsub.s32 %v1718, %v1720
    %v1722 = vrot.slane %v1151, %v1721
    %v1724 = vunpack.c.l.s4 1985246804
    %v1725 = vunpack.c.0.s8 %v1724
    %v1726 = vlaneseq
    %v1727 = vshrl.u32 %v1726, 7
    %v1728 = vsub.s32 %v1725, %v1727
    %v1729 = vrot.slane %v1151, %v1728
    %v1731 = vunpack.c.l.s4 839922192
    %v1732 = vunpack.c.0.s8 %v1731
    %v1733 = vlaneseq
    %v1734 = vshrl.u32 %v1733, 7
    %v1735 = vsub.s32 %v1732, %v1734
    %v1736 = vrot.slane %v1154, %v1735
    %v1738 = vunpack.c.l.s4 1985246804
    %v1739 = vunpack.c.0.s8 %v1738
    %v1740 = vlaneseq
    %v1741 = vshrl.u32 %v1740, 7
    %v1742 = vsub.s32 %v1739, %v1741
    %v1743 = vrot.slane %v1154, %v1742
    %v1745 = vunpack.c.l.s4 839922192
    %v1746 = vunpack.c.0.s8 %v1745
    %v1747 = vlaneseq
    %v1748 = vshrl.u32 %v1747, 7
    %v1749 = vsub.s32 %v1746, %v1748
    %v1750 = vrot.slane %v1157, %v1749
    %v1752 = vunpack.c.l.s4 1985246804
    %v1753 = vunpack.c.0.s8 %v1752
    %v1754 = vlaneseq
    %v1755 = vshrl.u32 %v1754, 7
    %v1756 = vsub.s32 %v1753, %v1755
    %v1757 = vrot.slane %v1157, %v1756
    %vm1838 = vcmask 1043456
    %v1839 = vsel %vm1838, %v1204, -inf
    %v1840 = vrot.slane %v1839, 4
    %v1841 = vmax.f32 %v1839, %v1840
    %v1842 = vrot.slane %v1841, 2
    %v1843 = vmax.f32 %v1841, %v1842
    %v1844 = vrot.slane %v1843, 1
    %v1845 = vmax.f32 %v1843, %v1844
    %v1846 = vsel %vm1838, %v1211, -inf
    %v1847 = vrot.slane %v1846, 4
    %v1848 = vmax.f32 %v1846, %v1847
    %v1849 = vrot.slane %v1848, 2
    %v1850 = vmax.f32 %v1848, %v1849
    %v1851 = vrot.slane %v1850, 1
    %v1852 = vmax.f32 %v1850, %v1851
    %v1853 = vsel %vm1838, %v1218, -inf
    %v1854 = vrot.slane %v1853, 4
    %v1855 = vmax.f32 %v1853, %v1854
    %v1856 = vrot.slane %v1855, 2
    %v1857 = vmax.f32 %v1855, %v1856
    %v1858 = vrot.slane %v1857, 1
    %v1859 = vmax.f32 %v1857, %v1858
    %v1860 = vsel %vm1838, %v1225, -inf
    %v1861 = vrot.slane %v1860, 4
    %v1862 = vmax.f32 %v1860, %v1861
    %v1863 = vrot.slane %v1862, 2
    %v1864 = vmax.f32 %v1862, %v1863
    %v1865 = vrot.slane %v1864, 1
    %v1866 = vmax.f32 %v1864, %v1865
    %v1867 = vsel %vm1838, %v1232, -inf
    %v1868 = vrot.slane %v1867, 4
    %v1869 = vmax.f32 %v1867, %v1868
    %v1870 = vrot.slane %v1869, 2
    %v1871 = vmax.f32 %v1869, %v1870
    %v1872 = vrot.slane %v1871, 1
    %v1873 = vmax.f32 %v1871, %v1872
    %v1874 = vsel %vm1838, %v1239, -inf
    %v1875 = vrot.slane %v1874, 4
    %v1876 = vmax.f32 %v1874, %v1875
    %v1877 = vrot.slane %v1876, 2
    %v1878 = vmax.f32 %v1876, %v1877
    %v1879 = vrot.slane %v1878, 1
    %v1880 = vmax.f32 %v1878, %v1879
    %v1881 = vsel %vm1838, %v1246, -inf
    %v1882 = vrot.slane %v1881, 4
    %v1883 = vmax.f32 %v1881, %v1882
    %v1884 = vrot.slane %v1883, 2
    %v1885 = vmax.f32 %v1883, %v1884
    %v1886 = vrot.slane %v1885, 1
    %v1887 = vmax.f32 %v1885, %v1886
    %v1888 = vsel %vm1838, %v1253, -inf
    %v1889 = vrot.slane %v1888, 4
    %v1890 = vmax.f32 %v1888, %v1889
    %v1891 = vrot.slane %v1890, 2
    %v1892 = vmax.f32 %v1890, %v1891
    %v1893 = vrot.slane %v1892, 1
    %v1894 = vmax.f32 %v1892, %v1893
    %v1895 = vsel %vm1838, %v1260, -inf
    %v1896 = vrot.slane %v1895, 4
    %v1897 = vmax.f32 %v1895, %v1896
    %v1898 = vrot.slane %v1897, 2
    %v1899 = vmax.f32 %v1897, %v1898
    %v1900 = vrot.slane %v1899, 1
    %v1901 = vmax.f32 %v1899, %v1900
    %v1902 = vsel %vm1838, %v1267, -inf
    %v1903 = vrot.slane %v1902, 4
    %v1904 = vmax.f32 %v1902, %v1903
    %v1905 = vrot.slane %v1904, 2
    %v1906 = vmax.f32 %v1904, %v1905
    %v1907 = vrot.slane %v1906, 1
    %v1908 = vmax.f32 %v1906, %v1907
    %v1909 = vsel %vm1838, %v1274, -inf
    %v1910 = vrot.slane %v1909, 4
    %v1911 = vmax.f32 %v1909, %v1910
    %v1912 = vrot.slane %v1911, 2
    %v1913 = vmax.f32 %v1911, %v1912
    %v1914 = vrot.slane %v1913, 1
    %v1915 = vmax.f32 %v1913, %v1914
    %v1916 = vsel %vm1838, %v1281, -inf
    %v1917 = vrot.slane %v1916, 4
    %v1918 = vmax.f32 %v1916, %v1917
    %v1919 = vrot.slane %v1918, 2
    %v1920 = vmax.f32 %v1918, %v1919
    %v1921 = vrot.slane %v1920, 1
    %v1922 = vmax.f32 %v1920, %v1921
    %v1923 = vsel %vm1838, %v1288, -inf
    %v1924 = vrot.slane %v1923, 4
    %v1925 = vmax.f32 %v1923, %v1924
    %v1926 = vrot.slane %v1925, 2
    %v1927 = vmax.f32 %v1925, %v1926
    %v1928 = vrot.slane %v1927, 1
    %v1929 = vmax.f32 %v1927, %v1928
    %v1930 = vsel %vm1838, %v1295, -inf
    %v1931 = vrot.slane %v1930, 4
    %v1932 = vmax.f32 %v1930, %v1931
    %v1933 = vrot.slane %v1932, 2
    %v1934 = vmax.f32 %v1932, %v1933
    %v1935 = vrot.slane %v1934, 1
    %v1936 = vmax.f32 %v1934, %v1935
    %v1937 = vsel %vm1838, %v1302, -inf
    %v1938 = vrot.slane %v1937, 4
    %v1939 = vmax.f32 %v1937, %v1938
    %v1940 = vrot.slane %v1939, 2
    %v1941 = vmax.f32 %v1939, %v1940
    %v1942 = vrot.slane %v1941, 1
    %v1943 = vmax.f32 %v1941, %v1942
    %v1944 = vsel %vm1838, %v1309, -inf
    %v1945 = vrot.slane %v1944, 4
    %v1946 = vmax.f32 %v1944, %v1945
    %v1947 = vrot.slane %v1946, 2
    %v1948 = vmax.f32 %v1946, %v1947
    %v1949 = vrot.slane %v1948, 1
    %v1950 = vmax.f32 %v1948, %v1949
    %v1951 = vsel %vm1838, %v1316, -inf
    %v1952 = vrot.slane %v1951, 4
    %v1953 = vmax.f32 %v1951, %v1952
    %v1954 = vrot.slane %v1953, 2
    %v1955 = vmax.f32 %v1953, %v1954
    %v1956 = vrot.slane %v1955, 1
    %v1957 = vmax.f32 %v1955, %v1956
    %v1958 = vsel %vm1838, %v1323, -inf
    %v1959 = vrot.slane %v1958, 4
    %v1960 = vmax.f32 %v1958, %v1959
    %v1961 = vrot.slane %v1960, 2
    %v1962 = vmax.f32 %v1960, %v1961
    %v1963 = vrot.slane %v1962, 1
    %v1964 = vmax.f32 %v1962, %v1963
    %v1965 = vsel %vm1838, %v1330, -inf
    %v1966 = vrot.slane %v1965, 4
    %v1967 = vmax.f32 %v1965, %v1966
    %v1968 = vrot.slane %v1967, 2
    %v1969 = vmax.f32 %v1967, %v1968
    %v1970 = vrot.slane %v1969, 1
    %v1971 = vmax.f32 %v1969, %v1970
    %v1972 = vsel %vm1838, %v1337, -inf
    %v1973 = vrot.slane %v1972, 4
    %v1974 = vmax.f32 %v1972, %v1973
    %v1975 = vrot.slane %v1974, 2
    %v1976 = vmax.f32 %v1974, %v1975
    %v1977 = vrot.slane %v1976, 1
    %v1978 = vmax.f32 %v1976, %v1977
    %v1979 = vsel %vm1838, %v1344, -inf
    %v1980 = vrot.slane %v1979, 4
    %v1981 = vmax.f32 %v1979, %v1980
    %v1982 = vrot.slane %v1981, 2
    %v1983 = vmax.f32 %v1981, %v1982
    %v1984 = vrot.slane %v1983, 1
    %v1985 = vmax.f32 %v1983, %v1984
    %v1986 = vsel %vm1838, %v1351, -inf
    %v1987 = vrot.slane %v1986, 4
    %v1988 = vmax.f32 %v1986, %v1987
    %v1989 = vrot.slane %v1988, 2
    %v1990 = vmax.f32 %v1988, %v1989
    %v1991 = vrot.slane %v1990, 1
    %v1992 = vmax.f32 %v1990, %v1991
    %v1993 = vsel %vm1838, %v1358, -inf
    %v1994 = vrot.slane %v1993, 4
    %v1995 = vmax.f32 %v1993, %v1994
    %v1996 = vrot.slane %v1995, 2
    %v1997 = vmax.f32 %v1995, %v1996
    %v1998 = vrot.slane %v1997, 1
    %v1999 = vmax.f32 %v1997, %v1998
    %v2000 = vsel %vm1838, %v1365, -inf
    %v2001 = vrot.slane %v2000, 4
    %v2002 = vmax.f32 %v2000, %v2001
    %v2003 = vrot.slane %v2002, 2
    %v2004 = vmax.f32 %v2002, %v2003
    %v2005 = vrot.slane %v2004, 1
    %v2006 = vmax.f32 %v2004, %v2005
    %v2007 = vsel %vm1838, %v1372, -inf
    %v2008 = vrot.slane %v2007, 4
    %v2009 = vmax.f32 %v2007, %v2008
    %v2010 = vrot.slane %v2009, 2
    %v2011 = vmax.f32 %v2009, %v2010
    %v2012 = vrot.slane %v2011, 1
    %v2013 = vmax.f32 %v2011, %v2012
    %v2014 = vsel %vm1838, %v1379, -inf
    %v2015 = vrot.slane %v2014, 4
    %v2016 = vmax.f32 %v2014, %v2015
    %v2017 = vrot.slane %v2016, 2
    %v2018 = vmax.f32 %v2016, %v2017
    %v2019 = vrot.slane %v2018, 1
    %v2020 = vmax.f32 %v2018, %v2019
    %v2021 = vsel %vm1838, %v1386, -inf
    %v2022 = vrot.slane %v2021, 4
    %v2023 = vmax.f32 %v2021, %v2022
    %v2024 = vrot.slane %v2023, 2
    %v2025 = vmax.f32 %v2023, %v2024
    %v2026 = vrot.slane %v2025, 1
    %v2027 = vmax.f32 %v2025, %v2026
    %v2028 = vsel %vm1838, %v1393, -inf
    %v2029 = vrot.slane %v2028, 4
    %v2030 = vmax.f32 %v2028, %v2029
    %v2031 = vrot.slane %v2030, 2
    %v2032 = vmax.f32 %v2030, %v2031
    %v2033 = vrot.slane %v2032, 1
    %v2034 = vmax.f32 %v2032, %v2033
    %v2035 = vsel %vm1838, %v1400, -inf
    %v2036 = vrot.slane %v2035, 4
    %v2037 = vmax.f32 %v2035, %v2036
    %v2038 = vrot.slane %v2037, 2
    %v2039 = vmax.f32 %v2037, %v2038
    %v2040 = vrot.slane %v2039, 1
    %v2041 = vmax.f32 %v2039, %v2040
    %v2042 = vsel %vm1838, %v1407, -inf
    %v2043 = vrot.slane %v2042, 4
    %v2044 = vmax.f32 %v2042, %v2043
    %v2045 = vrot.slane %v2044, 2
    %v2046 = vmax.f32 %v2044, %v2045
    %v2047 = vrot.slane %v2046, 1
    %v2048 = vmax.f32 %v2046, %v2047
    %v2049 = vsel %vm1838, %v1414, -inf
    %v2050 = vrot.slane %v2049, 4
    %v2051 = vmax.f32 %v2049, %v2050
    %v2052 = vrot.slane %v2051, 2
    %v2053 = vmax.f32 %v2051, %v2052
    %v2054 = vrot.slane %v2053, 1
    %v2055 = vmax.f32 %v2053, %v2054
    %v2056 = vsel %vm1838, %v1421, -inf
    %v2057 = vrot.slane %v2056, 4
    %v2058 = vmax.f32 %v2056, %v2057
    %v2059 = vrot.slane %v2058, 2
    %v2060 = vmax.f32 %v2058, %v2059
    %v2061 = vrot.slane %v2060, 1
    %v2062 = vmax.f32 %v2060, %v2061
    %v2063 = vsel %vm1838, %v1428, -inf
    %v2064 = vrot.slane %v2063, 4
    %v2065 = vmax.f32 %v2063, %v2064
    %v2066 = vrot.slane %v2065, 2
    %v2067 = vmax.f32 %v2065, %v2066
    %v2068 = vrot.slane %v2067, 1
    %v2069 = vmax.f32 %v2067, %v2068
    %v2070 = vsel %vm1838, %v1435, -inf
    %v2071 = vrot.slane %v2070, 4
    %v2072 = vmax.f32 %v2070, %v2071
    %v2073 = vrot.slane %v2072, 2
    %v2074 = vmax.f32 %v2072, %v2073
    %v2075 = vrot.slane %v2074, 1
    %v2076 = vmax.f32 %v2074, %v2075
    %v2077 = vsel %vm1838, %v1442, -inf
    %v2078 = vrot.slane %v2077, 4
    %v2079 = vmax.f32 %v2077, %v2078
    %v2080 = vrot.slane %v2079, 2
    %v2081 = vmax.f32 %v2079, %v2080
    %v2082 = vrot.slane %v2081, 1
    %v2083 = vmax.f32 %v2081, %v2082
    %v2084 = vsel %vm1838, %v1449, -inf
    %v2085 = vrot.slane %v2084, 4
    %v2086 = vmax.f32 %v2084, %v2085
    %v2087 = vrot.slane %v2086, 2
    %v2088 = vmax.f32 %v2086, %v2087
    %v2089 = vrot.slane %v2088, 1
    %v2090 = vmax.f32 %v2088, %v2089
    %v2091 = vsel %vm1838, %v1456, -inf
    %v2092 = vrot.slane %v2091, 4
    %v2093 = vmax.f32 %v2091, %v2092
    %v2094 = vrot.slane %v2093, 2
    %v2095 = vmax.f32 %v2093, %v2094
    %v2096 = vrot.slane %v2095, 1
    %v2097 = vmax.f32 %v2095, %v2096
    %v2098 = vsel %vm1838, %v1463, -inf
    %v2099 = vrot.slane %v2098, 4
    %v2100 = vmax.f32 %v2098, %v2099
    %v2101 = vrot.slane %v2100, 2
    %v2102 = vmax.f32 %v2100, %v2101
    %v2103 = vrot.slane %v2102, 1
    %v2104 = vmax.f32 %v2102, %v2103
    %v2105 = vsel %vm1838, %v1470, -inf
    %v2106 = vrot.slane %v2105, 4
    %v2107 = vmax.f32 %v2105, %v2106
    %v2108 = vrot.slane %v2107, 2
    %v2109 = vmax.f32 %v2107, %v2108
    %v2110 = vrot.slane %v2109, 1
    %v2111 = vmax.f32 %v2109, %v2110
    %v2112 = vsel %vm1838, %v1477, -inf
    %v2113 = vrot.slane %v2112, 4
    %v2114 = vmax.f32 %v2112, %v2113
    %v2115 = vrot.slane %v2114, 2
    %v2116 = vmax.f32 %v2114, %v2115
    %v2117 = vrot.slane %v2116, 1
    %v2118 = vmax.f32 %v2116, %v2117
    %v2119 = vsel %vm1838, %v1484, -inf
    %v2120 = vrot.slane %v2119, 4
    %v2121 = vmax.f32 %v2119, %v2120
    %v2122 = vrot.slane %v2121, 2
    %v2123 = vmax.f32 %v2121, %v2122
    %v2124 = vrot.slane %v2123, 1
    %v2125 = vmax.f32 %v2123, %v2124
    %v2126 = vsel %vm1838, %v1491, -inf
    %v2127 = vrot.slane %v2126, 4
    %v2128 = vmax.f32 %v2126, %v2127
    %v2129 = vrot.slane %v2128, 2
    %v2130 = vmax.f32 %v2128, %v2129
    %v2131 = vrot.slane %v2130, 1
    %v2132 = vmax.f32 %v2130, %v2131
    %v2133 = vsel %vm1838, %v1498, -inf
    %v2134 = vrot.slane %v2133, 4
    %v2135 = vmax.f32 %v2133, %v2134
    %v2136 = vrot.slane %v2135, 2
    %v2137 = vmax.f32 %v2135, %v2136
    %v2138 = vrot.slane %v2137, 1
    %v2139 = vmax.f32 %v2137, %v2138
    %v2140 = vsel %vm1838, %v1505, -inf
    %v2141 = vrot.slane %v2140, 4
    %v2142 = vmax.f32 %v2140, %v2141
    %v2143 = vrot.slane %v2142, 2
    %v2144 = vmax.f32 %v2142, %v2143
    %v2145 = vrot.slane %v2144, 1
    %v2146 = vmax.f32 %v2144, %v2145
    %v2147 = vsel %vm1838, %v1512, -inf
    %v2148 = vrot.slane %v2147, 4
    %v2149 = vmax.f32 %v2147, %v2148
    %v2150 = vrot.slane %v2149, 2
    %v2151 = vmax.f32 %v2149, %v2150
    %v2152 = vrot.slane %v2151, 1
    %v2153 = vmax.f32 %v2151, %v2152
    %v2154 = vsel %vm1838, %v1519, -inf
    %v2155 = vrot.slane %v2154, 4
    %v2156 = vmax.f32 %v2154, %v2155
    %v2157 = vrot.slane %v2156, 2
    %v2158 = vmax.f32 %v2156, %v2157
    %v2159 = vrot.slane %v2158, 1
    %v2160 = vmax.f32 %v2158, %v2159
    %v2161 = vsel %vm1838, %v1526, -inf
    %v2162 = vrot.slane %v2161, 4
    %v2163 = vmax.f32 %v2161, %v2162
    %v2164 = vrot.slane %v2163, 2
    %v2165 = vmax.f32 %v2163, %v2164
    %v2166 = vrot.slane %v2165, 1
    %v2167 = vmax.f32 %v2165, %v2166
    %v2168 = vsel %vm1838, %v1533, -inf
    %v2169 = vrot.slane %v2168, 4
    %v2170 = vmax.f32 %v2168, %v2169
    %v2171 = vrot.slane %v2170, 2
    %v2172 = vmax.f32 %v2170, %v2171
    %v2173 = vrot.slane %v2172, 1
    %v2174 = vmax.f32 %v2172, %v2173
    %v2175 = vsel %vm1838, %v1540, -inf
    %v2176 = vrot.slane %v2175, 4
    %v2177 = vmax.f32 %v2175, %v2176
    %v2178 = vrot.slane %v2177, 2
    %v2179 = vmax.f32 %v2177, %v2178
    %v2180 = vrot.slane %v2179, 1
    %v2181 = vmax.f32 %v2179, %v2180
    %v2182 = vsel %vm1838, %v1547, -inf
    %v2183 = vrot.slane %v2182, 4
    %v2184 = vmax.f32 %v2182, %v2183
    %v2185 = vrot.slane %v2184, 2
    %v2186 = vmax.f32 %v2184, %v2185
    %v2187 = vrot.slane %v2186, 1
    %v2188 = vmax.f32 %v2186, %v2187
    %v2189 = vsel %vm1838, %v1554, -inf
    %v2190 = vrot.slane %v2189, 4
    %v2191 = vmax.f32 %v2189, %v2190
    %v2192 = vrot.slane %v2191, 2
    %v2193 = vmax.f32 %v2191, %v2192
    %v2194 = vrot.slane %v2193, 1
    %v2195 = vmax.f32 %v2193, %v2194
    %v2196 = vsel %vm1838, %v1561, -inf
    %v2197 = vrot.slane %v2196, 4
    %v2198 = vmax.f32 %v2196, %v2197
    %v2199 = vrot.slane %v2198, 2
    %v2200 = vmax.f32 %v2198, %v2199
    %v2201 = vrot.slane %v2200, 1
    %v2202 = vmax.f32 %v2200, %v2201
    %v2203 = vsel %vm1838, %v1568, -inf
    %v2204 = vrot.slane %v2203, 4
    %v2205 = vmax.f32 %v2203, %v2204
    %v2206 = vrot.slane %v2205, 2
    %v2207 = vmax.f32 %v2205, %v2206
    %v2208 = vrot.slane %v2207, 1
    %v2209 = vmax.f32 %v2207, %v2208
    %v2210 = vsel %vm1838, %v1575, -inf
    %v2211 = vrot.slane %v2210, 4
    %v2212 = vmax.f32 %v2210, %v2211
    %v2213 = vrot.slane %v2212, 2
    %v2214 = vmax.f32 %v2212, %v2213
    %v2215 = vrot.slane %v2214, 1
    %v2216 = vmax.f32 %v2214, %v2215
    %v2217 = vsel %vm1838, %v1582, -inf
    %v2218 = vrot.slane %v2217, 4
    %v2219 = vmax.f32 %v2217, %v2218
    %v2220 = vrot.slane %v2219, 2
    %v2221 = vmax.f32 %v2219, %v2220
    %v2222 = vrot.slane %v2221, 1
    %v2223 = vmax.f32 %v2221, %v2222
    %v2224 = vsel %vm1838, %v1589, -inf
    %v2225 = vrot.slane %v2224, 4
    %v2226 = vmax.f32 %v2224, %v2225
    %v2227 = vrot.slane %v2226, 2
    %v2228 = vmax.f32 %v2226, %v2227
    %v2229 = vrot.slane %v2228, 1
    %v2230 = vmax.f32 %v2228, %v2229
    %v2231 = vsel %vm1838, %v1596, -inf
    %v2232 = vrot.slane %v2231, 4
    %v2233 = vmax.f32 %v2231, %v2232
    %v2234 = vrot.slane %v2233, 2
    %v2235 = vmax.f32 %v2233, %v2234
    %v2236 = vrot.slane %v2235, 1
    %v2237 = vmax.f32 %v2235, %v2236
    %v2238 = vsel %vm1838, %v1603, -inf
    %v2239 = vrot.slane %v2238, 4
    %v2240 = vmax.f32 %v2238, %v2239
    %v2241 = vrot.slane %v2240, 2
    %v2242 = vmax.f32 %v2240, %v2241
    %v2243 = vrot.slane %v2242, 1
    %v2244 = vmax.f32 %v2242, %v2243
    %v2245 = vsel %vm1838, %v1610, -inf
    %v2246 = vrot.slane %v2245, 4
    %v2247 = vmax.f32 %v2245, %v2246
    %v2248 = vrot.slane %v2247, 2
    %v2249 = vmax.f32 %v2247, %v2248
    %v2250 = vrot.slane %v2249, 1
    %v2251 = vmax.f32 %v2249, %v2250
    %v2252 = vsel %vm1838, %v1617, -inf
    %v2253 = vrot.slane %v2252, 4
    %v2254 = vmax.f32 %v2252, %v2253
    %v2255 = vrot.slane %v2254, 2
    %v2256 = vmax.f32 %v2254, %v2255
    %v2257 = vrot.slane %v2256, 1
    %v2258 = vmax.f32 %v2256, %v2257
    %v2259 = vsel %vm1838, %v1624, -inf
    %v2260 = vrot.slane %v2259, 4
    %v2261 = vmax.f32 %v2259, %v2260
    %v2262 = vrot.slane %v2261, 2
    %v2263 = vmax.f32 %v2261, %v2262
    %v2264 = vrot.slane %v2263, 1
    %v2265 = vmax.f32 %v2263, %v2264
    %v2266 = vsel %vm1838, %v1631, -inf
    %v2267 = vrot.slane %v2266, 4
    %v2268 = vmax.f32 %v2266, %v2267
    %v2269 = vrot.slane %v2268, 2
    %v2270 = vmax.f32 %v2268, %v2269
    %v2271 = vrot.slane %v2270, 1
    %v2272 = vmax.f32 %v2270, %v2271
    %v2273 = vsel %vm1838, %v1638, -inf
    %v2274 = vrot.slane %v2273, 4
    %v2275 = vmax.f32 %v2273, %v2274
    %v2276 = vrot.slane %v2275, 2
    %v2277 = vmax.f32 %v2275, %v2276
    %v2278 = vrot.slane %v2277, 1
    %v2279 = vmax.f32 %v2277, %v2278
    %v2280 = vsel %vm1838, %v1645, -inf
    %v2281 = vrot.slane %v2280, 4
    %v2282 = vmax.f32 %v2280, %v2281
    %v2283 = vrot.slane %v2282, 2
    %v2284 = vmax.f32 %v2282, %v2283
    %v2285 = vrot.slane %v2284, 1
    %v2286 = vmax.f32 %v2284, %v2285
    %v2287 = vsel %vm1838, %v1652, -inf
    %v2288 = vrot.slane %v2287, 4
    %v2289 = vmax.f32 %v2287, %v2288
    %v2290 = vrot.slane %v2289, 2
    %v2291 = vmax.f32 %v2289, %v2290
    %v2292 = vrot.slane %v2291, 1
    %v2293 = vmax.f32 %v2291, %v2292
    %v2294 = vsel %vm1838, %v1659, -inf
    %v2295 = vrot.slane %v2294, 4
    %v2296 = vmax.f32 %v2294, %v2295
    %v2297 = vrot.slane %v2296, 2
    %v2298 = vmax.f32 %v2296, %v2297
    %v2299 = vrot.slane %v2298, 1
    %v2300 = vmax.f32 %v2298, %v2299
    %v2301 = vsel %vm1838, %v1666, -inf
    %v2302 = vrot.slane %v2301, 4
    %v2303 = vmax.f32 %v2301, %v2302
    %v2304 = vrot.slane %v2303, 2
    %v2305 = vmax.f32 %v2303, %v2304
    %v2306 = vrot.slane %v2305, 1
    %v2307 = vmax.f32 %v2305, %v2306
    %v2308 = vsel %vm1838, %v1673, -inf
    %v2309 = vrot.slane %v2308, 4
    %v2310 = vmax.f32 %v2308, %v2309
    %v2311 = vrot.slane %v2310, 2
    %v2312 = vmax.f32 %v2310, %v2311
    %v2313 = vrot.slane %v2312, 1
    %v2314 = vmax.f32 %v2312, %v2313
    %v2315 = vsel %vm1838, %v1680, -inf
    %v2316 = vrot.slane %v2315, 4
    %v2317 = vmax.f32 %v2315, %v2316
    %v2318 = vrot.slane %v2317, 2
    %v2319 = vmax.f32 %v2317, %v2318
    %v2320 = vrot.slane %v2319, 1
    %v2321 = vmax.f32 %v2319, %v2320
    %v2322 = vsel %vm1838, %v1687, -inf
    %v2323 = vrot.slane %v2322, 4
    %v2324 = vmax.f32 %v2322, %v2323
    %v2325 = vrot.slane %v2324, 2
    %v2326 = vmax.f32 %v2324, %v2325
    %v2327 = vrot.slane %v2326, 1
    %v2328 = vmax.f32 %v2326, %v2327
    %v2329 = vsel %vm1838, %v1694, -inf
    %v2330 = vrot.slane %v2329, 4
    %v2331 = vmax.f32 %v2329, %v2330
    %v2332 = vrot.slane %v2331, 2
    %v2333 = vmax.f32 %v2331, %v2332
    %v2334 = vrot.slane %v2333, 1
    %v2335 = vmax.f32 %v2333, %v2334
    %v2336 = vsel %vm1838, %v1701, -inf
    %v2337 = vrot.slane %v2336, 4
    %v2338 = vmax.f32 %v2336, %v2337
    %v2339 = vrot.slane %v2338, 2
    %v2340 = vmax.f32 %v2338, %v2339
    %v2341 = vrot.slane %v2340, 1
    %v2342 = vmax.f32 %v2340, %v2341
    %v2343 = vsel %vm1838, %v1708, -inf
    %v2344 = vrot.slane %v2343, 4
    %v2345 = vmax.f32 %v2343, %v2344
    %v2346 = vrot.slane %v2345, 2
    %v2347 = vmax.f32 %v2345, %v2346
    %v2348 = vrot.slane %v2347, 1
    %v2349 = vmax.f32 %v2347, %v2348
    %v2350 = vsel %vm1838, %v1715, -inf
    %v2351 = vrot.slane %v2350, 4
    %v2352 = vmax.f32 %v2350, %v2351
    %v2353 = vrot.slane %v2352, 2
    %v2354 = vmax.f32 %v2352, %v2353
    %v2355 = vrot.slane %v2354, 1
    %v2356 = vmax.f32 %v2354, %v2355
    %v2357 = vsel %vm1838, %v1722, -inf
    %v2358 = vrot.slane %v2357, 4
    %v2359 = vmax.f32 %v2357, %v2358
    %v2360 = vrot.slane %v2359, 2
    %v2361 = vmax.f32 %v2359, %v2360
    %v2362 = vrot.slane %v2361, 1
    %v2363 = vmax.f32 %v2361, %v2362
    %v2364 = vsel %vm1838, %v1729, -inf
    %v2365 = vrot.slane %v2364, 4
    %v2366 = vmax.f32 %v2364, %v2365
    %v2367 = vrot.slane %v2366, 2
    %v2368 = vmax.f32 %v2366, %v2367
    %v2369 = vrot.slane %v2368, 1
    %v2370 = vmax.f32 %v2368, %v2369
    %v2371 = vsel %vm1838, %v1736, -inf
    %v2372 = vrot.slane %v2371, 4
    %v2373 = vmax.f32 %v2371, %v2372
    %v2374 = vrot.slane %v2373, 2
    %v2375 = vmax.f32 %v2373, %v2374
    %v2376 = vrot.slane %v2375, 1
    %v2377 = vmax.f32 %v2375, %v2376
    %v2378 = vsel %vm1838, %v1743, -inf
    %v2379 = vrot.slane %v2378, 4
    %v2380 = vmax.f32 %v2378, %v2379
    %v2381 = vrot.slane %v2380, 2
    %v2382 = vmax.f32 %v2380, %v2381
    %v2383 = vrot.slane %v2382, 1
    %v2384 = vmax.f32 %v2382, %v2383
    %v2385 = vsel %vm1838, %v1750, -inf
    %v2386 = vrot.slane %v2385, 4
    %v2387 = vmax.f32 %v2385, %v2386
    %v2388 = vrot.slane %v2387, 2
    %v2389 = vmax.f32 %v2387, %v2388
    %v2390 = vrot.slane %v2389, 1
    %v2391 = vmax.f32 %v2389, %v2390
    %v2392 = vsel %vm1838, %v1757, -inf
    %v2393 = vrot.slane %v2392, 4
    %v2394 = vmax.f32 %v2392, %v2393
    %v2395 = vrot.slane %v2394, 2
    %v2396 = vmax.f32 %v2394, %v2395
    %v2397 = vrot.slane %v2396, 1
    %v2398 = vmax.f32 %v2396, %v2397
    %v2399 = vsub.f32 %v1204, %v1845
    %v2400 = vsub.f32 %v1211, %v1852
    %v2401 = vsub.f32 %v1218, %v1859
    %v2402 = vsub.f32 %v1225, %v1866
    %v2403 = vsub.f32 %v1232, %v1873
    %v2404 = vsub.f32 %v1239, %v1880
    %v2405 = vsub.f32 %v1246, %v1887
    %v2406 = vsub.f32 %v1253, %v1894
    %v2407 = vsub.f32 %v1260, %v1901
    %v2408 = vsub.f32 %v1267, %v1908
    %v2409 = vsub.f32 %v1274, %v1915
    %v2410 = vsub.f32 %v1281, %v1922
    %v2411 = vsub.f32 %v1288, %v1929
    %v2412 = vsub.f32 %v1295, %v1936
    %v2413 = vsub.f32 %v1302, %v1943
    %v2414 = vsub.f32 %v1309, %v1950
    %v2415 = vsub.f32 %v1316, %v1957
    %v2416 = vsub.f32 %v1323, %v1964
    %v2417 = vsub.f32 %v1330, %v1971
    %v2418 = vsub.f32 %v1337, %v1978
    %v2419 = vsub.f32 %v1344, %v1985
    %v2420 = vsub.f32 %v1351, %v1992
    %v2421 = vsub.f32 %v1358, %v1999
    %v2422 = vsub.f32 %v1365, %v2006
    %v2423 = vsub.f32 %v1372, %v2013
    %v2424 = vsub.f32 %v1379, %v2020
    %v2425 = vsub.f32 %v1386, %v2027
    %v2426 = vsub.f32 %v1393, %v2034
    %v2427 = vsub.f32 %v1400, %v2041
    %v2428 = vsub.f32 %v1407, %v2048
    %v2429 = vsub.f32 %v1414, %v2055
    %v2430 = vsub.f32 %v1421, %v2062
    %v2431 = vsub.f32 %v1428, %v2069
    %v2432 = vsub.f32 %v1435, %v2076
    %v2433 = vsub.f32 %v1442, %v2083
    %v2434 = vsub.f32 %v1449, %v2090
    %v2435 = vsub.f32 %v1456, %v2097
    %v2436 = vsub.f32 %v1463, %v2104
    %v2437 = vsub.f32 %v1470, %v2111
    %v2438 = vsub.f32 %v1477, %v2118
    %v2439 = vsub.f32 %v1484, %v2125
    %v2440 = vsub.f32 %v1491, %v2132
    %v2441 = vsub.f32 %v1498, %v2139
    %v2442 = vsub.f32 %v1505, %v2146
    %v2443 = vsub.f32 %v1512, %v2153
    %v2444 = vsub.f32 %v1519, %v2160
    %v2445 = vsub.f32 %v1526, %v2167
    %v2446 = vsub.f32 %v1533, %v2174
    %v2447 = vsub.f32 %v1540, %v2181
    %v2448 = vsub.f32 %v1547, %v2188
    %v2449 = vsub.f32 %v1554, %v2195
    %v2450 = vsub.f32 %v1561, %v2202
    %v2451 = vsub.f32 %v1568, %v2209
    %v2452 = vsub.f32 %v1575, %v2216
    %v2453 = vsub.f32 %v1582, %v2223
    %v2454 = vsub.f32 %v1589, %v2230
    %v2455 = vsub.f32 %v1596, %v2237
    %v2456 = vsub.f32 %v1603, %v2244
    %v2457 = vsub.f32 %v1610, %v2251
    %v2458 = vsub.f32 %v1617, %v2258
    %v2459 = vsub.f32 %v1624, %v2265
    %v2460 = vsub.f32 %v1631, %v2272
    %v2461 = vsub.f32 %v1638, %v2279
    %v2462 = vsub.f32 %v1645, %v2286
    %v2463 = vsub.f32 %v1652, %v2293
    %v2464 = vsub.f32 %v1659, %v2300
    %v2465 = vsub.f32 %v1666, %v2307
    %v2466 = vsub.f32 %v1673, %v2314
    %v2467 = vsub.f32 %v1680, %v2321
    %v2468 = vsub.f32 %v1687, %v2328
    %v2469 = vsub.f32 %v1694, %v2335
    %v2470 = vsub.f32 %v1701, %v2342
    %v2471 = vsub.f32 %v1708, %v2349
    %v2472 = vsub.f32 %v1715, %v2356
    %v2473 = vsub.f32 %v1722, %v2363
    %v2474 = vsub.f32 %v1729, %v2370
    %v2475 = vsub.f32 %v1736, %v2377
    %v2476 = vsub.f32 %v1743, %v2384
    %v2477 = vsub.f32 %v1750, %v2391
    %v2478 = vsub.f32 %v1757, %v2398
    %v2479 = vmul.f32 %v2399, 1.442695
    %v2480 = vpow.pop %v2479
    %v2481 = vmul.f32 %v2400, 1.442695
    %v2482 = vpow.pop %v2481
    %v2483 = vmul.f32 %v2401, 1.442695
    %v2484 = vpow.pop %v2483
    %v2485 = vmul.f32 %v2402, 1.442695
    %v2486 = vpow.pop %v2485
    %v2487 = vmul.f32 %v2403, 1.442695
    %v2488 = vpow.pop %v2487
    %v2489 = vmul.f32 %v2404, 1.442695
    %v2490 = vpow.pop %v2489
    %v2491 = vmul.f32 %v2405, 1.442695
    %v2492 = vpow.pop %v2491
    %v2493 = vmul.f32 %v2406, 1.442695
    %v2494 = vpow.pop %v2493
    %v2495 = vmul.f32 %v2407, 1.442695
    %v2496 = vpow.pop %v2495
    %v2497 = vmul.f32 %v2408, 1.442695
    %v2498 = vpow.pop %v2497
    %v2499 = vmul.f32 %v2409, 1.442695
    %v2500 = vpow.pop %v2499
    %v2501 = vmul.f32 %v2410, 1.442695
    %v2502 = vpow.pop %v2501
    %v2503 = vmul.f32 %v2411, 1.442695
    %v2504 = vpow.pop %v2503
    %v2505 = vmul.f32 %v2412, 1.442695
    %v2506 = vpow.pop %v2505
    %v2507 = vmul.f32 %v2413, 1.442695
    %v2508 = vpow.pop %v2507
    %v2509 = vmul.f32 %v2414, 1.442695
    %v2510 = vpow.pop %v2509
    %v2511 = vmul.f32 %v2415, 1.442695
    %v2512 = vpow.pop %v2511
    %v2513 = vmul.f32 %v2416, 1.442695
    %v2514 = vpow.pop %v2513
    %v2515 = vmul.f32 %v2417, 1.442695
    %v2516 = vpow.pop %v2515
    %v2517 = vmul.f32 %v2418, 1.442695
    %v2518 = vpow.pop %v2517
    %v2519 = vmul.f32 %v2419, 1.442695
    %v2520 = vpow.pop %v2519
    %v2521 = vmul.f32 %v2420, 1.442695
    %v2522 = vpow.pop %v2521
    %v2523 = vmul.f32 %v2421, 1.442695
    %v2524 = vpow.pop %v2523
    %v2525 = vmul.f32 %v2422, 1.442695
    %v2526 = vpow.pop %v2525
    %v2527 = vmul.f32 %v2423, 1.442695
    %v2528 = vpow.pop %v2527
    %v2529 = vmul.f32 %v2424, 1.442695
    %v2530 = vpow.pop %v2529
    %v2531 = vmul.f32 %v2425, 1.442695
    %v2532 = vpow.pop %v2531
    %v2533 = vmul.f32 %v2426, 1.442695
    %v2534 = vpow.pop %v2533
    %v2535 = vmul.f32 %v2427, 1.442695
    %v2536 = vpow.pop %v2535
    %v2537 = vmul.f32 %v2428, 1.442695
    %v2538 = vpow.pop %v2537
    %v2539 = vmul.f32 %v2429, 1.442695
    %v2540 = vpow.pop %v2539
    %v2541 = vmul.f32 %v2430, 1.442695
    %v2542 = vpow.pop %v2541
    %v2543 = vmul.f32 %v2431, 1.442695
    %v2544 = vpow.pop %v2543
    %v2545 = vmul.f32 %v2432, 1.442695
    %v2546 = vpow.pop %v2545
    %v2547 = vmul.f32 %v2433, 1.442695
    %v2548 = vpow.pop %v2547
    %v2549 = vmul.f32 %v2434, 1.442695
    %v2550 = vpow.pop %v2549
    %v2551 = vmul.f32 %v2435, 1.442695
    %v2552 = vpow.pop %v2551
    %v2553 = vmul.f32 %v2436, 1.442695
    %v2554 = vpow.pop %v2553
    %v2555 = vmul.f32 %v2437, 1.442695
    %v2556 = vpow.pop %v2555
    %v2557 = vmul.f32 %v2438, 1.442695
    %v2558 = vpow.pop %v2557
    %v2559 = vmul.f32 %v2439, 1.442695
    %v2560 = vpow.pop %v2559
    %v2561 = vmul.f32 %v2440, 1.442695
    %v2562 = vpow.pop %v2561
    %v2563 = vmul.f32 %v2441, 1.442695
    %v2564 = vpow.pop %v2563
    %v2565 = vmul.f32 %v2442, 1.442695
    %v2566 = vpow.pop %v2565
    %v2567 = vmul.f32 %v2443, 1.442695
    %v2568 = vpow.pop %v2567
    %v2569 = vmul.f32 %v2444, 1.442695
    %v2570 = vpow.pop %v2569
    %v2571 = vmul.f32 %v2445, 1.442695
    %v2572 = vpow.pop %v2571
    %v2573 = vmul.f32 %v2446, 1.442695
    %v2574 = vpow.pop %v2573
    %v2575 = vmul.f32 %v2447, 1.442695
    %v2576 = vpow.pop %v2575
    %v2577 = vmul.f32 %v2448, 1.442695
    %v2578 = vpow.pop %v2577
    %v2579 = vmul.f32 %v2449, 1.442695
    %v2580 = vpow.pop %v2579
    %v2581 = vmul.f32 %v2450, 1.442695
    %v2582 = vpow.pop %v2581
    %v2583 = vmul.f32 %v2451, 1.442695
    %v2584 = vpow.pop %v2583
    %v2585 = vmul.f32 %v2452, 1.442695
    %v2586 = vpow.pop %v2585
    %v2587 = vmul.f32 %v2453, 1.442695
    %v2588 = vpow.pop %v2587
    %v2589 = vmul.f32 %v2454, 1.442695
    %v2590 = vpow.pop %v2589
    %v2591 = vmul.f32 %v2455, 1.442695
    %v2592 = vpow.pop %v2591
    %v2593 = vmul.f32 %v2456, 1.442695
    %v2594 = vpow.pop %v2593
    %v2595 = vmul.f32 %v2457, 1.442695
    %v2596 = vpow.pop %v2595
    %v2597 = vmul.f32 %v2458, 1.442695
    %v2598 = vpow.pop %v2597
    %v2599 = vmul.f32 %v2459, 1.442695
    %v2600 = vpow.pop %v2599
    %v2601 = vmul.f32 %v2460, 1.442695
    %v2602 = vpow.pop %v2601
    %v2603 = vmul.f32 %v2461, 1.442695
    %v2604 = vpow.pop %v2603
    %v2605 = vmul.f32 %v2462, 1.442695
    %v2606 = vpow.pop %v2605
    %v2607 = vmul.f32 %v2463, 1.442695
    %v2608 = vpow.pop %v2607
    %v2609 = vmul.f32 %v2464, 1.442695
    %v2610 = vpow.pop %v2609
    %v2611 = vmul.f32 %v2465, 1.442695
    %v2612 = vpow.pop %v2611
    %v2613 = vmul.f32 %v2466, 1.442695
    %v2614 = vpow.pop %v2613
    %v2615 = vmul.f32 %v2467, 1.442695
    %v2616 = vpow.pop %v2615
    %v2617 = vmul.f32 %v2468, 1.442695
    %v2618 = vpow.pop %v2617
    %v2619 = vmul.f32 %v2469, 1.442695
    %v2620 = vpow.pop %v2619
    %v2621 = vmul.f32 %v2470, 1.442695
    %v2622 = vpow.pop %v2621
    %v2623 = vmul.f32 %v2471, 1.442695
    %v2624 = vpow.pop %v2623
    %v2625 = vmul.f32 %v2472, 1.442695
    %v2626 = vpow.pop %v2625
    %v2627 = vmul.f32 %v2473, 1.442695
    %v2628 = vpow.pop %v2627
    %v2629 = vmul.f32 %v2474, 1.442695
    %v2630 = vpow.pop %v2629
    %v2631 = vmul.f32 %v2475, 1.442695
    %v2632 = vpow.pop %v2631
    %v2633 = vmul.f32 %v2476, 1.442695
    %v2634 = vpow.pop %v2633
    %v2635 = vmul.f32 %v2477, 1.442695
    %v2636 = vpow.pop %v2635
    %v2637 = vmul.f32 %v2478, 1.442695
    %v2638 = vpow.pop %v2637
    %v2639 = vsel %vm1838, %v2480, 0.0
    %v2640 = vrot.slane %v2639, 4
    %v2641 = vadd.f32 %v2639, %v2640
    %v2642 = vrot.slane %v2641, 2
    %v2643 = vadd.f32 %v2641, %v2642
    %v2644 = vrot.slane %v2643, 1
    %v2645 = vadd.f32 %v2643, %v2644
    %v2646 = vsel %vm1838, %v2482, 0.0
    %v2647 = vrot.slane %v2646, 4
    %v2648 = vadd.f32 %v2646, %v2647
    %v2649 = vrot.slane %v2648, 2
    %v2650 = vadd.f32 %v2648, %v2649
    %v2651 = vrot.slane %v2650, 1
    %v2652 = vadd.f32 %v2650, %v2651
    %v2653 = vsel %vm1838, %v2484, 0.0
    %v2654 = vrot.slane %v2653, 4
    %v2655 = vadd.f32 %v2653, %v2654
    %v2656 = vrot.slane %v2655, 2
    %v2657 = vadd.f32 %v2655, %v2656
    %v2658 = vrot.slane %v2657, 1
    %v2659 = vadd.f32 %v2657, %v2658
    %v2660 = vsel %vm1838, %v2486, 0.0
    %v2661 = vrot.slane %v2660, 4
    %v2662 = vadd.f32 %v2660, %v2661
    %v2663 = vrot.slane %v2662, 2
    %v2664 = vadd.f32 %v2662, %v2663
    %v2665 = vrot.slane %v2664, 1
    %v2666 = vadd.f32 %v2664, %v2665
    %v2667 = vsel %vm1838, %v2488, 0.0
    %v2668 = vrot.slane %v2667, 4
    %v2669 = vadd.f32 %v2667, %v2668
    %v2670 = vrot.slane %v2669, 2
    %v2671 = vadd.f32 %v2669, %v2670
    %v2672 = vrot.slane %v2671, 1
    %v2673 = vadd.f32 %v2671, %v2672
    %v2674 = vsel %vm1838, %v2490, 0.0
    %v2675 = vrot.slane %v2674, 4
    %v2676 = vadd.f32 %v2674, %v2675
    %v2677 = vrot.slane %v2676, 2
    %v2678 = vadd.f32 %v2676, %v2677
    %v2679 = vrot.slane %v2678, 1
    %v2680 = vadd.f32 %v2678, %v2679
    %v2681 = vsel %vm1838, %v2492, 0.0
    %v2682 = vrot.slane %v2681, 4
    %v2683 = vadd.f32 %v2681, %v2682
    %v2684 = vrot.slane %v2683, 2
    %v2685 = vadd.f32 %v2683, %v2684
    %v2686 = vrot.slane %v2685, 1
    %v2687 = vadd.f32 %v2685, %v2686
    %v2688 = vsel %vm1838, %v2494, 0.0
    %v2689 = vrot.slane %v2688, 4
    %v2690 = vadd.f32 %v2688, %v2689
    %v2691 = vrot.slane %v2690, 2
    %v2692 = vadd.f32 %v2690, %v2691
    %v2693 = vrot.slane %v2692, 1
    %v2694 = vadd.f32 %v2692, %v2693
    %v2695 = vsel %vm1838, %v2496, 0.0
    %v2696 = vrot.slane %v2695, 4
    %v2697 = vadd.f32 %v2695, %v2696
    %v2698 = vrot.slane %v2697, 2
    %v2699 = vadd.f32 %v2697, %v2698
    %v2700 = vrot.slane %v2699, 1
    %v2701 = vadd.f32 %v2699, %v2700
    %v2702 = vsel %vm1838, %v2498, 0.0
    %v2703 = vrot.slane %v2702, 4
    %v2704 = vadd.f32 %v2702, %v2703
    %v2705 = vrot.slane %v2704, 2
    %v2706 = vadd.f32 %v2704, %v2705
    %v2707 = vrot.slane %v2706, 1
    %v2708 = vadd.f32 %v2706, %v2707
    %v2709 = vsel %vm1838, %v2500, 0.0
    %v2710 = vrot.slane %v2709, 4
    %v2711 = vadd.f32 %v2709, %v2710
    %v2712 = vrot.slane %v2711, 2
    %v2713 = vadd.f32 %v2711, %v2712
    %v2714 = vrot.slane %v2713, 1
    %v2715 = vadd.f32 %v2713, %v2714
    %v2716 = vsel %vm1838, %v2502, 0.0
    %v2717 = vrot.slane %v2716, 4
    %v2718 = vadd.f32 %v2716, %v2717
    %v2719 = vrot.slane %v2718, 2
    %v2720 = vadd.f32 %v2718, %v2719
    %v2721 = vrot.slane %v2720, 1
    %v2722 = vadd.f32 %v2720, %v2721
    %v2723 = vsel %vm1838, %v2504, 0.0
    %v2724 = vrot.slane %v2723, 4
    %v2725 = vadd.f32 %v2723, %v2724
    %v2726 = vrot.slane %v2725, 2
    %v2727 = vadd.f32 %v2725, %v2726
    %v2728 = vrot.slane %v2727, 1
    %v2729 = vadd.f32 %v2727, %v2728
    %v2730 = vsel %vm1838, %v2506, 0.0
    %v2731 = vrot.slane %v2730, 4
    %v2732 = vadd.f32 %v2730, %v2731
    %v2733 = vrot.slane %v2732, 2
    %v2734 = vadd.f32 %v2732, %v2733
    %v2735 = vrot.slane %v2734, 1
    %v2736 = vadd.f32 %v2734, %v2735
    %v2737 = vsel %vm1838, %v2508, 0.0
    %v2738 = vrot.slane %v2737, 4
    %v2739 = vadd.f32 %v2737, %v2738
    %v2740 = vrot.slane %v2739, 2
    %v2741 = vadd.f32 %v2739, %v2740
    %v2742 = vrot.slane %v2741, 1
    %v2743 = vadd.f32 %v2741, %v2742
    %v2744 = vsel %vm1838, %v2510, 0.0
    %v2745 = vrot.slane %v2744, 4
    %v2746 = vadd.f32 %v2744, %v2745
    %v2747 = vrot.slane %v2746, 2
    %v2748 = vadd.f32 %v2746, %v2747
    %v2749 = vrot.slane %v2748, 1
    %v2750 = vadd.f32 %v2748, %v2749
    %v2751 = vsel %vm1838, %v2512, 0.0
    %v2752 = vrot.slane %v2751, 4
    %v2753 = vadd.f32 %v2751, %v2752
    %v2754 = vrot.slane %v2753, 2
    %v2755 = vadd.f32 %v2753, %v2754
    %v2756 = vrot.slane %v2755, 1
    %v2757 = vadd.f32 %v2755, %v2756
    %v2758 = vsel %vm1838, %v2514, 0.0
    %v2759 = vrot.slane %v2758, 4
    %v2760 = vadd.f32 %v2758, %v2759
    %v2761 = vrot.slane %v2760, 2
    %v2762 = vadd.f32 %v2760, %v2761
    %v2763 = vrot.slane %v2762, 1
    %v2764 = vadd.f32 %v2762, %v2763
    %v2765 = vsel %vm1838, %v2516, 0.0
    %v2766 = vrot.slane %v2765, 4
    %v2767 = vadd.f32 %v2765, %v2766
    %v2768 = vrot.slane %v2767, 2
    %v2769 = vadd.f32 %v2767, %v2768
    %v2770 = vrot.slane %v2769, 1
    %v2771 = vadd.f32 %v2769, %v2770
    %v2772 = vsel %vm1838, %v2518, 0.0
    %v2773 = vrot.slane %v2772, 4
    %v2774 = vadd.f32 %v2772, %v2773
    %v2775 = vrot.slane %v2774, 2
    %v2776 = vadd.f32 %v2774, %v2775
    %v2777 = vrot.slane %v2776, 1
    %v2778 = vadd.f32 %v2776, %v2777
    %v2779 = vsel %vm1838, %v2520, 0.0
    %v2780 = vrot.slane %v2779, 4
    %v2781 = vadd.f32 %v2779, %v2780
    %v2782 = vrot.slane %v2781, 2
    %v2783 = vadd.f32 %v2781, %v2782
    %v2784 = vrot.slane %v2783, 1
    %v2785 = vadd.f32 %v2783, %v2784
    %v2786 = vsel %vm1838, %v2522, 0.0
    %v2787 = vrot.slane %v2786, 4
    %v2788 = vadd.f32 %v2786, %v2787
    %v2789 = vrot.slane %v2788, 2
    %v2790 = vadd.f32 %v2788, %v2789
    %v2791 = vrot.slane %v2790, 1
    %v2792 = vadd.f32 %v2790, %v2791
    %v2793 = vsel %vm1838, %v2524, 0.0
    %v2794 = vrot.slane %v2793, 4
    %v2795 = vadd.f32 %v2793, %v2794
    %v2796 = vrot.slane %v2795, 2
    %v2797 = vadd.f32 %v2795, %v2796
    %v2798 = vrot.slane %v2797, 1
    %v2799 = vadd.f32 %v2797, %v2798
    %v2800 = vsel %vm1838, %v2526, 0.0
    %v2801 = vrot.slane %v2800, 4
    %v2802 = vadd.f32 %v2800, %v2801
    %v2803 = vrot.slane %v2802, 2
    %v2804 = vadd.f32 %v2802, %v2803
    %v2805 = vrot.slane %v2804, 1
    %v2806 = vadd.f32 %v2804, %v2805
    %v2807 = vsel %vm1838, %v2528, 0.0
    %v2808 = vrot.slane %v2807, 4
    %v2809 = vadd.f32 %v2807, %v2808
    %v2810 = vrot.slane %v2809, 2
    %v2811 = vadd.f32 %v2809, %v2810
    %v2812 = vrot.slane %v2811, 1
    %v2813 = vadd.f32 %v2811, %v2812
    %v2814 = vsel %vm1838, %v2530, 0.0
    %v2815 = vrot.slane %v2814, 4
    %v2816 = vadd.f32 %v2814, %v2815
    %v2817 = vrot.slane %v2816, 2
    %v2818 = vadd.f32 %v2816, %v2817
    %v2819 = vrot.slane %v2818, 1
    %v2820 = vadd.f32 %v2818, %v2819
    %v2821 = vsel %vm1838, %v2532, 0.0
    %v2822 = vrot.slane %v2821, 4
    %v2823 = vadd.f32 %v2821, %v2822
    %v2824 = vrot.slane %v2823, 2
    %v2825 = vadd.f32 %v2823, %v2824
    %v2826 = vrot.slane %v2825, 1
    %v2827 = vadd.f32 %v2825, %v2826
    %v2828 = vsel %vm1838, %v2534, 0.0
    %v2829 = vrot.slane %v2828, 4
    %v2830 = vadd.f32 %v2828, %v2829
    %v2831 = vrot.slane %v2830, 2
    %v2832 = vadd.f32 %v2830, %v2831
    %v2833 = vrot.slane %v2832, 1
    %v2834 = vadd.f32 %v2832, %v2833
    %v2835 = vsel %vm1838, %v2536, 0.0
    %v2836 = vrot.slane %v2835, 4
    %v2837 = vadd.f32 %v2835, %v2836
    %v2838 = vrot.slane %v2837, 2
    %v2839 = vadd.f32 %v2837, %v2838
    %v2840 = vrot.slane %v2839, 1
    %v2841 = vadd.f32 %v2839, %v2840
    %v2842 = vsel %vm1838, %v2538, 0.0
    %v2843 = vrot.slane %v2842, 4
    %v2844 = vadd.f32 %v2842, %v2843
    %v2845 = vrot.slane %v2844, 2
    %v2846 = vadd.f32 %v2844, %v2845
    %v2847 = vrot.slane %v2846, 1
    %v2848 = vadd.f32 %v2846, %v2847
    %v2849 = vsel %vm1838, %v2540, 0.0
    %v2850 = vrot.slane %v2849, 4
    %v2851 = vadd.f32 %v2849, %v2850
    %v2852 = vrot.slane %v2851, 2
    %v2853 = vadd.f32 %v2851, %v2852
    %v2854 = vrot.slane %v2853, 1
    %v2855 = vadd.f32 %v2853, %v2854
    %v2856 = vsel %vm1838, %v2542, 0.0
    %v2857 = vrot.slane %v2856, 4
    %v2858 = vadd.f32 %v2856, %v2857
    %v2859 = vrot.slane %v2858, 2
    %v2860 = vadd.f32 %v2858, %v2859
    %v2861 = vrot.slane %v2860, 1
    %v2862 = vadd.f32 %v2860, %v2861
    %v2863 = vsel %vm1838, %v2544, 0.0
    %v2864 = vrot.slane %v2863, 4
    %v2865 = vadd.f32 %v2863, %v2864
    %v2866 = vrot.slane %v2865, 2
    %v2867 = vadd.f32 %v2865, %v2866
    %v2868 = vrot.slane %v2867, 1
    %v2869 = vadd.f32 %v2867, %v2868
    %v2870 = vsel %vm1838, %v2546, 0.0
    %v2871 = vrot.slane %v2870, 4
    %v2872 = vadd.f32 %v2870, %v2871
    %v2873 = vrot.slane %v2872, 2
    %v2874 = vadd.f32 %v2872, %v2873
    %v2875 = vrot.slane %v2874, 1
    %v2876 = vadd.f32 %v2874, %v2875
    %v2877 = vsel %vm1838, %v2548, 0.0
    %v2878 = vrot.slane %v2877, 4
    %v2879 = vadd.f32 %v2877, %v2878
    %v2880 = vrot.slane %v2879, 2
    %v2881 = vadd.f32 %v2879, %v2880
    %v2882 = vrot.slane %v2881, 1
    %v2883 = vadd.f32 %v2881, %v2882
    %v2884 = vsel %vm1838, %v2550, 0.0
    %v2885 = vrot.slane %v2884, 4
    %v2886 = vadd.f32 %v2884, %v2885
    %v2887 = vrot.slane %v2886, 2
    %v2888 = vadd.f32 %v2886, %v2887
    %v2889 = vrot.slane %v2888, 1
    %v2890 = vadd.f32 %v2888, %v2889
    %v2891 = vsel %vm1838, %v2552, 0.0
    %v2892 = vrot.slane %v2891, 4
    %v2893 = vadd.f32 %v2891, %v2892
    %v2894 = vrot.slane %v2893, 2
    %v2895 = vadd.f32 %v2893, %v2894
    %v2896 = vrot.slane %v2895, 1
    %v2897 = vadd.f32 %v2895, %v2896
    %v2898 = vsel %vm1838, %v2554, 0.0
    %v2899 = vrot.slane %v2898, 4
    %v2900 = vadd.f32 %v2898, %v2899
    %v2901 = vrot.slane %v2900, 2
    %v2902 = vadd.f32 %v2900, %v2901
    %v2903 = vrot.slane %v2902, 1
    %v2904 = vadd.f32 %v2902, %v2903
    %v2905 = vsel %vm1838, %v2556, 0.0
    %v2906 = vrot.slane %v2905, 4
    %v2907 = vadd.f32 %v2905, %v2906
    %v2908 = vrot.slane %v2907, 2
    %v2909 = vadd.f32 %v2907, %v2908
    %v2910 = vrot.slane %v2909, 1
    %v2911 = vadd.f32 %v2909, %v2910
    %v2912 = vsel %vm1838, %v2558, 0.0
    %v2913 = vrot.slane %v2912, 4
    %v2914 = vadd.f32 %v2912, %v2913
    %v2915 = vrot.slane %v2914, 2
    %v2916 = vadd.f32 %v2914, %v2915
    %v2917 = vrot.slane %v2916, 1
    %v2918 = vadd.f32 %v2916, %v2917
    %v2919 = vsel %vm1838, %v2560, 0.0
    %v2920 = vrot.slane %v2919, 4
    %v2921 = vadd.f32 %v2919, %v2920
    %v2922 = vrot.slane %v2921, 2
    %v2923 = vadd.f32 %v2921, %v2922
    %v2924 = vrot.slane %v2923, 1
    %v2925 = vadd.f32 %v2923, %v2924
    %v2926 = vsel %vm1838, %v2562, 0.0
    %v2927 = vrot.slane %v2926, 4
    %v2928 = vadd.f32 %v2926, %v2927
    %v2929 = vrot.slane %v2928, 2
    %v2930 = vadd.f32 %v2928, %v2929
    %v2931 = vrot.slane %v2930, 1
    %v2932 = vadd.f32 %v2930, %v2931
    %v2933 = vsel %vm1838, %v2564, 0.0
    %v2934 = vrot.slane %v2933, 4
    %v2935 = vadd.f32 %v2933, %v2934
    %v2936 = vrot.slane %v2935, 2
    %v2937 = vadd.f32 %v2935, %v2936
    %v2938 = vrot.slane %v2937, 1
    %v2939 = vadd.f32 %v2937, %v2938
    %v2940 = vsel %vm1838, %v2566, 0.0
    %v2941 = vrot.slane %v2940, 4
    %v2942 = vadd.f32 %v2940, %v2941
    %v2943 = vrot.slane %v2942, 2
    %v2944 = vadd.f32 %v2942, %v2943
    %v2945 = vrot.slane %v2944, 1
    %v2946 = vadd.f32 %v2944, %v2945
    %v2947 = vsel %vm1838, %v2568, 0.0
    %v2948 = vrot.slane %v2947, 4
    %v2949 = vadd.f32 %v2947, %v2948
    %v2950 = vrot.slane %v2949, 2
    %v2951 = vadd.f32 %v2949, %v2950
    %v2952 = vrot.slane %v2951, 1
    %v2953 = vadd.f32 %v2951, %v2952
    %v2954 = vsel %vm1838, %v2570, 0.0
    %v2955 = vrot.slane %v2954, 4
    %v2956 = vadd.f32 %v2954, %v2955
    %v2957 = vrot.slane %v2956, 2
    %v2958 = vadd.f32 %v2956, %v2957
    %v2959 = vrot.slane %v2958, 1
    %v2960 = vadd.f32 %v2958, %v2959
    %v2961 = vsel %vm1838, %v2572, 0.0
    %v2962 = vrot.slane %v2961, 4
    %v2963 = vadd.f32 %v2961, %v2962
    %v2964 = vrot.slane %v2963, 2
    %v2965 = vadd.f32 %v2963, %v2964
    %v2966 = vrot.slane %v2965, 1
    %v2967 = vadd.f32 %v2965, %v2966
    %v2968 = vsel %vm1838, %v2574, 0.0
    %v2969 = vrot.slane %v2968, 4
    %v2970 = vadd.f32 %v2968, %v2969
    %v2971 = vrot.slane %v2970, 2
    %v2972 = vadd.f32 %v2970, %v2971
    %v2973 = vrot.slane %v2972, 1
    %v2974 = vadd.f32 %v2972, %v2973
    %v2975 = vsel %vm1838, %v2576, 0.0
    %v2976 = vrot.slane %v2975, 4
    %v2977 = vadd.f32 %v2975, %v2976
    %v2978 = vrot.slane %v2977, 2
    %v2979 = vadd.f32 %v2977, %v2978
    %v2980 = vrot.slane %v2979, 1
    %v2981 = vadd.f32 %v2979, %v2980
    %v2982 = vsel %vm1838, %v2578, 0.0
    %v2983 = vrot.slane %v2982, 4
    %v2984 = vadd.f32 %v2982, %v2983
    %v2985 = vrot.slane %v2984, 2
    %v2986 = vadd.f32 %v2984, %v2985
    %v2987 = vrot.slane %v2986, 1
    %v2988 = vadd.f32 %v2986, %v2987
    %v2989 = vsel %vm1838, %v2580, 0.0
    %v2990 = vrot.slane %v2989, 4
    %v2991 = vadd.f32 %v2989, %v2990
    %v2992 = vrot.slane %v2991, 2
    %v2993 = vadd.f32 %v2991, %v2992
    %v2994 = vrot.slane %v2993, 1
    %v2995 = vadd.f32 %v2993, %v2994
    %v2996 = vsel %vm1838, %v2582, 0.0
    %v2997 = vrot.slane %v2996, 4
    %v2998 = vadd.f32 %v2996, %v2997
    %v2999 = vrot.slane %v2998, 2
    %v3000 = vadd.f32 %v2998, %v2999
    %v3001 = vrot.slane %v3000, 1
    %v3002 = vadd.f32 %v3000, %v3001
    %v3003 = vsel %vm1838, %v2584, 0.0
    %v3004 = vrot.slane %v3003, 4
    %v3005 = vadd.f32 %v3003, %v3004
    %v3006 = vrot.slane %v3005, 2
    %v3007 = vadd.f32 %v3005, %v3006
    %v3008 = vrot.slane %v3007, 1
    %v3009 = vadd.f32 %v3007, %v3008
    %v3010 = vsel %vm1838, %v2586, 0.0
    %v3011 = vrot.slane %v3010, 4
    %v3012 = vadd.f32 %v3010, %v3011
    %v3013 = vrot.slane %v3012, 2
    %v3014 = vadd.f32 %v3012, %v3013
    %v3015 = vrot.slane %v3014, 1
    %v3016 = vadd.f32 %v3014, %v3015
    %v3017 = vsel %vm1838, %v2588, 0.0
    %v3018 = vrot.slane %v3017, 4
    %v3019 = vadd.f32 %v3017, %v3018
    %v3020 = vrot.slane %v3019, 2
    %v3021 = vadd.f32 %v3019, %v3020
    %v3022 = vrot.slane %v3021, 1
    %v3023 = vadd.f32 %v3021, %v3022
    %v3024 = vsel %vm1838, %v2590, 0.0
    %v3025 = vrot.slane %v3024, 4
    %v3026 = vadd.f32 %v3024, %v3025
    %v3027 = vrot.slane %v3026, 2
    %v3028 = vadd.f32 %v3026, %v3027
    %v3029 = vrot.slane %v3028, 1
    %v3030 = vadd.f32 %v3028, %v3029
    %v3031 = vsel %vm1838, %v2592, 0.0
    %v3032 = vrot.slane %v3031, 4
    %v3033 = vadd.f32 %v3031, %v3032
    %v3034 = vrot.slane %v3033, 2
    %v3035 = vadd.f32 %v3033, %v3034
    %v3036 = vrot.slane %v3035, 1
    %v3037 = vadd.f32 %v3035, %v3036
    %v3038 = vsel %vm1838, %v2594, 0.0
    %v3039 = vrot.slane %v3038, 4
    %v3040 = vadd.f32 %v3038, %v3039
    %v3041 = vrot.slane %v3040, 2
    %v3042 = vadd.f32 %v3040, %v3041
    %v3043 = vrot.slane %v3042, 1
    %v3044 = vadd.f32 %v3042, %v3043
    %v3045 = vsel %vm1838, %v2596, 0.0
    %v3046 = vrot.slane %v3045, 4
    %v3047 = vadd.f32 %v3045, %v3046
    %v3048 = vrot.slane %v3047, 2
    %v3049 = vadd.f32 %v3047, %v3048
    %v3050 = vrot.slane %v3049, 1
    %v3051 = vadd.f32 %v3049, %v3050
    %v3052 = vsel %vm1838, %v2598, 0.0
    %v3053 = vrot.slane %v3052, 4
    %v3054 = vadd.f32 %v3052, %v3053
    %v3055 = vrot.slane %v3054, 2
    %v3056 = vadd.f32 %v3054, %v3055
    %v3057 = vrot.slane %v3056, 1
    %v3058 = vadd.f32 %v3056, %v3057
    %v3059 = vsel %vm1838, %v2600, 0.0
    %v3060 = vrot.slane %v3059, 4
    %v3061 = vadd.f32 %v3059, %v3060
    %v3062 = vrot.slane %v3061, 2
    %v3063 = vadd.f32 %v3061, %v3062
    %v3064 = vrot.slane %v3063, 1
    %v3065 = vadd.f32 %v3063, %v3064
    %v3066 = vsel %vm1838, %v2602, 0.0
    %v3067 = vrot.slane %v3066, 4
    %v3068 = vadd.f32 %v3066, %v3067
    %v3069 = vrot.slane %v3068, 2
    %v3070 = vadd.f32 %v3068, %v3069
    %v3071 = vrot.slane %v3070, 1
    %v3072 = vadd.f32 %v3070, %v3071
    %v3073 = vsel %vm1838, %v2604, 0.0
    %v3074 = vrot.slane %v3073, 4
    %v3075 = vadd.f32 %v3073, %v3074
    %v3076 = vrot.slane %v3075, 2
    %v3077 = vadd.f32 %v3075, %v3076
    %v3078 = vrot.slane %v3077, 1
    %v3079 = vadd.f32 %v3077, %v3078
    %v3080 = vsel %vm1838, %v2606, 0.0
    %v3081 = vrot.slane %v3080, 4
    %v3082 = vadd.f32 %v3080, %v3081
    %v3083 = vrot.slane %v3082, 2
    %v3084 = vadd.f32 %v3082, %v3083
    %v3085 = vrot.slane %v3084, 1
    %v3086 = vadd.f32 %v3084, %v3085
    %v3087 = vsel %vm1838, %v2608, 0.0
    %v3088 = vrot.slane %v3087, 4
    %v3089 = vadd.f32 %v3087, %v3088
    %v3090 = vrot.slane %v3089, 2
    %v3091 = vadd.f32 %v3089, %v3090
    %v3092 = vrot.slane %v3091, 1
    %v3093 = vadd.f32 %v3091, %v3092
    %v3094 = vsel %vm1838, %v2610, 0.0
    %v3095 = vrot.slane %v3094, 4
    %v3096 = vadd.f32 %v3094, %v3095
    %v3097 = vrot.slane %v3096, 2
    %v3098 = vadd.f32 %v3096, %v3097
    %v3099 = vrot.slane %v3098, 1
    %v3100 = vadd.f32 %v3098, %v3099
    %v3101 = vsel %vm1838, %v2612, 0.0
    %v3102 = vrot.slane %v3101, 4
    %v3103 = vadd.f32 %v3101, %v3102
    %v3104 = vrot.slane %v3103, 2
    %v3105 = vadd.f32 %v3103, %v3104
    %v3106 = vrot.slane %v3105, 1
    %v3107 = vadd.f32 %v3105, %v3106
    %v3108 = vsel %vm1838, %v2614, 0.0
    %v3109 = vrot.slane %v3108, 4
    %v3110 = vadd.f32 %v3108, %v3109
    %v3111 = vrot.slane %v3110, 2
    %v3112 = vadd.f32 %v3110, %v3111
    %v3113 = vrot.slane %v3112, 1
    %v3114 = vadd.f32 %v3112, %v3113
    %v3115 = vsel %vm1838, %v2616, 0.0
    %v3116 = vrot.slane %v3115, 4
    %v3117 = vadd.f32 %v3115, %v3116
    %v3118 = vrot.slane %v3117, 2
    %v3119 = vadd.f32 %v3117, %v3118
    %v3120 = vrot.slane %v3119, 1
    %v3121 = vadd.f32 %v3119, %v3120
    %v3122 = vsel %vm1838, %v2618, 0.0
    %v3123 = vrot.slane %v3122, 4
    %v3124 = vadd.f32 %v3122, %v3123
    %v3125 = vrot.slane %v3124, 2
    %v3126 = vadd.f32 %v3124, %v3125
    %v3127 = vrot.slane %v3126, 1
    %v3128 = vadd.f32 %v3126, %v3127
    %v3129 = vsel %vm1838, %v2620, 0.0
    %v3130 = vrot.slane %v3129, 4
    %v3131 = vadd.f32 %v3129, %v3130
    %v3132 = vrot.slane %v3131, 2
    %v3133 = vadd.f32 %v3131, %v3132
    %v3134 = vrot.slane %v3133, 1
    %v3135 = vadd.f32 %v3133, %v3134
    %v3136 = vsel %vm1838, %v2622, 0.0
    %v3137 = vrot.slane %v3136, 4
    %v3138 = vadd.f32 %v3136, %v3137
    %v3139 = vrot.slane %v3138, 2
    %v3140 = vadd.f32 %v3138, %v3139
    %v3141 = vrot.slane %v3140, 1
    %v3142 = vadd.f32 %v3140, %v3141
    %v3143 = vsel %vm1838, %v2624, 0.0
    %v3144 = vrot.slane %v3143, 4
    %v3145 = vadd.f32 %v3143, %v3144
    %v3146 = vrot.slane %v3145, 2
    %v3147 = vadd.f32 %v3145, %v3146
    %v3148 = vrot.slane %v3147, 1
    %v3149 = vadd.f32 %v3147, %v3148
    %v3150 = vsel %vm1838, %v2626, 0.0
    %v3151 = vrot.slane %v3150, 4
    %v3152 = vadd.f32 %v3150, %v3151
    %v3153 = vrot.slane %v3152, 2
    %v3154 = vadd.f32 %v3152, %v3153
    %v3155 = vrot.slane %v3154, 1
    %v3156 = vadd.f32 %v3154, %v3155
    %v3157 = vsel %vm1838, %v2628, 0.0
    %v3158 = vrot.slane %v3157, 4
    %v3159 = vadd.f32 %v3157, %v3158
    %v3160 = vrot.slane %v3159, 2
    %v3161 = vadd.f32 %v3159, %v3160
    %v3162 = vrot.slane %v3161, 1
    %v3163 = vadd.f32 %v3161, %v3162
    %v3164 = vsel %vm1838, %v2630, 0.0
    %v3165 = vrot.slane %v3164, 4
    %v3166 = vadd.f32 %v3164, %v3165
    %v3167 = vrot.slane %v3166, 2
    %v3168 = vadd.f32 %v3166, %v3167
    %v3169 = vrot.slane %v3168, 1
    %v3170 = vadd.f32 %v3168, %v3169
    %v3171 = vsel %vm1838, %v2632, 0.0
    %v3172 = vrot.slane %v3171, 4
    %v3173 = vadd.f32 %v3171, %v3172
    %v3174 = vrot.slane %v3173, 2
    %v3175 = vadd.f32 %v3173, %v3174
    %v3176 = vrot.slane %v3175, 1
    %v3177 = vadd.f32 %v3175, %v3176
    %v3178 = vsel %vm1838, %v2634, 0.0
    %v3179 = vrot.slane %v3178, 4
    %v3180 = vadd.f32 %v3178, %v3179
    %v3181 = vrot.slane %v3180, 2
    %v3182 = vadd.f32 %v3180, %v3181
    %v3183 = vrot.slane %v3182, 1
    %v3184 = vadd.f32 %v3182, %v3183
    %v3185 = vsel %vm1838, %v2636, 0.0
    %v3186 = vrot.slane %v3185, 4
    %v3187 = vadd.f32 %v3185, %v3186
    %v3188 = vrot.slane %v3187, 2
    %v3189 = vadd.f32 %v3187, %v3188
    %v3190 = vrot.slane %v3189, 1
    %v3191 = vadd.f32 %v3189, %v3190
    %v3192 = vsel %vm1838, %v2638, 0.0
    %v3193 = vrot.slane %v3192, 4
    %v3194 = vadd.f32 %v3192, %v3193
    %v3195 = vrot.slane %v3194, 2
    %v3196 = vadd.f32 %v3194, %v3195
    %v3197 = vrot.slane %v3196, 1
    %v3198 = vadd.f32 %v3196, %v3197
    %v3199 = vrcp.pop %v2645
    %v3200 = vmul.f32 %v2480, %v3199
    %v3201 = vrcp.pop %v2652
    %v3202 = vmul.f32 %v2482, %v3201
    %v3203 = vrcp.pop %v2659
    %v3204 = vmul.f32 %v2484, %v3203
    %v3205 = vrcp.pop %v2666
    %v3206 = vmul.f32 %v2486, %v3205
    %v3207 = vrcp.pop %v2673
    %v3208 = vmul.f32 %v2488, %v3207
    %v3209 = vrcp.pop %v2680
    %v3210 = vmul.f32 %v2490, %v3209
    %v3211 = vrcp.pop %v2687
    %v3212 = vmul.f32 %v2492, %v3211
    %v3213 = vrcp.pop %v2694
    %v3214 = vmul.f32 %v2494, %v3213
    %v3215 = vrcp.pop %v2701
    %v3216 = vmul.f32 %v2496, %v3215
    %v3217 = vrcp.pop %v2708
    %v3218 = vmul.f32 %v2498, %v3217
    %v3219 = vrcp.pop %v2715
    %v3220 = vmul.f32 %v2500, %v3219
    %v3221 = vrcp.pop %v2722
    %v3222 = vmul.f32 %v2502, %v3221
    %v3223 = vrcp.pop %v2729
    %v3224 = vmul.f32 %v2504, %v3223
    %v3225 = vrcp.pop %v2736
    %v3226 = vmul.f32 %v2506, %v3225
    %v3227 = vrcp.pop %v2743
    %v3228 = vmul.f32 %v2508, %v3227
    %v3229 = vrcp.pop %v2750
    %v3230 = vmul.f32 %v2510, %v3229
    %v3231 = vrcp.pop %v2757
    %v3232 = vmul.f32 %v2512, %v3231
    %v3233 = vrcp.pop %v2764
    %v3234 = vmul.f32 %v2514, %v3233
    %v3235 = vrcp.pop %v2771
    %v3236 = vmul.f32 %v2516, %v3235
    %v3237 = vrcp.pop %v2778
    %v3238 = vmul.f32 %v2518, %v3237
    %v3239 = vrcp.pop %v2785
    %v3240 = vmul.f32 %v2520, %v3239
    %v3241 = vrcp.pop %v2792
    %v3242 = vmul.f32 %v2522, %v3241
    %v3243 = vrcp.pop %v2799
    %v3244 = vmul.f32 %v2524, %v3243
    %v3245 = vrcp.pop %v2806
    %v3246 = vmul.f32 %v2526, %v3245
    %v3247 = vrcp.pop %v2813
    %v3248 = vmul.f32 %v2528, %v3247
    %v3249 = vrcp.pop %v2820
    %v3250 = vmul.f32 %v2530, %v3249
    %v3251 = vrcp.pop %v2827
    %v3252 = vmul.f32 %v2532, %v3251
    %v3253 = vrcp.pop %v2834
    %v3254 = vmul.f32 %v2534, %v3253
    %v3255 = vrcp.pop %v2841
    %v3256 = vmul.f32 %v2536, %v3255
    %v3257 = vrcp.pop %v2848
    %v3258 = vmul.f32 %v2538, %v3257
    %v3259 = vrcp.pop %v2855
    %v3260 = vmul.f32 %v2540, %v3259
    %v3261 = vrcp.pop %v2862
    %v3262 = vmul.f32 %v2542, %v3261
    %v3263 = vrcp.pop %v2869
    %v3264 = vmul.f32 %v2544, %v3263
    %v3265 = vrcp.pop %v2876
    %v3266 = vmul.f32 %v2546, %v3265
    %v3267 = vrcp.pop %v2883
    %v3268 = vmul.f32 %v2548, %v3267
    %v3269 = vrcp.pop %v2890
    %v3270 = vmul.f32 %v2550, %v3269
    %v3271 = vrcp.pop %v2897
    %v3272 = vmul.f32 %v2552, %v3271
    %v3273 = vrcp.pop %v2904
    %v3274 = vmul.f32 %v2554, %v3273
    %v3275 = vrcp.pop %v2911
    %v3276 = vmul.f32 %v2556, %v3275
    %v3277 = vrcp.pop %v2918
    %v3278 = vmul.f32 %v2558, %v3277
    %v3279 = vrcp.pop %v2925
    %v3280 = vmul.f32 %v2560, %v3279
    %v3281 = vrcp.pop %v2932
    %v3282 = vmul.f32 %v2562, %v3281
    %v3283 = vrcp.pop %v2939
    %v3284 = vmul.f32 %v2564, %v3283
    %v3285 = vrcp.pop %v2946
    %v3286 = vmul.f32 %v2566, %v3285
    %v3287 = vrcp.pop %v2953
    %v3288 = vmul.f32 %v2568, %v3287
    %v3289 = vrcp.pop %v2960
    %v3290 = vmul.f32 %v2570, %v3289
    %v3291 = vrcp.pop %v2967
    %v3292 = vmul.f32 %v2572, %v3291
    %v3293 = vrcp.pop %v2974
    %v3294 = vmul.f32 %v2574, %v3293
    %v3295 = vrcp.pop %v2981
    %v3296 = vmul.f32 %v2576, %v3295
    %v3297 = vrcp.pop %v2988
    %v3298 = vmul.f32 %v2578, %v3297
    %v3299 = vrcp.pop %v2995
    %v3300 = vmul.f32 %v2580, %v3299
    %v3301 = vrcp.pop %v3002
    %v3302 = vmul.f32 %v2582, %v3301
    %v3303 = vrcp.pop %v3009
    %v3304 = vmul.f32 %v2584, %v3303
    %v3305 = vrcp.pop %v3016
    %v3306 = vmul.f32 %v2586, %v3305
    %v3307 = vrcp.pop %v3023
    %v3308 = vmul.f32 %v2588, %v3307
    %v3309 = vrcp.pop %v3030
    %v3310 = vmul.f32 %v2590, %v3309
    %v3311 = vrcp.pop %v3037
    %v3312 = vmul.f32 %v2592, %v3311
    %v3313 = vrcp.pop %v3044
    %v3314 = vmul.f32 %v2594, %v3313
    %v3315 = vrcp.pop %v3051
    %v3316 = vmul.f32 %v2596, %v3315
    %v3317 = vrcp.pop %v3058
    %v3318 = vmul.f32 %v2598, %v3317
    %v3319 = vrcp.pop %v3065
    %v3320 = vmul.f32 %v2600, %v3319
    %v3321 = vrcp.pop %v3072
    %v3322 = vmul.f32 %v2602, %v3321
    %v3323 = vrcp.pop %v3079
    %v3324 = vmul.f32 %v2604, %v3323
    %v3325 = vrcp.pop %v3086
    %v3326 = vmul.f32 %v2606, %v3325
    %v3327 = vrcp.pop %v3093
    %v3328 = vmul.f32 %v2608, %v3327
    %v3329 = vrcp.pop %v3100
    %v3330 = vmul.f32 %v2610, %v3329
    %v3331 = vrcp.pop %v3107
    %v3332 = vmul.f32 %v2612, %v3331
    %v3333 = vrcp.pop %v3114
    %v3334 = vmul.f32 %v2614, %v3333
    %v3335 = vrcp.pop %v3121
    %v3336 = vmul.f32 %v2616, %v3335
    %v3337 = vrcp.pop %v3128
    %v3338 = vmul.f32 %v2618, %v3337
    %v3339 = vrcp.pop %v3135
    %v3340 = vmul.f32 %v2620, %v3339
    %v3341 = vrcp.pop %v3142
    %v3342 = vmul.f32 %v2622, %v3341
    %v3343 = vrcp.pop %v3149
    %v3344 = vmul.f32 %v2624, %v3343
    %v3345 = vrcp.pop %v3156
    %v3346 = vmul.f32 %v2626, %v3345
    %v3347 = vrcp.pop %v3163
    %v3348 = vmul.f32 %v2628, %v3347
    %v3349 = vrcp.pop %v3170
    %v3350 = vmul.f32 %v2630, %v3349
    %v3351 = vrcp.pop %v3177
    %v3352 = vmul.f32 %v2632, %v3351
    %v3353 = vrcp.pop %v3184
    %v3354 = vmul.f32 %v2634, %v3353
    %v3355 = vrcp.pop %v3191
    %v3356 = vmul.f32 %v2636, %v3355
    %v3357 = vrcp.pop %v3198
    %v3358 = vmul.f32 %v2638, %v3357
    %v3399 = vcombine.high %v42, %v42
    %v3400 = vcombine.high %v43, %v43
    %v3401 = vcombine.high %v44, %v44
    %v3402 = vcombine.high %v45, %v45
    %v3403 = vcombine.high %v46, %v46
    %v3404 = vcombine.high %v47, %v47
    %v3405 = vcombine.high %v48, %v48
    %v3406 = vcombine.high %v49, %v49
    %v3407 = vcombine.high %v50, %v50
    %v3408 = vcombine.high %v51, %v51
    %v3409 = vcombine.high %v52, %v52
    %v3410 = vcombine.high %v53, %v53
    %v3411 = vcombine.high %v54, %v54
    %v3412 = vcombine.high %v55, %v55
    %v3413 = vcombine.high %v56, %v56
    %v3414 = vcombine.high %v57, %v57
    %v3415 = vcombine.high %v58, %v58
    %v3416 = vcombine.high %v59, %v59
    %v3417 = vcombine.high %v60, %v60
    %v3418 = vcombine.high %v61, %v61
    %v3419 = vcombine.high %v62, %v62
    %v3420 = vcombine.high %v63, %v63
    %v3421 = vcombine.high %v64, %v64
    %v3422 = vcombine.high %v65, %v65
    %v3423 = vcombine.high %v66, %v66
    %v3424 = vcombine.high %v67, %v67
    %v3425 = vcombine.high %v68, %v68
    %v3426 = vcombine.high %v69, %v69
    %v3427 = vcombine.high %v70, %v70
    %v3428 = vcombine.high %v71, %v71
    %v3429 = vcombine.high %v72, %v72
    %v3430 = vcombine.high %v73, %v73
    %v3431 = vcombine.high %v74, %v74
    %v3432 = vcombine.high %v75, %v75
    %v3433 = vcombine.high %v76, %v76
    %v3434 = vcombine.high %v77, %v77
    %v3435 = vcombine.high %v78, %v78
    %v3436 = vcombine.high %v79, %v79
    %v3437 = vcombine.high %v80, %v80
    %v3438 = vcombine.high %v81, %v81
    %v3479 = vmul.f32 %v3200, %v42
    %v3480 = vmul.f32 %v3202, %v3399
    %v3481 = vmul.f32 %v3204, %v43
    %v3482 = vmul.f32 %v3206, %v3400
    %v3483 = vmul.f32 %v3208, %v44
    %v3484 = vmul.f32 %v3210, %v3401
    %v3485 = vmul.f32 %v3212, %v45
    %v3486 = vmul.f32 %v3214, %v3402
    %v3487 = vmul.f32 %v3216, %v46
    %v3488 = vmul.f32 %v3218, %v3403
    %v3489 = vmul.f32 %v3220, %v47
    %v3490 = vmul.f32 %v3222, %v3404
    %v3491 = vmul.f32 %v3224, %v48
    %v3492 = vmul.f32 %v3226, %v3405
    %v3493 = vmul.f32 %v3228, %v49
    %v3494 = vmul.f32 %v3230, %v3406
    %v3495 = vmul.f32 %v3232, %v50
    %v3496 = vmul.f32 %v3234, %v3407
    %v3497 = vmul.f32 %v3236, %v51
    %v3498 = vmul.f32 %v3238, %v3408
    %v3499 = vmul.f32 %v3240, %v52
    %v3500 = vmul.f32 %v3242, %v3409
    %v3501 = vmul.f32 %v3244, %v53
    %v3502 = vmul.f32 %v3246, %v3410
    %v3503 = vmul.f32 %v3248, %v54
    %v3504 = vmul.f32 %v3250, %v3411
    %v3505 = vmul.f32 %v3252, %v55
    %v3506 = vmul.f32 %v3254, %v3412
    %v3507 = vmul.f32 %v3256, %v56
    %v3508 = vmul.f32 %v3258, %v3413
    %v3509 = vmul.f32 %v3260, %v57
    %v3510 = vmul.f32 %v3262, %v3414
    %v3511 = vmul.f32 %v3264, %v58
    %v3512 = vmul.f32 %v3266, %v3415
    %v3513 = vmul.f32 %v3268, %v59
    %v3514 = vmul.f32 %v3270, %v3416
    %v3515 = vmul.f32 %v3272, %v60
    %v3516 = vmul.f32 %v3274, %v3417
    %v3517 = vmul.f32 %v3276, %v61
    %v3518 = vmul.f32 %v3278, %v3418
    %v3519 = vmul.f32 %v3280, %v62
    %v3520 = vmul.f32 %v3282, %v3419
    %v3521 = vmul.f32 %v3284, %v63
    %v3522 = vmul.f32 %v3286, %v3420
    %v3523 = vmul.f32 %v3288, %v64
    %v3524 = vmul.f32 %v3290, %v3421
    %v3525 = vmul.f32 %v3292, %v65
    %v3526 = vmul.f32 %v3294, %v3422
    %v3527 = vmul.f32 %v3296, %v66
    %v3528 = vmul.f32 %v3298, %v3423
    %v3529 = vmul.f32 %v3300, %v67
    %v3530 = vmul.f32 %v3302, %v3424
    %v3531 = vmul.f32 %v3304, %v68
    %v3532 = vmul.f32 %v3306, %v3425
    %v3533 = vmul.f32 %v3308, %v69
    %v3534 = vmul.f32 %v3310, %v3426
    %v3535 = vmul.f32 %v3312, %v70
    %v3536 = vmul.f32 %v3314, %v3427
    %v3537 = vmul.f32 %v3316, %v71
    %v3538 = vmul.f32 %v3318, %v3428
    %v3539 = vmul.f32 %v3320, %v72
    %v3540 = vmul.f32 %v3322, %v3429
    %v3541 = vmul.f32 %v3324, %v73
    %v3542 = vmul.f32 %v3326, %v3430
    %v3543 = vmul.f32 %v3328, %v74
    %v3544 = vmul.f32 %v3330, %v3431
    %v3545 = vmul.f32 %v3332, %v75
    %v3546 = vmul.f32 %v3334, %v3432
    %v3547 = vmul.f32 %v3336, %v76
    %v3548 = vmul.f32 %v3338, %v3433
    %v3549 = vmul.f32 %v3340, %v77
    %v3550 = vmul.f32 %v3342, %v3434
    %v3551 = vmul.f32 %v3344, %v78
    %v3552 = vmul.f32 %v3346, %v3435
    %v3553 = vmul.f32 %v3348, %v79
    %v3554 = vmul.f32 %v3350, %v3436
    %v3555 = vmul.f32 %v3352, %v80
    %v3556 = vmul.f32 %v3354, %v3437
    %v3557 = vmul.f32 %v3356, %v81
    %v3558 = vmul.f32 %v3358, %v3438
    %v3639 = vcombine.low %v3479, %v3480
    %v3640 = vcombine.low %v3481, %v3482
    %v3641 = vcombine.low %v3483, %v3484
    %v3642 = vcombine.low %v3485, %v3486
    %v3643 = vcombine.low %v3487, %v3488
    %v3644 = vcombine.low %v3489, %v3490
    %v3645 = vcombine.low %v3491, %v3492
    %v3646 = vcombine.low %v3493, %v3494
    %v3647 = vcombine.low %v3495, %v3496
    %v3648 = vcombine.low %v3497, %v3498
    %v3649 = vcombine.low %v3499, %v3500
    %v3650 = vcombine.low %v3501, %v3502
    %v3651 = vcombine.low %v3503, %v3504
    %v3652 = vcombine.low %v3505, %v3506
    %v3653 = vcombine.low %v3507, %v3508
    %v3654 = vcombine.low %v3509, %v3510
    %v3655 = vcombine.low %v3511, %v3512
    %v3656 = vcombine.low %v3513, %v3514
    %v3657 = vcombine.low %v3515, %v3516
    %v3658 = vcombine.low %v3517, %v3518
    %v3659 = vcombine.low %v3519, %v3520
    %v3660 = vcombine.low %v3521, %v3522
    %v3661 = vcombine.low %v3523, %v3524
    %v3662 = vcombine.low %v3525, %v3526
    %v3663 = vcombine.low %v3527, %v3528
    %v3664 = vcombine.low %v3529, %v3530
    %v3665 = vcombine.low %v3531, %v3532
    %v3666 = vcombine.low %v3533, %v3534
    %v3667 = vcombine.low %v3535, %v3536
    %v3668 = vcombine.low %v3537, %v3538
    %v3669 = vcombine.low %v3539, %v3540
    %v3670 = vcombine.low %v3541, %v3542
    %v3671 = vcombine.low %v3543, %v3544
    %v3672 = vcombine.low %v3545, %v3546
    %v3673 = vcombine.low %v3547, %v3548
    %v3674 = vcombine.low %v3549, %v3550
    %v3675 = vcombine.low %v3551, %v3552
    %v3676 = vcombine.low %v3553, %v3554
    %v3677 = vcombine.low %v3555, %v3556
    %v3678 = vcombine.low %v3557, %v3558
    %vm3719 = vcmask 523264
    %v3721 = vsel %vm3719, %v164, 0
    %v3724 = vsel %vm3719, %v167, 0
    %v3727 = vsel %vm3719, %v170, 0
    %v3730 = vsel %vm3719, %v173, 0
    %v3733 = vsel %vm3719, %v176, 0
    %v3736 = vsel %vm3719, %v179, 0
    %v3739 = vsel %vm3719, %v182, 0
    %v3742 = vsel %vm3719, %v185, 0
    %v3745 = vsel %vm3719, %v188, 0
    %v3748 = vsel %vm3719, %v191, 0
    %3750 = vmatprep.subr.mxu0 0.0
    %3751 = vmatpush1.msra.mxu0 %v3639
    %3752 = vmatprep.subr.mxu0 0.0
    %3753 = vmatpush1.msra.mxu0 %v3640
    %3754 = vmatprep.subr.mxu0 0.0
    %3755 = vmatpush1.msra.mxu0 %v3641
    %3756 = vmatprep.subr.mxu0 0.0
    %3757 = vmatpush1.msra.mxu0 %v3642
    %3758 = vmatprep.subr.mxu0 0.0
    %3759 = vmatpush1.msra.mxu0 %v3643
    %3760 = vmatprep.subr.mxu0 0.0
    %3761 = vmatpush1.msra.mxu0 %v3644
    %3762 = vmatprep.subr.mxu0 0.0
    %3763 = vmatpush1.msra.mxu0 %v3645
    %3764 = vmatprep.subr.mxu0 0.0
    %3765 = vmatpush1.msra.mxu0 %v3646
    %3766 = vmatprep.subr.mxu0 0.0
    %3767 = vmatpush1.msra.mxu0 %v3647
    %3768 = vmatprep.subr.mxu0 0.0
    %3769 = vmatpush1.msra.mxu0 %v3648
    %3770 = vmatprep.subr.mxu0 0.0
    %3771 = vmatpush1.msra.mxu0 %v3649
    %3772 = vmatprep.subr.mxu0 0.0
    %3773 = vmatpush1.msra.mxu0 %v3650
    %3774 = vmatprep.subr.mxu0 0.0
    %3775 = vmatpush1.msra.mxu0 %v3651
    %3776 = vmatprep.subr.mxu0 0.0
    %3777 = vmatpush1.msra.mxu0 %v3652
    %3778 = vmatprep.subr.mxu0 0.0
    %3779 = vmatpush1.msra.mxu0 %v3653
    %3780 = vmatprep.subr.mxu0 0.0
    %3781 = vmatpush1.msra.mxu0 %v3654
    %3782 = vmatprep.subr.mxu0 0.0
    %3783 = vmatpush1.msra.mxu0 %v3655
    %3784 = vmatprep.subr.mxu0 0.0
    %3785 = vmatpush1.msra.mxu0 %v3656
    %3786 = vmatprep.subr.mxu0 0.0
    %3787 = vmatpush1.msra.mxu0 %v3657
    %3788 = vmatprep.subr.mxu0 0.0
    %3789 = vmatpush1.msra.mxu0 %v3658
    %3790 = vmatprep.subr.mxu0 0.0
    %3791 = vmatpush1.msra.mxu0 %v3659
    %3792 = vmatprep.subr.mxu0 0.0
    %3793 = vmatpush1.msra.mxu0 %v3660
    %3794 = vmatprep.subr.mxu0 0.0
    %3795 = vmatpush1.msra.mxu0 %v3661
    %3796 = vmatprep.subr.mxu0 0.0
    %3797 = vmatpush1.msra.mxu0 %v3662
    %3798 = vmatprep.subr.mxu0 0.0
    %3799 = vmatpush1.msra.mxu0 %v3663
    %3800 = vmatprep.subr.mxu0 0.0
    %3801 = vmatpush1.msra.mxu0 %v3664
    %3802 = vmatprep.subr.mxu0 0.0
    %3803 = vmatpush1.msra.mxu0 %v3665
    %3804 = vmatprep.subr.mxu0 0.0
    %3805 = vmatpush1.msra.mxu0 %v3666
    %3806 = vmatprep.subr.mxu0 0.0
    %3807 = vmatpush1.msra.mxu0 %v3667
    %3808 = vmatprep.subr.mxu0 0.0
    %3809 = vmatpush1.msra.mxu0 %v3668
    %3810 = vmatprep.subr.mxu0 0.0
    %3811 = vmatpush1.msra.mxu0 %v3669
    %3812 = vmatprep.subr.mxu0 0.0
    %3813 = vmatpush1.msra.mxu0 %v3670
    %3814 = vmatprep.mubr.f32.mxu0 %v163
    %3815 = vmatmul.mubr.f32.gmra.mrb[0].mxu0 %v162
    %v3816 = vpop.f32.mrb[0].mxu0
    %v3817 = vpop.f32.mrb[0].mxu0
    %3818 = vmatprep.mubr.f32.mxu0 %v166
    %3819 = vmatmul.mubr.f32.gmra.mrb[0].mxu0 %v165
    %v3820 = vpop.f32.mrb[0].mxu0
    %v3821 = vpop.f32.mrb[0].mxu0
    %3822 = vmatprep.mubr.f32.mxu0 %v169
    %3823 = vmatmul.mubr.f32.gmra.mrb[0].mxu0 %v168
    %v3824 = vpop.f32.mrb[0].mxu0
    %v3825 = vadd.f32 0.0, %v3824
    %v3826 = vpop.f32.mrb[0].mxu0
    %3827 = vmatprep.mubr.f32.mxu0 %v172
    %3828 = vmatmul.mubr.f32.gmra.mrb[0].mxu0 %v171
    %v3829 = vpop.f32.mrb[0].mxu0
    %v3830 = vadd.f32 0.0, %v3829
    %v3831 = vpop.f32.mrb[0].mxu0
    %3832 = vmatprep.mubr.f32.mxu0 %v175
    %3833 = vmatmul.mubr.f32.gmra.mrb[0].mxu0 %v174
    %v3834 = vpop.f32.mrb[0].mxu0
    %v3835 = vadd.f32 0.0, %v3834
    %v3836 = vpop.f32.mrb[0].mxu0
    %3837 = vmatprep.mubr.f32.mxu0 %v178
    %3838 = vmatmul.mubr.f32.gmra.mrb[0].mxu0 %v177
    %v3839 = vpop.f32.mrb[0].mxu0
    %v3840 = vadd.f32 0.0, %v3839
    %v3841 = vpop.f32.mrb[0].mxu0
    %3842 = vmatprep.mubr.f32.mxu0 %v181
    %3843 = vmatmul.mubr.f32.gmra.mrb[0].mxu0 %v180
    %v3844 = vpop.f32.mrb[0].mxu0
    %v3845 = vadd.f32 0.0, %v3844
    %v3846 = vpop.f32.mrb[0].mxu0
    %3847 = vmatprep.mubr.f32.mxu0 %v184
    %3848 = vmatmul.mubr.f32.gmra.mrb[0].mxu0 %v183
    %v3849 = vpop.f32.mrb[0].mxu0
    %v3850 = vadd.f32 0.0, %v3849
    %v3851 = vpop.f32.mrb[0].mxu0
    %3852 = vmatprep.mubr.f32.mxu0 %v187
    %3853 = vmatmul.mubr.f32.gmra.mrb[0].mxu0 %v186
    %v3854 = vpop.f32.mrb[0].mxu0
    %v3855 = vadd.f32 0.0, %v3854
    %v3856 = vpop.f32.mrb[0].mxu0
    %3857 = vmatprep.mubr.f32.mxu0 %v190
    %3858 = vmatmul.mubr.f32.gmra.mrb[0].mxu0 %v189
    %v3859 = vpop.f32.mrb[0].mxu0
    %v3860 = vadd.f32 0.0, %v3859
    %v3861 = vpop.f32.mrb[0].mxu0
    %3862 = vdwg.mxu0
    %3863 = vmatprep.subr.mxu0 0.0
    %3864 = vmatpush1.msra.mxu0 %v3671
    %3865 = vmatprep.subr.mxu0 0.0
    %3866 = vmatpush1.msra.mxu0 %v3672
    %3867 = vmatprep.subr.mxu0 0.0
    %3868 = vmatpush1.msra.mxu0 %v3673
    %3869 = vmatprep.subr.mxu0 0.0
    %3870 = vmatpush1.msra.mxu0 %v3674
    %3871 = vmatprep.subr.mxu0 0.0
    %3872 = vmatpush1.msra.mxu0 %v3675
    %3873 = vmatprep.subr.mxu0 0.0
    %3874 = vmatpush1.msra.mxu0 %v3676
    %3875 = vmatprep.subr.mxu0 0.0
    %3876 = vmatpush1.msra.mxu0 %v3677
    %3877 = vmatprep.subr.mxu0 0.0
    %3878 = vmatpush1.msra.mxu0 %v3678
    %3879 = vmatprep.subr.mxu0 0.0
    %3880 = vmatpush1.msra.mxu0 0.0
    %3881 = vmatprep.subr.mxu0 0.0
    %3882 = vmatpush1.msra.mxu0 0.0
    %3883 = vmatprep.subr.mxu0 0.0
    %3884 = vmatpush1.msra.mxu0 0.0
    %3885 = vmatprep.subr.mxu0 0.0
    %3886 = vmatpush1.msra.mxu0 0.0
    %3887 = vmatprep.subr.mxu0 0.0
    %3888 = vmatpush1.msra.mxu0 0.0
    %3889 = vmatprep.subr.mxu0 0.0
    %3890 = vmatpush1.msra.mxu0 0.0
    %3891 = vmatprep.subr.mxu0 0.0
    %3892 = vmatpush1.msra.mxu0 0.0
    %3893 = vmatprep.subr.mxu0 0.0
    %3894 = vmatpush1.msra.mxu0 0.0
    %3895 = vmatprep.subr.mxu0 0.0
    %3896 = vmatpush1.msra.mxu0 0.0
    %3897 = vmatprep.subr.mxu0 0.0
    %3898 = vmatpush1.msra.mxu0 0.0
    %3899 = vmatprep.subr.mxu0 0.0
    %3900 = vmatpush1.msra.mxu0 0.0
    %3901 = vmatprep.subr.mxu0 0.0
    %3902 = vmatpush1.msra.mxu0 0.0
    %3903 = vmatprep.subr.mxu0 0.0
    %3904 = vmatpush1.msra.mxu0 0.0
    %3905 = vmatprep.subr.mxu0 0.0
    %3906 = vmatpush1.msra.mxu0 0.0
    %3907 = vmatprep.subr.mxu0 0.0
    %3908 = vmatpush1.msra.mxu0 0.0
    %3909 = vmatprep.subr.mxu0 0.0
    %3910 = vmatpush1.msra.mxu0 0.0
    %3911 = vmatprep.subr.mxu0 0.0
    %3912 = vmatpush1.msra.mxu0 0.0
    %3913 = vmatprep.subr.mxu0 0.0
    %3914 = vmatpush1.msra.mxu0 0.0
    %3915 = vmatprep.subr.mxu0 0.0
    %3916 = vmatpush1.msra.mxu0 0.0
    %3917 = vmatprep.subr.mxu0 0.0
    %3918 = vmatpush1.msra.mxu0 0.0
    %3919 = vmatprep.subr.mxu0 0.0
    %3920 = vmatpush1.msra.mxu0 0.0
    %3921 = vmatprep.subr.mxu0 0.0
    %3922 = vmatpush1.msra.mxu0 0.0
    %3923 = vmatprep.subr.mxu0 0.0
    %3924 = vmatpush1.msra.mxu0 0.0
    %3925 = vmatprep.subr.mxu0 0.0
    %3926 = vmatpush1.msra.mxu0 0.0
    %3927 = vmatprep.mubr.f32.mxu0 0.0
    %3928 = vmatmul.mubr.f32.gmra.mrb[0].mxu0 %v3721
    %v3929 = vpop.f32.mrb[0].mxu0
    %v3930 = vpop.f32.mrb[0].mxu0
    %3931 = vmatprep.mubr.f32.mxu0 0.0
    %3932 = vmatmul.mubr.f32.gmra.mrb[0].mxu0 %v3724
    %v3933 = vpop.f32.mrb[0].mxu0
    %v3934 = vpop.f32.mrb[0].mxu0
    %3935 = vmatprep.mubr.f32.mxu0 0.0
    %3936 = vmatmul.mubr.f32.gmra.mrb[0].mxu0 %v3727
    %v3937 = vpop.f32.mrb[0].mxu0
    %v3938 = vadd.f32 %v3825, %v3937
    %v3939 = vpop.f32.mrb[0].mxu0
    %3940 = vmatprep.mubr.f32.mxu0 0.0
    %3941 = vmatmul.mubr.f32.gmra.mrb[0].mxu0 %v3730
    %v3942 = vpop.f32.mrb[0].mxu0
    %v3943 = vadd.f32 %v3830, %v3942
    %v3944 = vpop.f32.mrb[0].mxu0
    %3945 = vmatprep.mubr.f32.mxu0 0.0
    %3946 = vmatmul.mubr.f32.gmra.mrb[0].mxu0 %v3733
    %v3947 = vpop.f32.mrb[0].mxu0
    %v3948 = vadd.f32 %v3835, %v3947
    %v3949 = vpop.f32.mrb[0].mxu0
    %3950 = vmatprep.mubr.f32.mxu0 0.0
    %3951 = vmatmul.mubr.f32.gmra.mrb[0].mxu0 %v3736
    %v3952 = vpop.f32.mrb[0].mxu0
    %v3953 = vadd.f32 %v3840, %v3952
    %v3954 = vpop.f32.mrb[0].mxu0
    %3955 = vmatprep.mubr.f32.mxu0 0.0
    %3956 = vmatmul.mubr.f32.gmra.mrb[0].mxu0 %v3739
    %v3957 = vpop.f32.mrb[0].mxu0
    %v3958 = vadd.f32 %v3845, %v3957
    %v3959 = vpop.f32.mrb[0].mxu0
    %3960 = vmatprep.mubr.f32.mxu0 0.0
    %3961 = vmatmul.mubr.f32.gmra.mrb[0].mxu0 %v3742
    %v3962 = vpop.f32.mrb[0].mxu0
    %v3963 = vadd.f32 %v3850, %v3962
    %v3964 = vpop.f32.mrb[0].mxu0
    %3965 = vmatprep.mubr.f32.mxu0 0.0
    %3966 = vmatmul.mubr.f32.gmra.mrb[0].mxu0 %v3745
    %v3967 = vpop.f32.mrb[0].mxu0
    %v3968 = vadd.f32 %v3855, %v3967
    %v3969 = vpop.f32.mrb[0].mxu0
    %3970 = vmatprep.mubr.f32.mxu0 0.0
    %3971 = vmatmul.mubr.f32.gmra.mrb[0].mxu0 %v3748
    %v3972 = vpop.f32.mrb[0].mxu0
    %v3973 = vadd.f32 %v3860, %v3972
    %v3974 = vpop.f32.mrb[0].mxu0
    %3975 = vdwg.mxu0
    %v3976 = vld [vmem:[%s8] sm:$0xff]
    %v3977 = vld [vmem:[%s8 + $0x8] sm:$0xff]
    %v3978 = vld [vmem:[%s8 + $0x10] sm:$0xff]
    %v3979 = vld [vmem:[%s8 + $0x18] sm:$0xff]
    %v3980 = vld [vmem:[%s9] sm:$0x1]
    %v3981 = vld [vmem:[%s10] sm:$0x1]
    %v3982 = vmul.f32 %v82, %v3938
    %v3983 = vmul.f32 %v83, %v3943
    %v3984 = vmul.f32 %v84, %v3948
    %v3985 = vmul.f32 %v85, %v3953
    %v3986 = vmul.f32 %v86, %v3958
    %v3987 = vmul.f32 %v87, %v3963
    %v3988 = vmul.f32 %v88, %v3968
    %v3989 = vmul.f32 %v89, %v3973
    %v3991 = vlaneseq
    %v3992 = vshrl.u32 %v3991, 7
    %v3993 = vsub.s32 0, %v3992
    %v3994 = vrot.slane %v3980, %v3993
    %v3996 = vmul.f32 %v243, %v3994
    %v3997 = vmul.f32 %v248, %v3994
    %v3998 = vmul.f32 %v253, %v3994
    %v3999 = vmul.f32 %v258, %v3994
    %v4000 = vmul.f32 %v263, %v3994
    %v4001 = vmul.f32 %v268, %v3994
    %v4002 = vmul.f32 %v273, %v3994
    %v4003 = vmul.f32 %v278, %v3994
    %v4005 = vsel %vm486, %v3982, 0
    %v4008 = vsel %vm486, %v3983, 0
    %v4011 = vsel %vm486, %v3984, 0
    %v4014 = vsel %vm486, %v3985, 0
    %v4017 = vsel %vm486, %v3986, 0
    %v4020 = vsel %vm486, %v3987, 0
    %v4023 = vsel %vm486, %v3988, 0
    %v4026 = vsel %vm486, %v3989, 0
    %4028 = vmatprep.subr.mxu0 0.0
    %4029 = vmatpush1.msra.mxu0 %v3976
    %4030 = vmatprep.subr.mxu0 0.0
    %4031 = vmatpush1.msra.mxu0 %v3977
    %4032 = vmatprep.subr.mxu0 0.0
    %4033 = vmatpush1.msra.mxu0 %v3978
    %4034 = vmatprep.subr.mxu0 0.0
    %4035 = vmatpush1.msra.mxu0 %v3979
    %4036 = vmatprep.subr.mxu0 0.0
    %4037 = vmatpush1.msra.mxu0 0.0
    %4038 = vmatprep.subr.mxu0 0.0
    %4039 = vmatpush1.msra.mxu0 0.0
    %4040 = vmatprep.subr.mxu0 0.0
    %4041 = vmatpush1.msra.mxu0 0.0
    %4042 = vmatprep.subr.mxu0 0.0
    %4043 = vmatpush1.msra.mxu0 0.0
    %4044 = vmatprep.subr.mxu0 0.0
    %4045 = vmatpush1.msra.mxu0 0.0
    %4046 = vmatprep.subr.mxu0 0.0
    %4047 = vmatpush1.msra.mxu0 0.0
    %4048 = vmatprep.subr.mxu0 0.0
    %4049 = vmatpush1.msra.mxu0 0.0
    %4050 = vmatprep.subr.mxu0 0.0
    %4051 = vmatpush1.msra.mxu0 0.0
    %4052 = vmatprep.subr.mxu0 0.0
    %4053 = vmatpush1.msra.mxu0 0.0
    %4054 = vmatprep.subr.mxu0 0.0
    %4055 = vmatpush1.msra.mxu0 0.0
    %4056 = vmatprep.subr.mxu0 0.0
    %4057 = vmatpush1.msra.mxu0 0.0
    %4058 = vmatprep.subr.mxu0 0.0
    %4059 = vmatpush1.msra.mxu0 0.0
    %4060 = vmatprep.subr.mxu0 0.0
    %4061 = vmatpush1.msra.mxu0 0.0
    %4062 = vmatprep.subr.mxu0 0.0
    %4063 = vmatpush1.msra.mxu0 0.0
    %4064 = vmatprep.subr.mxu0 0.0
    %4065 = vmatpush1.msra.mxu0 0.0
    %4066 = vmatprep.subr.mxu0 0.0
    %4067 = vmatpush1.msra.mxu0 0.0
    %4068 = vmatprep.subr.mxu0 0.0
    %4069 = vmatpush1.msra.mxu0 0.0
    %4070 = vmatprep.subr.mxu0 0.0
    %4071 = vmatpush1.msra.mxu0 0.0
    %4072 = vmatprep.subr.mxu0 0.0
    %4073 = vmatpush1.msra.mxu0 0.0
    %4074 = vmatprep.subr.mxu0 0.0
    %4075 = vmatpush1.msra.mxu0 0.0
    %4076 = vmatprep.subr.mxu0 0.0
    %4077 = vmatpush1.msra.mxu0 0.0
    %4078 = vmatprep.subr.mxu0 0.0
    %4079 = vmatpush1.msra.mxu0 0.0
    %4080 = vmatprep.subr.mxu0 0.0
    %4081 = vmatpush1.msra.mxu0 0.0
    %4082 = vmatprep.subr.mxu0 0.0
    %4083 = vmatpush1.msra.mxu0 0.0
    %4084 = vmatprep.subr.mxu0 0.0
    %4085 = vmatpush1.msra.mxu0 0.0
    %4086 = vmatprep.subr.mxu0 0.0
    %4087 = vmatpush1.msra.mxu0 0.0
    %4088 = vmatprep.subr.mxu0 0.0
    %4089 = vmatpush1.msra.mxu0 0.0
    %4090 = vmatprep.subr.mxu0 0.0
    %4091 = vmatpush1.msra.mxu0 0.0
    %4092 = vmatprep.mubr.f32.mxu0 0.0
    %4093 = vmatmul.mubr.f32.gmra.mrb[0].mxu0 %v4005
    %v4094 = vpop.f32.mrb[0].mxu0
    %v4095 = vadd.f32 %v3996, %v4094
    %v4096 = vpop.f32.mrb[0].mxu0
    %4097 = vmatprep.mubr.f32.mxu0 0.0
    %4098 = vmatmul.mubr.f32.gmra.mrb[0].mxu0 %v4008
    %v4099 = vpop.f32.mrb[0].mxu0
    %v4100 = vadd.f32 %v3997, %v4099
    %v4101 = vpop.f32.mrb[0].mxu0
    %4102 = vmatprep.mubr.f32.mxu0 0.0
    %4103 = vmatmul.mubr.f32.gmra.mrb[0].mxu0 %v4011
    %v4104 = vpop.f32.mrb[0].mxu0
    %v4105 = vadd.f32 %v3998, %v4104
    %v4106 = vpop.f32.mrb[0].mxu0
    %4107 = vmatprep.mubr.f32.mxu0 0.0
    %4108 = vmatmul.mubr.f32.gmra.mrb[0].mxu0 %v4014
    %v4109 = vpop.f32.mrb[0].mxu0
    %v4110 = vadd.f32 %v3999, %v4109
    %v4111 = vpop.f32.mrb[0].mxu0
    %4112 = vmatprep.mubr.f32.mxu0 0.0
    %4113 = vmatmul.mubr.f32.gmra.mrb[0].mxu0 %v4017
    %v4114 = vpop.f32.mrb[0].mxu0
    %v4115 = vadd.f32 %v4000, %v4114
    %v4116 = vpop.f32.mrb[0].mxu0
    %4117 = vmatprep.mubr.f32.mxu0 0.0
    %4118 = vmatmul.mubr.f32.gmra.mrb[0].mxu0 %v4020
    %v4119 = vpop.f32.mrb[0].mxu0
    %v4120 = vadd.f32 %v4001, %v4119
    %v4121 = vpop.f32.mrb[0].mxu0
    %4122 = vmatprep.mubr.f32.mxu0 0.0
    %4123 = vmatmul.mubr.f32.gmra.mrb[0].mxu0 %v4023
    %v4124 = vpop.f32.mrb[0].mxu0
    %v4125 = vadd.f32 %v4002, %v4124
    %v4126 = vpop.f32.mrb[0].mxu0
    %4127 = vmatprep.mubr.f32.mxu0 0.0
    %4128 = vmatmul.mubr.f32.gmra.mrb[0].mxu0 %v4026
    %v4129 = vpop.f32.mrb[0].mxu0
    %v4130 = vadd.f32 %v4003, %v4129
    %v4131 = vpop.f32.mrb[0].mxu0
    %4132 = vdwg.mxu0
    %vm4133 = vcmp.ge.f32.partialorder %v4095, 0.0
    %vm4134 = vcmp.ge.f32.partialorder %v4100, 0.0
    %vm4135 = vcmp.ge.f32.partialorder %v4105, 0.0
    %vm4136 = vcmp.ge.f32.partialorder %v4110, 0.0
    %vm4137 = vcmp.ge.f32.partialorder %v4115, 0.0
    %vm4138 = vcmp.ge.f32.partialorder %v4120, 0.0
    %vm4139 = vcmp.ge.f32.partialorder %v4125, 0.0
    %vm4140 = vcmp.ge.f32.partialorder %v4130, 0.0
    %v4141 = vmul.f32 %v4095, 0.2
    %v4142 = vmul.f32 %v4100, 0.2
    %v4143 = vmul.f32 %v4105, 0.2
    %v4144 = vmul.f32 %v4110, 0.2
    %v4145 = vmul.f32 %v4115, 0.2
    %v4146 = vmul.f32 %v4120, 0.2
    %v4147 = vmul.f32 %v4125, 0.2
    %v4148 = vmul.f32 %v4130, 0.2
    %v4149 = vsel %vm4133, %v4095, %v4141
    %v4150 = vsel %vm4134, %v4100, %v4142
    %v4151 = vsel %vm4135, %v4105, %v4143
    %v4152 = vsel %vm4136, %v4110, %v4144
    %v4153 = vsel %vm4137, %v4115, %v4145
    %v4154 = vsel %vm4138, %v4120, %v4146
    %v4155 = vsel %vm4139, %v4125, %v4147
    %v4156 = vsel %vm4140, %v4130, %v4148
    %v4158 = vlaneseq
    %v4159 = vshrl.u32 %v4158, 7
    %v4160 = vsub.s32 0, %v4159
    %v4161 = vrot.slane %v3981, %v4160
    %v4163 = vmul.f32 %v4149, %v4161
    %v4164 = vmul.f32 %v4150, %v4161
    %v4165 = vmul.f32 %v4151, %v4161
    %v4166 = vmul.f32 %v4152, %v4161
    %v4167 = vmul.f32 %v4153, %v4161
    %v4168 = vmul.f32 %v4154, %v4161
    %v4169 = vmul.f32 %v4155, %v4161
    %v4170 = vmul.f32 %v4156, %v4161
    %v4171 = vsel %vm486, %v4163, 0.0
    %4172 = vadd.xlane.f32.xlu0 %v4171
    %v4173 = vpop.xlane.xlu0 %4172
    %v4174 = vsel %vm486, %v4164, 0.0
    %4175 = vadd.xlane.f32.xlu0 %v4174
    %v4176 = vpop.xlane.xlu0 %4175
    %v4177 = vsel %vm486, %v4165, 0.0
    %4178 = vadd.xlane.f32.xlu0 %v4177
    %v4179 = vpop.xlane.xlu0 %4178
    %v4180 = vsel %vm486, %v4166, 0.0
    %4181 = vadd.xlane.f32.xlu0 %v4180
    %v4182 = vpop.xlane.xlu0 %4181
    %v4183 = vsel %vm486, %v4167, 0.0
    %4184 = vadd.xlane.f32.xlu0 %v4183
    %v4185 = vpop.xlane.xlu0 %4184
    %v4186 = vsel %vm486, %v4168, 0.0
    %4187 = vadd.xlane.f32.xlu0 %v4186
    %v4188 = vpop.xlane.xlu0 %4187
    %v4189 = vsel %vm486, %v4169, 0.0
    %4190 = vadd.xlane.f32.xlu0 %v4189
    %v4191 = vpop.xlane.xlu0 %4190
    %v4192 = vsel %vm486, %v4170, 0.0
    %4193 = vadd.xlane.f32.xlu0 %v4192
    %v4194 = vpop.xlane.xlu0 %4193
    %v4204 = vunpack.c.l.s4 839922192
    %v4205 = vunpack.c.0.s8 %v4204
    %v4206 = vlaneseq
    %v4207 = vshrl.u32 %v4206, 7
    %v4208 = vsub.s32 %v4205, %v4207
    %v4209 = vrot.slane %v4173, %v4208
    %v4211 = vunpack.c.l.s4 1985246804
    %v4212 = vunpack.c.0.s8 %v4211
    %v4213 = vlaneseq
    %v4214 = vshrl.u32 %v4213, 7
    %v4215 = vsub.s32 %v4212, %v4214
    %v4216 = vrot.slane %v4173, %v4215
    %v4218 = vunpack.c.l.s4 839922192
    %v4219 = vunpack.c.0.s8 %v4218
    %v4220 = vlaneseq
    %v4221 = vshrl.u32 %v4220, 7
    %v4222 = vsub.s32 %v4219, %v4221
    %v4223 = vrot.slane %v4176, %v4222
    %v4225 = vunpack.c.l.s4 1985246804
    %v4226 = vunpack.c.0.s8 %v4225
    %v4227 = vlaneseq
    %v4228 = vshrl.u32 %v4227, 7
    %v4229 = vsub.s32 %v4226, %v4228
    %v4230 = vrot.slane %v4176, %v4229
    %v4232 = vunpack.c.l.s4 839922192
    %v4233 = vunpack.c.0.s8 %v4232
    %v4234 = vlaneseq
    %v4235 = vshrl.u32 %v4234, 7
    %v4236 = vsub.s32 %v4233, %v4235
    %v4237 = vrot.slane %v4179, %v4236
    %v4239 = vunpack.c.l.s4 1985246804
    %v4240 = vunpack.c.0.s8 %v4239
    %v4241 = vlaneseq
    %v4242 = vshrl.u32 %v4241, 7
    %v4243 = vsub.s32 %v4240, %v4242
    %v4244 = vrot.slane %v4179, %v4243
    %v4246 = vunpack.c.l.s4 839922192
    %v4247 = vunpack.c.0.s8 %v4246
    %v4248 = vlaneseq
    %v4249 = vshrl.u32 %v4248, 7
    %v4250 = vsub.s32 %v4247, %v4249
    %v4251 = vrot.slane %v4182, %v4250
    %v4253 = vunpack.c.l.s4 1985246804
    %v4254 = vunpack.c.0.s8 %v4253
    %v4255 = vlaneseq
    %v4256 = vshrl.u32 %v4255, 7
    %v4257 = vsub.s32 %v4254, %v4256
    %v4258 = vrot.slane %v4182, %v4257
    %v4260 = vunpack.c.l.s4 839922192
    %v4261 = vunpack.c.0.s8 %v4260
    %v4262 = vlaneseq
    %v4263 = vshrl.u32 %v4262, 7
    %v4264 = vsub.s32 %v4261, %v4263
    %v4265 = vrot.slane %v4185, %v4264
    %v4267 = vunpack.c.l.s4 1985246804
    %v4268 = vunpack.c.0.s8 %v4267
    %v4269 = vlaneseq
    %v4270 = vshrl.u32 %v4269, 7
    %v4271 = vsub.s32 %v4268, %v4270
    %v4272 = vrot.slane %v4185, %v4271
    %v4274 = vunpack.c.l.s4 839922192
    %v4275 = vunpack.c.0.s8 %v4274
    %v4276 = vlaneseq
    %v4277 = vshrl.u32 %v4276, 7
    %v4278 = vsub.s32 %v4275, %v4277
    %v4279 = vrot.slane %v4188, %v4278
    %v4281 = vunpack.c.l.s4 1985246804
    %v4282 = vunpack.c.0.s8 %v4281
    %v4283 = vlaneseq
    %v4284 = vshrl.u32 %v4283, 7
    %v4285 = vsub.s32 %v4282, %v4284
    %v4286 = vrot.slane %v4188, %v4285
    %v4288 = vunpack.c.l.s4 839922192
    %v4289 = vunpack.c.0.s8 %v4288
    %v4290 = vlaneseq
    %v4291 = vshrl.u32 %v4290, 7
    %v4292 = vsub.s32 %v4289, %v4291
    %v4293 = vrot.slane %v4191, %v4292
    %v4295 = vunpack.c.l.s4 1985246804
    %v4296 = vunpack.c.0.s8 %v4295
    %v4297 = vlaneseq
    %v4298 = vshrl.u32 %v4297, 7
    %v4299 = vsub.s32 %v4296, %v4298
    %v4300 = vrot.slane %v4191, %v4299
    %v4302 = vunpack.c.l.s4 839922192
    %v4303 = vunpack.c.0.s8 %v4302
    %v4304 = vlaneseq
    %v4305 = vshrl.u32 %v4304, 7
    %v4306 = vsub.s32 %v4303, %v4305
    %v4307 = vrot.slane %v4194, %v4306
    %v4309 = vunpack.c.l.s4 1985246804
    %v4310 = vunpack.c.0.s8 %v4309
    %v4311 = vlaneseq
    %v4312 = vshrl.u32 %v4311, 7
    %v4313 = vsub.s32 %v4310, %v4312
    %v4314 = vrot.slane %v4194, %v4313
    %v4331 = vsel %vm1838, %v4209, -inf
    %v4332 = vrot.slane %v4331, 4
    %v4333 = vmax.f32 %v4331, %v4332
    %v4334 = vrot.slane %v4333, 2
    %v4335 = vmax.f32 %v4333, %v4334
    %v4336 = vrot.slane %v4335, 1
    %v4337 = vmax.f32 %v4335, %v4336
    %v4338 = vsel %vm1838, %v4216, -inf
    %v4339 = vrot.slane %v4338, 4
    %v4340 = vmax.f32 %v4338, %v4339
    %v4341 = vrot.slane %v4340, 2
    %v4342 = vmax.f32 %v4340, %v4341
    %v4343 = vrot.slane %v4342, 1
    %v4344 = vmax.f32 %v4342, %v4343
    %v4345 = vsel %vm1838, %v4223, -inf
    %v4346 = vrot.slane %v4345, 4
    %v4347 = vmax.f32 %v4345, %v4346
    %v4348 = vrot.slane %v4347, 2
    %v4349 = vmax.f32 %v4347, %v4348
    %v4350 = vrot.slane %v4349, 1
    %v4351 = vmax.f32 %v4349, %v4350
    %v4352 = vsel %vm1838, %v4230, -inf
    %v4353 = vrot.slane %v4352, 4
    %v4354 = vmax.f32 %v4352, %v4353
    %v4355 = vrot.slane %v4354, 2
    %v4356 = vmax.f32 %v4354, %v4355
    %v4357 = vrot.slane %v4356, 1
    %v4358 = vmax.f32 %v4356, %v4357
    %v4359 = vsel %vm1838, %v4237, -inf
    %v4360 = vrot.slane %v4359, 4
    %v4361 = vmax.f32 %v4359, %v4360
    %v4362 = vrot.slane %v4361, 2
    %v4363 = vmax.f32 %v4361, %v4362
    %v4364 = vrot.slane %v4363, 1
    %v4365 = vmax.f32 %v4363, %v4364
    %v4366 = vsel %vm1838, %v4244, -inf
    %v4367 = vrot.slane %v4366, 4
    %v4368 = vmax.f32 %v4366, %v4367
    %v4369 = vrot.slane %v4368, 2
    %v4370 = vmax.f32 %v4368, %v4369
    %v4371 = vrot.slane %v4370, 1
    %v4372 = vmax.f32 %v4370, %v4371
    %v4373 = vsel %vm1838, %v4251, -inf
    %v4374 = vrot.slane %v4373, 4
    %v4375 = vmax.f32 %v4373, %v4374
    %v4376 = vrot.slane %v4375, 2
    %v4377 = vmax.f32 %v4375, %v4376
    %v4378 = vrot.slane %v4377, 1
    %v4379 = vmax.f32 %v4377, %v4378
    %v4380 = vsel %vm1838, %v4258, -inf
    %v4381 = vrot.slane %v4380, 4
    %v4382 = vmax.f32 %v4380, %v4381
    %v4383 = vrot.slane %v4382, 2
    %v4384 = vmax.f32 %v4382, %v4383
    %v4385 = vrot.slane %v4384, 1
    %v4386 = vmax.f32 %v4384, %v4385
    %v4387 = vsel %vm1838, %v4265, -inf
    %v4388 = vrot.slane %v4387, 4
    %v4389 = vmax.f32 %v4387, %v4388
    %v4390 = vrot.slane %v4389, 2
    %v4391 = vmax.f32 %v4389, %v4390
    %v4392 = vrot.slane %v4391, 1
    %v4393 = vmax.f32 %v4391, %v4392
    %v4394 = vsel %vm1838, %v4272, -inf
    %v4395 = vrot.slane %v4394, 4
    %v4396 = vmax.f32 %v4394, %v4395
    %v4397 = vrot.slane %v4396, 2
    %v4398 = vmax.f32 %v4396, %v4397
    %v4399 = vrot.slane %v4398, 1
    %v4400 = vmax.f32 %v4398, %v4399
    %v4401 = vsel %vm1838, %v4279, -inf
    %v4402 = vrot.slane %v4401, 4
    %v4403 = vmax.f32 %v4401, %v4402
    %v4404 = vrot.slane %v4403, 2
    %v4405 = vmax.f32 %v4403, %v4404
    %v4406 = vrot.slane %v4405, 1
    %v4407 = vmax.f32 %v4405, %v4406
    %v4408 = vsel %vm1838, %v4286, -inf
    %v4409 = vrot.slane %v4408, 4
    %v4410 = vmax.f32 %v4408, %v4409
    %v4411 = vrot.slane %v4410, 2
    %v4412 = vmax.f32 %v4410, %v4411
    %v4413 = vrot.slane %v4412, 1
    %v4414 = vmax.f32 %v4412, %v4413
    %v4415 = vsel %vm1838, %v4293, -inf
    %v4416 = vrot.slane %v4415, 4
    %v4417 = vmax.f32 %v4415, %v4416
    %v4418 = vrot.slane %v4417, 2
    %v4419 = vmax.f32 %v4417, %v4418
    %v4420 = vrot.slane %v4419, 1
    %v4421 = vmax.f32 %v4419, %v4420
    %v4422 = vsel %vm1838, %v4300, -inf
    %v4423 = vrot.slane %v4422, 4
    %v4424 = vmax.f32 %v4422, %v4423
    %v4425 = vrot.slane %v4424, 2
    %v4426 = vmax.f32 %v4424, %v4425
    %v4427 = vrot.slane %v4426, 1
    %v4428 = vmax.f32 %v4426, %v4427
    %v4429 = vsel %vm1838, %v4307, -inf
    %v4430 = vrot.slane %v4429, 4
    %v4431 = vmax.f32 %v4429, %v4430
    %v4432 = vrot.slane %v4431, 2
    %v4433 = vmax.f32 %v4431, %v4432
    %v4434 = vrot.slane %v4433, 1
    %v4435 = vmax.f32 %v4433, %v4434
    %v4436 = vsel %vm1838, %v4314, -inf
    %v4437 = vrot.slane %v4436, 4
    %v4438 = vmax.f32 %v4436, %v4437
    %v4439 = vrot.slane %v4438, 2
    %v4440 = vmax.f32 %v4438, %v4439
    %v4441 = vrot.slane %v4440, 1
    %v4442 = vmax.f32 %v4440, %v4441
    %v4443 = vsub.f32 %v4209, %v4337
    %v4444 = vsub.f32 %v4216, %v4344
    %v4445 = vsub.f32 %v4223, %v4351
    %v4446 = vsub.f32 %v4230, %v4358
    %v4447 = vsub.f32 %v4237, %v4365
    %v4448 = vsub.f32 %v4244, %v4372
    %v4449 = vsub.f32 %v4251, %v4379
    %v4450 = vsub.f32 %v4258, %v4386
    %v4451 = vsub.f32 %v4265, %v4393
    %v4452 = vsub.f32 %v4272, %v4400
    %v4453 = vsub.f32 %v4279, %v4407
    %v4454 = vsub.f32 %v4286, %v4414
    %v4455 = vsub.f32 %v4293, %v4421
    %v4456 = vsub.f32 %v4300, %v4428
    %v4457 = vsub.f32 %v4307, %v4435
    %v4458 = vsub.f32 %v4314, %v4442
    %v4459 = vmul.f32 %v4443, 1.442695
    %v4460 = vpow.pop %v4459
    %v4461 = vmul.f32 %v4444, 1.442695
    %v4462 = vpow.pop %v4461
    %v4463 = vmul.f32 %v4445, 1.442695
    %v4464 = vpow.pop %v4463
    %v4465 = vmul.f32 %v4446, 1.442695
    %v4466 = vpow.pop %v4465
    %v4467 = vmul.f32 %v4447, 1.442695
    %v4468 = vpow.pop %v4467
    %v4469 = vmul.f32 %v4448, 1.442695
    %v4470 = vpow.pop %v4469
    %v4471 = vmul.f32 %v4449, 1.442695
    %v4472 = vpow.pop %v4471
    %v4473 = vmul.f32 %v4450, 1.442695
    %v4474 = vpow.pop %v4473
    %v4475 = vmul.f32 %v4451, 1.442695
    %v4476 = vpow.pop %v4475
    %v4477 = vmul.f32 %v4452, 1.442695
    %v4478 = vpow.pop %v4477
    %v4479 = vmul.f32 %v4453, 1.442695
    %v4480 = vpow.pop %v4479
    %v4481 = vmul.f32 %v4454, 1.442695
    %v4482 = vpow.pop %v4481
    %v4483 = vmul.f32 %v4455, 1.442695
    %v4484 = vpow.pop %v4483
    %v4485 = vmul.f32 %v4456, 1.442695
    %v4486 = vpow.pop %v4485
    %v4487 = vmul.f32 %v4457, 1.442695
    %v4488 = vpow.pop %v4487
    %v4489 = vmul.f32 %v4458, 1.442695
    %v4490 = vpow.pop %v4489
    %v4491 = vsel %vm1838, %v4460, 0.0
    %v4492 = vrot.slane %v4491, 4
    %v4493 = vadd.f32 %v4491, %v4492
    %v4494 = vrot.slane %v4493, 2
    %v4495 = vadd.f32 %v4493, %v4494
    %v4496 = vrot.slane %v4495, 1
    %v4497 = vadd.f32 %v4495, %v4496
    %v4498 = vsel %vm1838, %v4462, 0.0
    %v4499 = vrot.slane %v4498, 4
    %v4500 = vadd.f32 %v4498, %v4499
    %v4501 = vrot.slane %v4500, 2
    %v4502 = vadd.f32 %v4500, %v4501
    %v4503 = vrot.slane %v4502, 1
    %v4504 = vadd.f32 %v4502, %v4503
    %v4505 = vsel %vm1838, %v4464, 0.0
    %v4506 = vrot.slane %v4505, 4
    %v4507 = vadd.f32 %v4505, %v4506
    %v4508 = vrot.slane %v4507, 2
    %v4509 = vadd.f32 %v4507, %v4508
    %v4510 = vrot.slane %v4509, 1
    %v4511 = vadd.f32 %v4509, %v4510
    %v4512 = vsel %vm1838, %v4466, 0.0
    %v4513 = vrot.slane %v4512, 4
    %v4514 = vadd.f32 %v4512, %v4513
    %v4515 = vrot.slane %v4514, 2
    %v4516 = vadd.f32 %v4514, %v4515
    %v4517 = vrot.slane %v4516, 1
    %v4518 = vadd.f32 %v4516, %v4517
    %v4519 = vsel %vm1838, %v4468, 0.0
    %v4520 = vrot.slane %v4519, 4
    %v4521 = vadd.f32 %v4519, %v4520
    %v4522 = vrot.slane %v4521, 2
    %v4523 = vadd.f32 %v4521, %v4522
    %v4524 = vrot.slane %v4523, 1
    %v4525 = vadd.f32 %v4523, %v4524
    %v4526 = vsel %vm1838, %v4470, 0.0
    %v4527 = vrot.slane %v4526, 4
    %v4528 = vadd.f32 %v4526, %v4527
    %v4529 = vrot.slane %v4528, 2
    %v4530 = vadd.f32 %v4528, %v4529
    %v4531 = vrot.slane %v4530, 1
    %v4532 = vadd.f32 %v4530, %v4531
    %v4533 = vsel %vm1838, %v4472, 0.0
    %v4534 = vrot.slane %v4533, 4
    %v4535 = vadd.f32 %v4533, %v4534
    %v4536 = vrot.slane %v4535, 2
    %v4537 = vadd.f32 %v4535, %v4536
    %v4538 = vrot.slane %v4537, 1
    %v4539 = vadd.f32 %v4537, %v4538
    %v4540 = vsel %vm1838, %v4474, 0.0
    %v4541 = vrot.slane %v4540, 4
    %v4542 = vadd.f32 %v4540, %v4541
    %v4543 = vrot.slane %v4542, 2
    %v4544 = vadd.f32 %v4542, %v4543
    %v4545 = vrot.slane %v4544, 1
    %v4546 = vadd.f32 %v4544, %v4545
    %v4547 = vsel %vm1838, %v4476, 0.0
    %v4548 = vrot.slane %v4547, 4
    %v4549 = vadd.f32 %v4547, %v4548
    %v4550 = vrot.slane %v4549, 2
    %v4551 = vadd.f32 %v4549, %v4550
    %v4552 = vrot.slane %v4551, 1
    %v4553 = vadd.f32 %v4551, %v4552
    %v4554 = vsel %vm1838, %v4478, 0.0
    %v4555 = vrot.slane %v4554, 4
    %v4556 = vadd.f32 %v4554, %v4555
    %v4557 = vrot.slane %v4556, 2
    %v4558 = vadd.f32 %v4556, %v4557
    %v4559 = vrot.slane %v4558, 1
    %v4560 = vadd.f32 %v4558, %v4559
    %v4561 = vsel %vm1838, %v4480, 0.0
    %v4562 = vrot.slane %v4561, 4
    %v4563 = vadd.f32 %v4561, %v4562
    %v4564 = vrot.slane %v4563, 2
    %v4565 = vadd.f32 %v4563, %v4564
    %v4566 = vrot.slane %v4565, 1
    %v4567 = vadd.f32 %v4565, %v4566
    %v4568 = vsel %vm1838, %v4482, 0.0
    %v4569 = vrot.slane %v4568, 4
    %v4570 = vadd.f32 %v4568, %v4569
    %v4571 = vrot.slane %v4570, 2
    %v4572 = vadd.f32 %v4570, %v4571
    %v4573 = vrot.slane %v4572, 1
    %v4574 = vadd.f32 %v4572, %v4573
    %v4575 = vsel %vm1838, %v4484, 0.0
    %v4576 = vrot.slane %v4575, 4
    %v4577 = vadd.f32 %v4575, %v4576
    %v4578 = vrot.slane %v4577, 2
    %v4579 = vadd.f32 %v4577, %v4578
    %v4580 = vrot.slane %v4579, 1
    %v4581 = vadd.f32 %v4579, %v4580
    %v4582 = vsel %vm1838, %v4486, 0.0
    %v4583 = vrot.slane %v4582, 4
    %v4584 = vadd.f32 %v4582, %v4583
    %v4585 = vrot.slane %v4584, 2
    %v4586 = vadd.f32 %v4584, %v4585
    %v4587 = vrot.slane %v4586, 1
    %v4588 = vadd.f32 %v4586, %v4587
    %v4589 = vsel %vm1838, %v4488, 0.0
    %v4590 = vrot.slane %v4589, 4
    %v4591 = vadd.f32 %v4589, %v4590
    %v4592 = vrot.slane %v4591, 2
    %v4593 = vadd.f32 %v4591, %v4592
    %v4594 = vrot.slane %v4593, 1
    %v4595 = vadd.f32 %v4593, %v4594
    %v4596 = vsel %vm1838, %v4490, 0.0
    %v4597 = vrot.slane %v4596, 4
    %v4598 = vadd.f32 %v4596, %v4597
    %v4599 = vrot.slane %v4598, 2
    %v4600 = vadd.f32 %v4598, %v4599
    %v4601 = vrot.slane %v4600, 1
    %v4602 = vadd.f32 %v4600, %v4601
    %v4603 = vrcp.pop %v4497
    %v4604 = vmul.f32 %v4460, %v4603
    %v4605 = vrcp.pop %v4504
    %v4606 = vmul.f32 %v4462, %v4605
    %v4607 = vrcp.pop %v4511
    %v4608 = vmul.f32 %v4464, %v4607
    %v4609 = vrcp.pop %v4518
    %v4610 = vmul.f32 %v4466, %v4609
    %v4611 = vrcp.pop %v4525
    %v4612 = vmul.f32 %v4468, %v4611
    %v4613 = vrcp.pop %v4532
    %v4614 = vmul.f32 %v4470, %v4613
    %v4615 = vrcp.pop %v4539
    %v4616 = vmul.f32 %v4472, %v4615
    %v4617 = vrcp.pop %v4546
    %v4618 = vmul.f32 %v4474, %v4617
    %v4619 = vrcp.pop %v4553
    %v4620 = vmul.f32 %v4476, %v4619
    %v4621 = vrcp.pop %v4560
    %v4622 = vmul.f32 %v4478, %v4621
    %v4623 = vrcp.pop %v4567
    %v4624 = vmul.f32 %v4480, %v4623
    %v4625 = vrcp.pop %v4574
    %v4626 = vmul.f32 %v4482, %v4625
    %v4627 = vrcp.pop %v4581
    %v4628 = vmul.f32 %v4484, %v4627
    %v4629 = vrcp.pop %v4588
    %v4630 = vmul.f32 %v4486, %v4629
    %v4631 = vrcp.pop %v4595
    %v4632 = vmul.f32 %v4488, %v4631
    %v4633 = vrcp.pop %v4602
    %v4634 = vmul.f32 %v4490, %v4633
    %v4643 = vcombine.high %v3938, %v3938
    %v4644 = vcombine.high %v3943, %v3943
    %v4645 = vcombine.high %v3948, %v3948
    %v4646 = vcombine.high %v3953, %v3953
    %v4647 = vcombine.high %v3958, %v3958
    %v4648 = vcombine.high %v3963, %v3963
    %v4649 = vcombine.high %v3968, %v3968
    %v4650 = vcombine.high %v3973, %v3973
    %v4659 = vmul.f32 %v4604, %v3938
    %v4660 = vmul.f32 %v4606, %v4643
    %v4661 = vmul.f32 %v4608, %v3943
    %v4662 = vmul.f32 %v4610, %v4644
    %v4663 = vmul.f32 %v4612, %v3948
    %v4664 = vmul.f32 %v4614, %v4645
    %v4665 = vmul.f32 %v4616, %v3953
    %v4666 = vmul.f32 %v4618, %v4646
    %v4667 = vmul.f32 %v4620, %v3958
    %v4668 = vmul.f32 %v4622, %v4647
    %v4669 = vmul.f32 %v4624, %v3963
    %v4670 = vmul.f32 %v4626, %v4648
    %v4671 = vmul.f32 %v4628, %v3968
    %v4672 = vmul.f32 %v4630, %v4649
    %v4673 = vmul.f32 %v4632, %v3973
    %v4674 = vmul.f32 %v4634, %v4650
    %v4691 = vcombine.low %v4659, %v4660
    %v4692 = vcombine.low %v4661, %v4662
    %v4693 = vcombine.low %v4663, %v4664
    %v4694 = vcombine.low %v4665, %v4666
    %v4695 = vcombine.low %v4667, %v4668
    %v4696 = vcombine.low %v4669, %v4670
    %v4697 = vcombine.low %v4671, %v4672
    %v4698 = vcombine.low %v4673, %v4674
    %v4708 = vsel %vm3719, %v162, 0
    %v4711 = vsel %vm3719, %v165, 0
    %4713 = vmatprep.subr.mxu0 0.0
    %4714 = vmatpush1.msra.mxu0 %v4691
    %4715 = vmatprep.subr.mxu0 0.0
    %4716 = vmatpush1.msra.mxu0 %v4692
    %4717 = vmatprep.subr.mxu0 0.0
    %4718 = vmatpush1.msra.mxu0 %v4693
    %4719 = vmatprep.subr.mxu0 0.0
    %4720 = vmatpush1.msra.mxu0 %v4694
    %4721 = vmatprep.subr.mxu0 0.0
    %4722 = vmatpush1.msra.mxu0 %v4695
    %4723 = vmatprep.subr.mxu0 0.0
    %4724 = vmatpush1.msra.mxu0 %v4696
    %4725 = vmatprep.subr.mxu0 0.0
    %4726 = vmatpush1.msra.mxu0 %v4697
    %4727 = vmatprep.subr.mxu0 0.0
    %4728 = vmatpush1.msra.mxu0 %v4698
    %4729 = vmatprep.subr.mxu0 0.0
    %4730 = vmatpush1.msra.mxu0 0.0
    %4731 = vmatprep.subr.mxu0 0.0
    %4732 = vmatpush1.msra.mxu0 0.0
    %4733 = vmatprep.subr.mxu0 0.0
    %4734 = vmatpush1.msra.mxu0 0.0
    %4735 = vmatprep.subr.mxu0 0.0
    %4736 = vmatpush1.msra.mxu0 0.0
    %4737 = vmatprep.subr.mxu0 0.0
    %4738 = vmatpush1.msra.mxu0 0.0
    %4739 = vmatprep.subr.mxu0 0.0
    %4740 = vmatpush1.msra.mxu0 0.0
    %4741 = vmatprep.subr.mxu0 0.0
    %4742 = vmatpush1.msra.mxu0 0.0
    %4743 = vmatprep.subr.mxu0 0.0
    %4744 = vmatpush1.msra.mxu0 0.0
    %4745 = vmatprep.subr.mxu0 0.0
    %4746 = vmatpush1.msra.mxu0 0.0
    %4747 = vmatprep.subr.mxu0 0.0
    %4748 = vmatpush1.msra.mxu0 0.0
    %4749 = vmatprep.subr.mxu0 0.0
    %4750 = vmatpush1.msra.mxu0 0.0
    %4751 = vmatprep.subr.mxu0 0.0
    %4752 = vmatpush1.msra.mxu0 0.0
    %4753 = vmatprep.subr.mxu0 0.0
    %4754 = vmatpush1.msra.mxu0 0.0
    %4755 = vmatprep.subr.mxu0 0.0
    %4756 = vmatpush1.msra.mxu0 0.0
    %4757 = vmatprep.subr.mxu0 0.0
    %4758 = vmatpush1.msra.mxu0 0.0
    %4759 = vmatprep.subr.mxu0 0.0
    %4760 = vmatpush1.msra.mxu0 0.0
    %4761 = vmatprep.subr.mxu0 0.0
    %4762 = vmatpush1.msra.mxu0 0.0
    %4763 = vmatprep.subr.mxu0 0.0
    %4764 = vmatpush1.msra.mxu0 0.0
    %4765 = vmatprep.subr.mxu0 0.0
    %4766 = vmatpush1.msra.mxu0 0.0
    %4767 = vmatprep.subr.mxu0 0.0
    %4768 = vmatpush1.msra.mxu0 0.0
    %4769 = vmatprep.subr.mxu0 0.0
    %4770 = vmatpush1.msra.mxu0 0.0
    %4771 = vmatprep.subr.mxu0 0.0
    %4772 = vmatpush1.msra.mxu0 0.0
    %4773 = vmatprep.subr.mxu0 0.0
    %4774 = vmatpush1.msra.mxu0 0.0
    %4775 = vmatprep.subr.mxu0 0.0
    %4776 = vmatpush1.msra.mxu0 0.0
    %4777 = vmatprep.mubr.f32.mxu0 0.0
    %4778 = vmatmul.mubr.f32.gmra.mrb[0].mxu0 %v4708
    %v4779 = vpop.f32.mrb[0].mxu0
    %v4780 = vadd.f32 0.0, %v4779
    %v4781 = vpop.f32.mrb[0].mxu0
    %4782 = vmatprep.mubr.f32.mxu0 0.0
    %4783 = vmatmul.mubr.f32.gmra.mrb[0].mxu0 %v4711
    %v4784 = vpop.f32.mrb[0].mxu0
    %v4785 = vadd.f32 0.0, %v4784
    %v4786 = vpop.f32.mrb[0].mxu0
    %4787 = vdwg.mxu0
    %4790 = vrot.lane.b32.xlu0 %v4780, 32
    %v4791 = vpop.permute.xlu0 %4790
    %4792 = vrot.lane.b32.xlu0 %v4785, 32
    %v4793 = vpop.permute.xlu0 %4792
    %v4796 = vsel %vm486, %v192, %v4791
    %v4797 = vsel %vm486, %v193, %v4793
    %v4798 = vld [vmem:[%s11] sm:$0xff]
    %v4799 = vld [vmem:[%s11 + $0x8] sm:$0xff]
    %v4800 = vld [vmem:[%s11 + $0x10] sm:$0xff]
    %v4801 = vld [vmem:[%s11 + $0x18] sm:$0xff]
    %v4802 = vld [vmem:[%s11 + $0x20] sm:$0xff]
    %v4803 = vld [vmem:[%s11 + $0x28] sm:$0xff]
    %v4804 = vld [vmem:[%s11 + $0x30] sm:$0xff]
    %v4805 = vld [vmem:[%s11 + $0x38] sm:$0xff]
    %v4807 = vsel %vm3719, %v4796, 0
    %v4810 = vsel %vm3719, %v4797, 0
    %4812 = vmatprep.subr.mxu0 0.0
    %4813 = vmatpush1.msra.mxu0 %v4798
    %4814 = vmatprep.subr.mxu0 0.0
    %4815 = vmatpush1.msra.mxu0 %v4799
    %4816 = vmatprep.subr.mxu0 0.0
    %4817 = vmatpush1.msra.mxu0 %v4800
    %4818 = vmatprep.subr.mxu0 0.0
    %4819 = vmatpush1.msra.mxu0 %v4801
    %4820 = vmatprep.subr.mxu0 0.0
    %4821 = vmatpush1.msra.mxu0 %v4802
    %4822 = vmatprep.subr.mxu0 0.0
    %4823 = vmatpush1.msra.mxu0 %v4803
    %4824 = vmatprep.subr.mxu0 0.0
    %4825 = vmatpush1.msra.mxu0 %v4804
    %4826 = vmatprep.subr.mxu0 0.0
    %4827 = vmatpush1.msra.mxu0 %v4805
    %4828 = vmatprep.subr.mxu0 0.0
    %4829 = vmatpush1.msra.mxu0 0.0
    %4830 = vmatprep.subr.mxu0 0.0
    %4831 = vmatpush1.msra.mxu0 0.0
    %4832 = vmatprep.subr.mxu0 0.0
    %4833 = vmatpush1.msra.mxu0 0.0
    %4834 = vmatprep.subr.mxu0 0.0
    %4835 = vmatpush1.msra.mxu0 0.0
    %4836 = vmatprep.subr.mxu0 0.0
    %4837 = vmatpush1.msra.mxu0 0.0
    %4838 = vmatprep.subr.mxu0 0.0
    %4839 = vmatpush1.msra.mxu0 0.0
    %4840 = vmatprep.subr.mxu0 0.0
    %4841 = vmatpush1.msra.mxu0 0.0
    %4842 = vmatprep.subr.mxu0 0.0
    %4843 = vmatpush1.msra.mxu0 0.0
    %4844 = vmatprep.subr.mxu0 0.0
    %4845 = vmatpush1.msra.mxu0 0.0
    %4846 = vmatprep.subr.mxu0 0.0
    %4847 = vmatpush1.msra.mxu0 0.0
    %4848 = vmatprep.subr.mxu0 0.0
    %4849 = vmatpush1.msra.mxu0 0.0
    %4850 = vmatprep.subr.mxu0 0.0
    %4851 = vmatpush1.msra.mxu0 0.0
    %4852 = vmatprep.subr.mxu0 0.0
    %4853 = vmatpush1.msra.mxu0 0.0
    %4854 = vmatprep.subr.mxu0 0.0
    %4855 = vmatpush1.msra.mxu0 0.0
    %4856 = vmatprep.subr.mxu0 0.0
    %4857 = vmatpush1.msra.mxu0 0.0
    %4858 = vmatprep.subr.mxu0 0.0
    %4859 = vmatpush1.msra.mxu0 0.0
    %4860 = vmatprep.subr.mxu0 0.0
    %4861 = vmatpush1.msra.mxu0 0.0
    %4862 = vmatprep.subr.mxu0 0.0
    %4863 = vmatpush1.msra.mxu0 0.0
    %4864 = vmatprep.subr.mxu0 0.0
    %4865 = vmatpush1.msra.mxu0 0.0
    %4866 = vmatprep.subr.mxu0 0.0
    %4867 = vmatpush1.msra.mxu0 0.0
    %4868 = vmatprep.subr.mxu0 0.0
    %4869 = vmatpush1.msra.mxu0 0.0
    %4870 = vmatprep.subr.mxu0 0.0
    %4871 = vmatpush1.msra.mxu0 0.0
    %4872 = vmatprep.subr.mxu0 0.0
    %4873 = vmatpush1.msra.mxu0 0.0
    %4874 = vmatprep.subr.mxu0 0.0
    %4875 = vmatpush1.msra.mxu0 0.0
    %4876 = vmatprep.mubr.f32.mxu0 0.0
    %4877 = vmatmul.mubr.f32.gmra.mrb[0].mxu0 %v4807
    %v4878 = vpop.f32.mrb[0].mxu0
    %v4879 = vadd.f32 0.0, %v4878
    %v4880 = vpop.f32.mrb[0].mxu0
    %4881 = vmatprep.mubr.f32.mxu0 0.0
    %4882 = vmatmul.mubr.f32.gmra.mrb[0].mxu0 %v4810
    %v4883 = vpop.f32.mrb[0].mxu0
    %v4884 = vadd.f32 0.0, %v4883
    %v4885 = vpop.f32.mrb[0].mxu0
    %4886 = vdwg.mxu0
    %v4887 = vsub.f32 0.0, %v4879
    %v4888 = vsub.f32 0.0, %v4884
    %v4889 = vmul.f32 %v4887, 1.442695
    %v4890 = vpow.pop %v4889
    %v4891 = vmul.f32 %v4888, 1.442695
    %v4892 = vpow.pop %v4891
    %v4893 = vadd.f32 %v4890, 1.0
    %v4894 = vadd.f32 %v4892, 1.0
    %v4895 = vrcp.pop %v4893
    %v4896 = vmul.f32 1.0, %v4895
    %v4897 = vrcp.pop %v4894
    %v4898 = vmul.f32 1.0, %v4897
    %v4899 = vsub.f32 1.0, %v4896
    %v4900 = vsub.f32 1.0, %v4898
    %v4901 = vmul.f32 %v4899, %v192
    %v4902 = vmul.f32 %v4900, %v193
    %v4903 = vmul.f32 %v4896, %v4780
    %v4904 = vmul.f32 %v4898, %v4785
    %v4905 = vadd.f32 %v4901, %v4903
    %v4906 = vadd.f32 %v4902, %v4904
    %4907 = vst.msk [vmem:[#allocation2] sm:$0xff] %vm486, %v4905
    %4908 = vst.msk [vmem:[#allocation2 + $0x8] sm:$0xff] %vm486, %v4906
    // Predicated region
    $region50: #{global_context_extractor.1} parent=1 // pred_check
      _
    $region51: #{global_context_extractor.1} parent=1 // pred_check_branch
      %4910 = sbr.rel (0) target = $region53
    $region52: #{global_context_extractor.1} parent=1 // pred_region
      %s4912 = ssub.s32 256, 256
      %4913 = vsyncadd [#allocation3], %s4912
      %s4914 = sshll.u32 [#allocation2], 4
      %s4915 = int_to_ptr.vmem [resolvable:$true] %s4914
      %4920 = dma.vmem_to_hbm [thread:$0]  %s4915, 256, %s12, [#allocation3], 128, 128, 8
    $region53: #{global_context_extractor.1} parent=1 // pred_fallthru
      _
    // Predicated region
    $region54: #{global_context_extractor.1} parent=1 // pred_check
      _
    $region55: #{global_context_extractor.1} parent=1 // pred_check_branch
      %4922 = sbr.rel (0) target = $region57
    $region56: #{global_context_extractor.1} parent=1 // pred_region
      %4923 = dma.done [#allocation3], 256
    $region57: #{global_context_extractor.1} parent=1 // pred_fallthru
      _
    %4924 = vsyncpa [#allocation3], 1

</llo_original>
